<compile_context>
chip_gen: v5e
topology: v5e:2x2
jax: 0.10.0
libtpu: 0.0.40
codegen_flags: <defaults>
</compile_context>

<pallas_src>
import jax
import jax.numpy as jnp
from jax.experimental import pallas as pl
from jax.experimental.pallas import tpu as pltpu


def _round_up(x, m):
    return ((x + m - 1) // m) * m


def generator_kernel(z_ref, lab_ref, temb_ref,
                     w1_ref,
                     w2_ref, b2_ref,
                     w3_ref, b3_ref,
                     w4_ref, b4_ref,
                     out_ref):
    f32 = jnp.float32
    bf16 = jnp.bfloat16

    # In-kernel conditional bias:  one_hot(labels) @ T  ==  T[labels]  exactly
    # (0/1 multipliers, f32 accumulation).  T = emb @ W1[Dz:] + b1, folded once.
    lab = lab_ref[...]                                   # (tb, 1) int32
    tb, c_pad = lab.shape[0], temb_ref.shape[0]
    iota_c = jax.lax.broadcasted_iota(jnp.int32, (tb, c_pad), 1)
    onehot = jnp.where(lab == iota_c, 1.0, 0.0).astype(bf16)       # (tb, C_pad)
    cond = jnp.dot(onehot, temb_ref[...], preferred_element_type=f32)  # (tb, 256)

    # Layer 1: z @ W1z + cond
    h = jnp.dot(z_ref[...], w1_ref[...], preferred_element_type=f32) + cond
    h = jnp.maximum(h, 0.0)

    # Layer 2
    h = jnp.dot(h.astype(bf16), w2_ref[...], preferred_element_type=f32) + b2_ref[...]
    h = jnp.maximum(h, 0.0)

    # Layer 3
    h = jnp.dot(h.astype(bf16), w3_ref[...], preferred_element_type=f32) + b3_ref[...]
    h = jnp.maximum(h, 0.0)

    # Layer 4 + Tanh, stored as bf16 (out_ref dtype)
    h = jnp.dot(h.astype(bf16), w4_ref[...], preferred_element_type=f32) + b4_ref[...]
    out_ref[...] = jnp.tanh(h).astype(out_ref.dtype)


def _pick_batch_tile(B):
    """Batch tile: multiple of 8, capped at 512, and >= 2 grid steps whenever
    B >= 32 (so the "parallel" batch axis shards across both TCs on v7x)."""
    if B >= 2048:
        return 512
    if B >= 32:
        return min(512, _round_up(-(-B // 2), 8))
    return _round_up(max(B, 1), 8)


def generator_forward(z, labels, fparams):
    """z: (B, g_input_dim) f32; labels: (B,) int; fparams from fold_params().

    Returns (B, g_output_dim) bf16 (cast in the caller if f32 is required)."""
    B, Dz = z.shape
    Dout = fparams["g_output_dim"]
    Dout_p = fparams["w4"].shape[1]          # padded to a multiple of 128
    H1, H2, H3 = 256, 512, 1024
    C_pad = fparams["t_emb"].shape[0]

    tb = _pick_batch_tile(B)
    B_pad = _round_up(B, tb)
    if B_pad != B:
        z = jnp.pad(z, ((0, B_pad - B), (0, 0)))
        labels = jnp.pad(labels, (0, B_pad - B))      # label 0 for pad rows (sliced off)
    z_bf16 = z.astype(jnp.bfloat16)
    labels_2d = labels.astype(jnp.int32).reshape(B_pad, 1)

    grid = (B_pad // tb,)

    def act_spec(d):
        return pl.BlockSpec((tb, d), lambda i: (i, 0))

    def resident_spec(shape):
        return pl.BlockSpec(shape, lambda i: (0, 0))

    # VMEM budget: resident weights (x2 buffers worst case) + pipelined
    # activation/output tiles (x2) + f32 intermediates + compiler headroom.
    weight_bytes = sum(int(fparams[k].size) * fparams[k].dtype.itemsize
                       for k in ("t_emb", "w1z", "w2", "b2", "w3", "b3", "w4", "b4"))
    tile_bytes = tb * (Dz * 2 + 4 + Dout_p * 2)
    interm_bytes = tb * (H1 + H2 + H3 + Dout_p) * 4
    vmem_limit = int(2 * weight_bytes + 2 * tile_bytes + interm_bytes + (8 << 20))
    vmem_limit = min(max(vmem_limit, 16 << 20), 40 << 20)

    # Advisory cost model for XLA's scheduler.
    flops = 2 * B_pad * (C_pad * H1 + Dz * H1 + H1 * H2 + H2 * H3 + H3 * Dout_p)
    bytes_accessed = (z_bf16.size * 2 + labels_2d.size * 4 + weight_bytes
                      + B_pad * Dout_p * 2)

    out_p = pl.pallas_call(
        generator_kernel,
        out_shape=jax.ShapeDtypeStruct((B_pad, Dout_p), jnp.bfloat16),
        grid=grid,
        in_specs=[
            act_spec(Dz),                            # z        (bf16, streamed)
            act_spec(1),                             # labels   (int32, streamed)
            resident_spec(fparams["t_emb"].shape),   # folded cond table (bf16)
            resident_spec(fparams["w1z"].shape),
            resident_spec(fparams["w2"].shape),
            resident_spec(fparams["b2"].shape),
            resident_spec(fparams["w3"].shape),
            resident_spec(fparams["b3"].shape),
            resident_spec(fparams["w4"].shape),
            resident_spec(fparams["b4"].shape),
        ],
        out_specs=act_spec(Dout_p),
        compiler_params=pltpu.CompilerParams(
            dimension_semantics=("parallel",),
            vmem_limit_bytes=vmem_limit),
        cost_estimate=pl.CostEstimate(
            flops=int(flops),
            transcendentals=int(B_pad * Dout_p),
            bytes_accessed=int(bytes_accessed)),
    )(z_bf16, labels_2d,
      fparams["t_emb"],
      fparams["w1z"],
      fparams["w2"], fparams["b2"],
      fparams["w3"], fparams["b3"],
      fparams["w4"], fparams["b4"])

    return out_p[:B, :Dout]


def init_params(key, g_input_dim, g_output_dim, num_classes):
    """PyTorch-shaped f32 params (Embedding + 4 Linear layers)."""
    ks = jax.random.split(key, 9)

    def linear(kw, kb, fan_in, fan_out):
        bound = 1.0 / jnp.sqrt(fan_in)
        w = jax.random.uniform(kw, (fan_in, fan_out), jnp.float32, -bound, bound)
        b = jax.random.uniform(kb, (1, fan_out), jnp.float32, -bound, bound)
        return w, b

    d_in = g_input_dim + num_classes
    emb = jax.random.normal(ks[0], (num_classes, num_classes), jnp.float32)
    w1, b1 = linear(ks[1], ks[2], d_in, 256)
    w2, b2 = linear(ks[3], ks[4], 256, 512)
    w3, b3 = linear(ks[5], ks[6], 512, 1024)
    w4, b4 = linear(ks[7], ks[8], 1024, g_output_dim)
    return {"emb": emb, "w1": w1, "b1": b1, "w2": w2, "b2": b2,
            "w3": w3, "b3": b3, "w4": w4, "b4": b4,
            "g_input_dim": g_input_dim}


def fold_params(p):
    """Fold embedding/concat/b1 into a (C_pad,256) bf16 table; bf16 weights; pad Dout."""
    Dz = p["g_input_dim"]
    bf16 = jnp.bfloat16

    # T[c] = emb[c] @ W1[Dz:] + b1   (exact fold of cat([z, emb]) @ W1 + b1)
    t_emb = p["emb"] @ p["w1"][Dz:, :] + p["b1"]            # (C, 256) f32
    C = t_emb.shape[0]
    C_pad = _round_up(C, 16)                                # bf16 sublane packing
    t_emb = jnp.pad(t_emb, ((0, C_pad - C), (0, 0))).astype(bf16)

    Dout = p["w4"].shape[1]
    Dout_p = _round_up(Dout, 128)
    w4 = jnp.pad(p["w4"], ((0, 0), (0, Dout_p - Dout)))
    b4 = jnp.pad(p["b4"], ((0, 0), (0, Dout_p - Dout)))

    return {
        "t_emb": t_emb,
        "w1z": p["w1"][:Dz, :].astype(bf16),
        "w2": p["w2"].astype(bf16), "b2": p["b2"],
        "w3": p["w3"].astype(bf16), "b3": p["b3"],
        "w4": w4.astype(bf16), "b4": b4,
        "g_output_dim": Dout,
        "num_classes": C,
    }


def generator_reference_f32(z, labels, p):
    """Pure-JAX f32 reference mirroring the PyTorch forward exactly."""
    emb = p["emb"][labels]
    x = jnp.concatenate([z, emb], axis=1)
    h = jax.nn.relu(x @ p["w1"] + p["b1"])
    h = jax.nn.relu(h @ p["w2"] + p["b2"])
    h = jax.nn.relu(h @ p["w3"] + p["b3"])
    return jnp.tanh(h @ p["w4"] + p["b4"])


def generator_reference_mirrored(z, labels, fp):
    """Pure-JAX reference with the SAME bf16/f32 mixed precision as the kernel."""
    f32, bf16 = jnp.float32, jnp.bfloat16
    cond = fp["t_emb"][labels].astype(f32)    # == one_hot @ t_emb inside the kernel
    h = jnp.dot(z.astype(bf16), fp["w1z"], preferred_element_type=f32) + cond
    h = jax.nn.relu(h)
    h = jnp.dot(h.astype(bf16), fp["w2"], preferred_element_type=f32) + fp["b2"]
    h = jax.nn.relu(h)
    h = jnp.dot(h.astype(bf16), fp["w3"], preferred_element_type=f32) + fp["b3"]
    h = jax.nn.relu(h)
    h = jnp.dot(h.astype(bf16), fp["w4"], preferred_element_type=f32) + fp["b4"]
    return jnp.tanh(h)[:, :fp["g_output_dim"]]


if __name__ == "__main__":
    B = 8
    g_input_dim = 64
    g_output_dim = 256
    num_classes = 10

    key = jax.random.PRNGKey(0)
    kz, kl, kp = jax.random.split(key, 3)

    z = jax.random.normal(kz, (B, g_input_dim), jnp.float32)
    labels = jax.random.randint(kl, (B,), 0, num_classes, jnp.int32)

    params = init_params(kp, g_input_dim, g_output_dim, num_classes)
    fparams = fold_params(params)

    out = generator_forward(z, labels, fparams)
    out = jax.block_until_ready(out)
    assert out.shape == (B, g_output_dim)
    assert out.dtype == jnp.bfloat16
    out_f32 = out.astype(jnp.float32)

    # Check vs. a reference with the kernel's mixed precision (tolerance covers
    # the final bf16 output quantization, ~1 bf16 ulp near |1| ~= 8e-3).
    ref_mirror = generator_reference_mirrored(z, labels, fparams)
    assert jnp.allclose(out_f32, ref_mirror, atol=1e-2, rtol=1e-2), \
        "mismatch vs mirrored (bf16) reference"

    # Loose check vs. the full-f32 PyTorch-semantics reference (bf16 weights +
    # bf16 output introduce ~0.5% rounding; tanh output is in [-1, 1]).
    ref_f32 = generator_reference_f32(z, labels, params)
    assert jnp.allclose(out_f32, ref_f32, atol=3e-2, rtol=3e-2), \
        "mismatch vs f32 reference"

    print("KERNEL_OK")
</pallas_src>

<mosaic_0001>
module attributes {stable_mosaic.version = 11 : i64} {
  func.func @generator_kernel(%arg0: i32, %arg1: memref<8x64xbf16, #tpu.memory_space<vmem>>, %arg2: memref<8x1xi32, #tpu.memory_space<vmem>>, %arg3: memref<16x256xbf16, #tpu.memory_space<vmem>>, %arg4: memref<64x256xbf16, #tpu.memory_space<vmem>>, %arg5: memref<256x512xbf16, #tpu.memory_space<vmem>>, %arg6: memref<1x512xf32, #tpu.memory_space<vmem>>, %arg7: memref<512x1024xbf16, #tpu.memory_space<vmem>>, %arg8: memref<1x1024xf32, #tpu.memory_space<vmem>>, %arg9: memref<1024x256xbf16, #tpu.memory_space<vmem>>, %arg10: memref<1x256xf32, #tpu.memory_space<vmem>>, %arg11: memref<8x256xbf16, #tpu.memory_space<vmem>>) attributes {dimension_semantics = [#tpu.dimension_semantics<parallel>], iteration_bounds = array<i64: 1>, scalar_prefetch = 0 : i64, scratch_operands = 0 : i64, tpu.core_type = #tpu.core_type<tc>, window_params = [{transform_indices = @transform_0, window_bounds = array<i64: 8, 64>}, {transform_indices = @transform_1, window_bounds = array<i64: 8, 1>}, {pipeline_mode = #tpu.pipeline_mode<synchronous>, transform_indices = @transform_2, window_bounds = array<i64: 16, 256>}, {pipeline_mode = #tpu.pipeline_mode<synchronous>, transform_indices = @transform_3, window_bounds = array<i64: 64, 256>}, {pipeline_mode = #tpu.pipeline_mode<synchronous>, transform_indices = @transform_4, window_bounds = array<i64: 256, 512>}, {pipeline_mode = #tpu.pipeline_mode<synchronous>, transform_indices = @transform_5, window_bounds = array<i64: 1, 512>}, {pipeline_mode = #tpu.pipeline_mode<synchronous>, transform_indices = @transform_6, window_bounds = array<i64: 512, 1024>}, {pipeline_mode = #tpu.pipeline_mode<synchronous>, transform_indices = @transform_7, window_bounds = array<i64: 1, 1024>}, {pipeline_mode = #tpu.pipeline_mode<synchronous>, transform_indices = @transform_8, window_bounds = array<i64: 1024, 256>}, {pipeline_mode = #tpu.pipeline_mode<synchronous>, transform_indices = @transform_9, window_bounds = array<i64: 1, 256>}, {transform_indices = @transform_10, window_bounds = array<i64: 8, 256>}]} {
    %c0 = arith.constant 0 : index
    %c0_0 = arith.constant 0 : index
    %0 = vector.load %arg2[%c0, %c0_0] : memref<8x1xi32, #tpu.memory_space<vmem>>, vector<8x1xi32>
    %1 = tpu.iota {dimensions = array<i32: 1>} : vector<8x16xi32>
    %2 = vector.broadcast %0 : vector<8x1xi32> to vector<8x16xi32>
    %3 = arith.cmpi eq, %2, %1 : vector<8x16xi32>
    %cst = arith.constant 1.000000e+00 : f32
    %cst_1 = arith.constant 0.000000e+00 : f32
    %4 = vector.broadcast %cst : f32 to vector<8x16xf32>
    %5 = vector.broadcast %cst_1 : f32 to vector<8x16xf32>
    %6 = arith.select %3, %4, %5 : vector<8x16xi1>, vector<8x16xf32>
    %7 = arith.truncf %6 : vector<8x16xf32> to vector<8x16xbf16>
    %c0_2 = arith.constant 0 : index
    %c0_3 = arith.constant 0 : index
    %8 = vector.load %arg3[%c0_2, %c0_3] : memref<16x256xbf16, #tpu.memory_space<vmem>>, vector<16x256xbf16>
    %cst_4 = arith.constant dense<0.000000e+00> : vector<8x256xf32>
    %9 = tpu.matmul %7, %8, %cst_4 {dimension_numbers = #tpu.dot_dimension_numbers<[1], [0], [0], [1], [0, 0, 1, 1], [], []>} : vector<8x16xbf16>, vector<16x256xbf16>, vector<8x256xf32> -> vector<8x256xf32>
    %c0_5 = arith.constant 0 : index
    %c0_6 = arith.constant 0 : index
    %10 = vector.load %arg1[%c0_5, %c0_6] : memref<8x64xbf16, #tpu.memory_space<vmem>>, vector<8x64xbf16>
    %c0_7 = arith.constant 0 : index
    %c0_8 = arith.constant 0 : index
    %11 = vector.load %arg4[%c0_7, %c0_8] : memref<64x256xbf16, #tpu.memory_space<vmem>>, vector<64x256xbf16>
    %cst_9 = arith.constant dense<0.000000e+00> : vector<8x256xf32>
    %12 = tpu.matmul %10, %11, %cst_9 {dimension_numbers = #tpu.dot_dimension_numbers<[1], [0], [0], [1], [0, 0, 1, 1], [], []>} : vector<8x64xbf16>, vector<64x256xbf16>, vector<8x256xf32> -> vector<8x256xf32>
    %13 = arith.addf %12, %9 : vector<8x256xf32>
    %cst_10 = arith.constant 0.000000e+00 : f32
    %14 = vector.broadcast %cst_10 : f32 to vector<8x256xf32>
    %15 = arith.maximumf %13, %14 : vector<8x256xf32>
    %16 = arith.truncf %15 : vector<8x256xf32> to vector<8x256xbf16>
    %c0_11 = arith.constant 0 : index
    %c0_12 = arith.constant 0 : index
    %17 = vector.load %arg5[%c0_11, %c0_12] : memref<256x512xbf16, #tpu.memory_space<vmem>>, vector<256x512xbf16>
    %cst_13 = arith.constant dense<0.000000e+00> : vector<8x512xf32>
    %18 = tpu.matmul %16, %17, %cst_13 {dimension_numbers = #tpu.dot_dimension_numbers<[1], [0], [0], [1], [0, 0, 1, 1], [], []>} : vector<8x256xbf16>, vector<256x512xbf16>, vector<8x512xf32> -> vector<8x512xf32>
    %c0_14 = arith.constant 0 : index
    %c0_15 = arith.constant 0 : index
    %19 = vector.load %arg6[%c0_14, %c0_15] : memref<1x512xf32, #tpu.memory_space<vmem>>, vector<1x512xf32>
    %20 = vector.broadcast %19 : vector<1x512xf32> to vector<8x512xf32>
    %21 = arith.addf %18, %20 : vector<8x512xf32>
    %cst_16 = arith.constant 0.000000e+00 : f32
    %22 = vector.broadcast %cst_16 : f32 to vector<8x512xf32>
    %23 = arith.maximumf %21, %22 : vector<8x512xf32>
    %24 = arith.truncf %23 : vector<8x512xf32> to vector<8x512xbf16>
    %c0_17 = arith.constant 0 : index
    %c0_18 = arith.constant 0 : index
    %25 = vector.load %arg7[%c0_17, %c0_18] : memref<512x1024xbf16, #tpu.memory_space<vmem>>, vector<512x1024xbf16>
    %cst_19 = arith.constant dense<0.000000e+00> : vector<8x1024xf32>
    %26 = tpu.matmul %24, %25, %cst_19 {dimension_numbers = #tpu.dot_dimension_numbers<[1], [0], [0], [1], [0, 0, 1, 1], [], []>} : vector<8x512xbf16>, vector<512x1024xbf16>, vector<8x1024xf32> -> vector<8x1024xf32>
    %c0_20 = arith.constant 0 : index
    %c0_21 = arith.constant 0 : index
    %27 = vector.load %arg8[%c0_20, %c0_21] : memref<1x1024xf32, #tpu.memory_space<vmem>>, vector<1x1024xf32>
    %28 = vector.broadcast %27 : vector<1x1024xf32> to vector<8x1024xf32>
    %29 = arith.addf %26, %28 : vector<8x1024xf32>
    %cst_22 = arith.constant 0.000000e+00 : f32
    %30 = vector.broadcast %cst_22 : f32 to vector<8x1024xf32>
    %31 = arith.maximumf %29, %30 : vector<8x1024xf32>
    %32 = arith.truncf %31 : vector<8x1024xf32> to vector<8x1024xbf16>
    %c0_23 = arith.constant 0 : index
    %c0_24 = arith.constant 0 : index
    %33 = vector.load %arg9[%c0_23, %c0_24] : memref<1024x256xbf16, #tpu.memory_space<vmem>>, vector<1024x256xbf16>
    %cst_25 = arith.constant dense<0.000000e+00> : vector<8x256xf32>
    %34 = tpu.matmul %32, %33, %cst_25 {dimension_numbers = #tpu.dot_dimension_numbers<[1], [0], [0], [1], [0, 0, 1, 1], [], []>} : vector<8x1024xbf16>, vector<1024x256xbf16>, vector<8x256xf32> -> vector<8x256xf32>
    %c0_26 = arith.constant 0 : index
    %c0_27 = arith.constant 0 : index
    %35 = vector.load %arg10[%c0_26, %c0_27] : memref<1x256xf32, #tpu.memory_space<vmem>>, vector<1x256xf32>
    %36 = vector.broadcast %35 : vector<1x256xf32> to vector<8x256xf32>
    %37 = arith.addf %34, %36 : vector<8x256xf32>
    %38 = math.tanh %37 : vector<8x256xf32>
    %39 = arith.truncf %38 : vector<8x256xf32> to vector<8x256xbf16>
    %c0_28 = arith.constant 0 : index
    %c0_29 = arith.constant 0 : index
    %40 = vector.load %arg11[%c0_28, %c0_29] : memref<8x256xbf16, #tpu.memory_space<vmem>>, vector<8x256xbf16>
    tpu.vector_store %arg11[%c0_28, %c0_29], %39 {strides = array<i32>} : memref<8x256xbf16, #tpu.memory_space<vmem>>, vector<8x256xbf16>,
    return
  }
  func.func @transform_0(%arg0: i32) -> (i32, i32) {
    %c0_i32 = arith.constant 0 : i32
    %c0_i32_0 = arith.constant 0 : i32
    return %arg0, %c0_i32 : i32, i32
  }
  func.func @transform_1(%arg0: i32) -> (i32, i32) {
    %c0_i32 = arith.constant 0 : i32
    %c0_i32_0 = arith.constant 0 : i32
    return %arg0, %c0_i32 : i32, i32
  }
  func.func @transform_2(%arg0: i32) -> (i32, i32) {
    %c0_i32 = arith.constant 0 : i32
    %c0_i32_0 = arith.constant 0 : i32
    %c0_i32_1 = arith.constant 0 : i32
    return %c0_i32, %c0_i32_0 : i32, i32
  }
  func.func @transform_3(%arg0: i32) -> (i32, i32) {
    %c0_i32 = arith.constant 0 : i32
    %c0_i32_0 = arith.constant 0 : i32
    %c0_i32_1 = arith.constant 0 : i32
    return %c0_i32, %c0_i32_0 : i32, i32
  }
  func.func @transform_4(%arg0: i32) -> (i32, i32) {
    %c0_i32 = arith.constant 0 : i32
    %c0_i32_0 = arith.constant 0 : i32
    %c0_i32_1 = arith.constant 0 : i32
    return %c0_i32, %c0_i32_0 : i32, i32
  }
  func.func @transform_5(%arg0: i32) -> (i32, i32) {
    %c0_i32 = arith.constant 0 : i32
    %c0_i32_0 = arith.constant 0 : i32
    %c0_i32_1 = arith.constant 0 : i32
    return %c0_i32, %c0_i32_0 : i32, i32
  }
  func.func @transform_6(%arg0: i32) -> (i32, i32) {
    %c0_i32 = arith.constant 0 : i32
    %c0_i32_0 = arith.constant 0 : i32
    %c0_i32_1 = arith.constant 0 : i32
    return %c0_i32, %c0_i32_0 : i32, i32
  }
  func.func @transform_7(%arg0: i32) -> (i32, i32) {
    %c0_i32 = arith.constant 0 : i32
    %c0_i32_0 = arith.constant 0 : i32
    %c0_i32_1 = arith.constant 0 : i32
    return %c0_i32, %c0_i32_0 : i32, i32
  }
  func.func @transform_8(%arg0: i32) -> (i32, i32) {
    %c0_i32 = arith.constant 0 : i32
    %c0_i32_0 = arith.constant 0 : i32
    %c0_i32_1 = arith.constant 0 : i32
    return %c0_i32, %c0_i32_0 : i32, i32
  }
  func.func @transform_9(%arg0: i32) -> (i32, i32) {
    %c0_i32 = arith.constant 0 : i32
    %c0_i32_0 = arith.constant 0 : i32
    %c0_i32_1 = arith.constant 0 : i32
    return %c0_i32, %c0_i32_0 : i32, i32
  }
  func.func @transform_10(%arg0: i32) -> (i32, i32) {
    %c0_i32 = arith.constant 0 : i32
    %c0_i32_0 = arith.constant 0 : i32
    return %arg0, %c0_i32 : i32, i32
  }
}

</mosaic_0001>

<llo_original>
// kernel: tpu_custom_call.1
$region0: #{tpu_custom_call.1}
  #allocation0 [shape = 'u32[]', space=smem, size = 0x4, offset = 0x4, fixed_abs, tag = 'smem constant byte address 0x4 - core index']
  #allocation1 [shape = 'u32[72,128]{1,0:T(1,128)}', space=vmem, size = 0x9000, scoped, tag = 'internal scratch']
  %s0 = inlined_call_operand.vmem [shape: bf16[8,64], index: 0, kind: input, shape index: {}]
  %s1 = inlined_call_operand.vmem [shape: s32[8,1], index: 1, kind: input, shape index: {}]
  %s2 = inlined_call_operand.hbm [shape: bf16[16,256], index: 2, kind: input, shape index: {}]
  %s3 = inlined_call_operand.hbm [shape: bf16[64,256], index: 3, kind: input, shape index: {}]
  %s4 = inlined_call_operand.hbm [shape: bf16[256,512], index: 4, kind: input, shape index: {}]
  %s5 = inlined_call_operand.hbm [shape: f32[1,512], index: 5, kind: input, shape index: {}]
  %s6 = inlined_call_operand.hbm [shape: bf16[512,1024], index: 6, kind: input, shape index: {}]
  %s7 = inlined_call_operand.vmem [shape: f32[1,1024], index: 7, kind: input, shape index: {}]
  %s8 = inlined_call_operand.hbm [shape: bf16[1024,256], index: 8, kind: input, shape index: {}]
  %s9 = inlined_call_operand.vmem [shape: f32[1,256], index: 9, kind: input, shape index: {}]
  %s10 = inlined_call_operand.hbm [shape: bf16[8,256], index: 10, kind: output, shape index: {}]
  %s11 = sld [smem:[#allocation0]]
  $region74: #{tpu_custom_call.1} parent=0
    _
  %s13 = ssub.s32 1, %s11
  %s14 = scalar_select 0, %s13, %s11
  $region1: #{tpu_custom_call.1} parent=0
    #allocation2 [shape = 'u8[8192]{0}', space=vmem, size = 0x2000, scoped, tag = 'input window, operand 2, single buffered']
    #allocation3 [shape = 's32[1]{0}', space=sflag, size = 0x4, scoped, tag = 'scoped memory for tpu_custom_call.1']
    #allocation4 [shape = 's32[1]{0}', space=sflag, size = 0x4, scoped, tag = 'scoped memory for tpu_custom_call.1']
    #allocation5 [shape = 'u8[32768]{0}', space=vmem, size = 0x8000, scoped, tag = 'input window, operand 3, single buffered']
    #allocation6 [shape = 's32[1]{0}', space=sflag, size = 0x4, scoped, tag = 'scoped memory for tpu_custom_call.1']
    #allocation7 [shape = 'u8[262144]{0}', space=vmem, size = 0x40000, scoped, tag = 'input window, operand 4, single buffered']
    #allocation8 [shape = 'u8[2048]{0}', space=vmem, size = 0x800, scoped, tag = 'input window, operand 5, single buffered']
    #allocation9 [shape = 's32[1]{0}', space=sflag, size = 0x4, scoped, tag = 'scoped memory for tpu_custom_call.1']
    #allocation10 [shape = 'u8[1048576]{0}', space=vmem, size = 0x100000, scoped, tag = 'input window, operand 6, single buffered']
    #allocation11 [shape = 'u8[524288]{0}', space=vmem, size = 0x80000, scoped, tag = 'input window, operand 8, single buffered']
    #allocation12 [shape = 's32[1]{0}', space=sflag, size = 0x4, scoped, tag = 'scoped memory for tpu_custom_call.1']
    #allocation13 [shape = 'u8[4096]{0}', space=vmem, size = 0x1000, scoped, tag = 'output window, operand 0, single buffered']
    %15 = vsyncpa [#allocation3], 0
    %16 = vsyncpa [#allocation6], 0
    %17 = vsyncpa [#allocation9], 0
    %18 = vsyncpa [#allocation12], 0
    %19 = vsyncpa [#allocation4], 0
    // Predicated region
    $region2: #{tpu_custom_call.1} parent=1 // pred_check
      _
    $region3: #{tpu_custom_call.1} parent=1 // pred_check_branch
      %21 = sbr.rel (0) target = $region5
    $region4: #{tpu_custom_call.1} parent=1 // pred_region
      _
    $region5: #{tpu_custom_call.1} parent=1 // pred_fallthru
      _
    // Predicated region
    $region6: #{tpu_custom_call.1} parent=1 // pred_check
      _
    $region7: #{tpu_custom_call.1} parent=1 // pred_check_branch
      %23 = sbr.rel (0) target = $region9
    $region8: #{tpu_custom_call.1} parent=1 // pred_region
      _
    $region9: #{tpu_custom_call.1} parent=1 // pred_fallthru
      _
    // Predicated region
    $region10: #{tpu_custom_call.1} parent=1 // pred_check
      _
    $region11: #{tpu_custom_call.1} parent=1 // pred_check_branch
      %25 = sbr.rel (0) target = $region13
    $region12: #{tpu_custom_call.1} parent=1 // pred_region
      %27 = vsyncadd [#allocation3], 0
      %s28 = sshll.u32 %s2, 4
      %s29 = int_to_ptr.hbm [resolvable:$true] %s28
      %s30 = sshll.u32 [#allocation2], 4
      %s31 = int_to_ptr.vmem [resolvable:$true] %s30
      %36 = dma.hbm_to_vmem [thread:$0]  %s29, 256, %s31, [#allocation3], 128, 128, 8
    $region13: #{tpu_custom_call.1} parent=1 // pred_fallthru
      _
    // Predicated region
    $region14: #{tpu_custom_call.1} parent=1 // pred_check
      _
    $region15: #{tpu_custom_call.1} parent=1 // pred_check_branch
      %38 = sbr.rel (0) target = $region17
    $region16: #{tpu_custom_call.1} parent=1 // pred_region
      %40 = vsyncadd [#allocation6], 0
      %s41 = sshll.u32 %s3, 4
      %s42 = int_to_ptr.hbm [resolvable:$true] %s41
      %s43 = sshll.u32 [#allocation5], 4
      %s44 = int_to_ptr.vmem [resolvable:$true] %s43
      %49 = dma.hbm_to_vmem [thread:$0]  %s42, 1024, %s44, [#allocation6], 128, 128, 8
    $region17: #{tpu_custom_call.1} parent=1 // pred_fallthru
      _
    // Predicated region
    $region18: #{tpu_custom_call.1} parent=1 // pred_check
      _
    $region19: #{tpu_custom_call.1} parent=1 // pred_check_branch
      %51 = sbr.rel (0) target = $region21
    $region20: #{tpu_custom_call.1} parent=1 // pred_region
      %53 = vsyncadd [#allocation6], 0
      %s54 = sshll.u32 %s4, 4
      %s55 = int_to_ptr.hbm [resolvable:$true] %s54
      %s56 = sshll.u32 [#allocation7], 4
      %s57 = int_to_ptr.vmem [resolvable:$true] %s56
      %62 = dma.hbm_to_vmem [thread:$0]  %s55, 8192, %s57, [#allocation6], 256, 256, 16
    $region21: #{tpu_custom_call.1} parent=1 // pred_fallthru
      _
    // Predicated region
    $region22: #{tpu_custom_call.1} parent=1 // pred_check
      _
    $region23: #{tpu_custom_call.1} parent=1 // pred_check_branch
      %64 = sbr.rel (0) target = $region25
    $region24: #{tpu_custom_call.1} parent=1 // pred_region
      %66 = vsyncadd [#allocation9], 0
      %s68 = sshll.u32 %s5, 4
      %s69 = int_to_ptr.hbm [resolvable:$true] %s68
      %s70 = sshll.u32 [#allocation8], 4
      %s71 = int_to_ptr.vmem [resolvable:$true] %s70
      %73 = dma.hbm_to_vmem [thread:$0]  %s69, 64, %s71, [#allocation9]
    $region25: #{tpu_custom_call.1} parent=1 // pred_fallthru
      _
    // Predicated region
    $region26: #{tpu_custom_call.1} parent=1 // pred_check
      _
    $region27: #{tpu_custom_call.1} parent=1 // pred_check_branch
      %75 = sbr.rel (0) target = $region29
    $region28: #{tpu_custom_call.1} parent=1 // pred_region
      %77 = vsyncadd [#allocation9], 0
      %s78 = sshll.u32 %s6, 4
      %s79 = int_to_ptr.hbm [resolvable:$true] %s78
      %s80 = sshll.u32 [#allocation10], 4
      %s81 = int_to_ptr.vmem [resolvable:$true] %s80
      %86 = dma.hbm_to_vmem [thread:$0]  %s79, 32768, %s81, [#allocation9], 512, 512, 32
    $region29: #{tpu_custom_call.1} parent=1 // pred_fallthru
      _
    // Predicated region
    $region30: #{tpu_custom_call.1} parent=1 // pred_check
      _
    $region31: #{tpu_custom_call.1} parent=1 // pred_check_branch
      %88 = sbr.rel (0) target = $region33
    $region32: #{tpu_custom_call.1} parent=1 // pred_region
      _
    $region33: #{tpu_custom_call.1} parent=1 // pred_fallthru
      _
    // Predicated region
    $region34: #{tpu_custom_call.1} parent=1 // pred_check
      _
    $region35: #{tpu_custom_call.1} parent=1 // pred_check_branch
      %90 = sbr.rel (0) target = $region37
    $region36: #{tpu_custom_call.1} parent=1 // pred_region
      %92 = vsyncadd [#allocation12], 0
      %s93 = sshll.u32 %s8, 4
      %s94 = int_to_ptr.hbm [resolvable:$true] %s93
      %s95 = sshll.u32 [#allocation11], 4
      %s96 = int_to_ptr.vmem [resolvable:$true] %s95
      %101 = dma.hbm_to_vmem [thread:$0]  %s94, 16384, %s96, [#allocation12], 128, 128, 8
    $region37: #{tpu_custom_call.1} parent=1 // pred_fallthru
      _
    // Predicated region
    $region38: #{tpu_custom_call.1} parent=1 // pred_check
      _
    $region39: #{tpu_custom_call.1} parent=1 // pred_check_branch
      %103 = sbr.rel (0) target = $region41
    $region40: #{tpu_custom_call.1} parent=1 // pred_region
      _
    $region41: #{tpu_custom_call.1} parent=1 // pred_fallthru
      _
    // Predicated region
    $region42: #{tpu_custom_call.1} parent=1 // pred_check
      _
    $region43: #{tpu_custom_call.1} parent=1 // pred_check_branch
      %105 = sbr.rel (0) target = $region45
    $region44: #{tpu_custom_call.1} parent=1 // pred_region
      %107 = dma.done [#allocation3], 256
    $region45: #{tpu_custom_call.1} parent=1 // pred_fallthru
      _
    // Predicated region
    $region46: #{tpu_custom_call.1} parent=1 // pred_check
      _
    $region47: #{tpu_custom_call.1} parent=1 // pred_check_branch
      %109 = sbr.rel (0) target = $region49
    $region48: #{tpu_custom_call.1} parent=1 // pred_region
      %111 = dma.done [#allocation6], 1024
    $region49: #{tpu_custom_call.1} parent=1 // pred_fallthru
      _
    // Predicated region
    $region50: #{tpu_custom_call.1} parent=1 // pred_check
      _
    $region51: #{tpu_custom_call.1} parent=1 // pred_check_branch
      %113 = sbr.rel (0) target = $region53
    $region52: #{tpu_custom_call.1} parent=1 // pred_region
      %115 = dma.done [#allocation6], 8192
    $region53: #{tpu_custom_call.1} parent=1 // pred_fallthru
      _
    // Predicated region
    $region54: #{tpu_custom_call.1} parent=1 // pred_check
      _
    $region55: #{tpu_custom_call.1} parent=1 // pred_check_branch
      %117 = sbr.rel (0) target = $region57
    $region56: #{tpu_custom_call.1} parent=1 // pred_region
      %119 = dma.done [#allocation9], 64
    $region57: #{tpu_custom_call.1} parent=1 // pred_fallthru
      _
    // Predicated region
    $region58: #{tpu_custom_call.1} parent=1 // pred_check
      _
    $region59: #{tpu_custom_call.1} parent=1 // pred_check_branch
      %121 = sbr.rel (0) target = $region61
    $region60: #{tpu_custom_call.1} parent=1 // pred_region
      %123 = dma.done [#allocation9], 32768
    $region61: #{tpu_custom_call.1} parent=1 // pred_fallthru
      _
    // Predicated region
    $region62: #{tpu_custom_call.1} parent=1 // pred_check
      _
    $region63: #{tpu_custom_call.1} parent=1 // pred_check_branch
      %125 = sbr.rel (0) target = $region65
    $region64: #{tpu_custom_call.1} parent=1 // pred_region
      %127 = dma.done [#allocation12], 16384
    $region65: #{tpu_custom_call.1} parent=1 // pred_fallthru
      _
    %v129 = vld [vmem:[%s1] sm:$0xff]
    %v130 = vlaneseq
    %v131 = vand.u32 %v130, 127
    %132 = vset.pattern.permute.xlu0 0
    %133 = vperm.xlu0 %132, %v129
    %v134 = vpop.permute.xlu0 %133
    %vm135 = vcmp.eq.s32.totalorder %v134, %v131
    %v136 = vsel %vm135, 1.0, 0.0
    %v137 = vpack.c.bf16 %v136, %v136
    %v138 = vld [vmem:[#allocation2] sm:$0xff]
    %v139 = vld [vmem:[#allocation2 + $0x8] sm:$0xff]
    %v142 = vunpack.c.l.b16 %v138
    %v143 = vunpack.c.h.b16 %v138
    %v144 = vunpack.c.l.b16 %v139
    %v145 = vunpack.c.h.b16 %v139
    %v146 = vpack.c.b16 %v144, %v142
    %v147 = vpack.c.b16 %v145, %v143
    %vm150 = vcmask 130048
    %v152 = vsel %vm150, %v137, 0
    %154 = vmatpush.bf16.msra.mxu0 0
    %155 = vmatpush.bf16.msra.mxu0 0
    %156 = vmatpush.bf16.msra.mxu0 0
    %157 = vmatpush.bf16.msra.mxu0 0
    %158 = vmatpush.bf16.msra.mxu0 0
    %159 = vmatpush.bf16.msra.mxu0 0
    %160 = vmatpush.bf16.msra.mxu0 0
    %161 = vmatpush.bf16.msra.mxu0 %v146
    %162 = vmatmul.bf16.gmra.mxu0 %v152
    %v163 = vpop.f32.mrf.mxu0
    %v164 = vadd.f32 0.0, %v163
    %v165 = vpop.f32.mrf.mxu0
    %166 = vdwg.mxu0
    %167 = vmatpush.bf16.msra.mxu0 0
    %168 = vmatpush.bf16.msra.mxu0 0
    %169 = vmatpush.bf16.msra.mxu0 0
    %170 = vmatpush.bf16.msra.mxu0 0
    %171 = vmatpush.bf16.msra.mxu0 0
    %172 = vmatpush.bf16.msra.mxu0 0
    %173 = vmatpush.bf16.msra.mxu0 0
    %174 = vmatpush.bf16.msra.mxu0 %v147
    %175 = vmatmul.bf16.gmra.mxu0 %v152
    %v176 = vpop.f32.mrf.mxu0
    %v177 = vadd.f32 0.0, %v176
    %v178 = vpop.f32.mrf.mxu0
    %179 = vdwg.mxu0
    %v180 = vld [vmem:[%s0] sm:$0xf]
    %v181 = vld [vmem:[#allocation5] sm:$0xff]
    %v182 = vld [vmem:[#allocation5 + $0x8] sm:$0xff]
    %v183 = vld [vmem:[#allocation5 + $0x10] sm:$0xff]
    %v184 = vld [vmem:[#allocation5 + $0x18] sm:$0xff]
    %v185 = vld [vmem:[#allocation5 + $0x20] sm:$0xff]
    %v186 = vld [vmem:[#allocation5 + $0x28] sm:$0xff]
    %v187 = vld [vmem:[#allocation5 + $0x30] sm:$0xff]
    %v188 = vld [vmem:[#allocation5 + $0x38] sm:$0xff]
    %v197 = vunpack.c.l.b16 %v181
    %v198 = vunpack.c.h.b16 %v181
    %v199 = vunpack.c.l.b16 %v182
    %v200 = vunpack.c.h.b16 %v182
    %v201 = vunpack.c.l.b16 %v183
    %v202 = vunpack.c.h.b16 %v183
    %v203 = vunpack.c.l.b16 %v184
    %v204 = vunpack.c.h.b16 %v184
    %v205 = vunpack.c.l.b16 %v185
    %v206 = vunpack.c.h.b16 %v185
    %v207 = vunpack.c.l.b16 %v186
    %v208 = vunpack.c.h.b16 %v186
    %v209 = vunpack.c.l.b16 %v187
    %v210 = vunpack.c.h.b16 %v187
    %v211 = vunpack.c.l.b16 %v188
    %v212 = vunpack.c.h.b16 %v188
    %v213 = vpack.c.b16 %v199, %v197
    %v214 = vpack.c.b16 %v200, %v198
    %v215 = vpack.c.b16 %v203, %v201
    %v216 = vpack.c.b16 %v204, %v202
    %v217 = vpack.c.b16 %v207, %v205
    %v218 = vpack.c.b16 %v208, %v206
    %v219 = vpack.c.b16 %v211, %v209
    %v220 = vpack.c.b16 %v212, %v210
    %vm229 = vcmask 523264
    %v231 = vsel %vm229, %v180, 0
    %233 = vmatpush.bf16.msra.mxu0 0
    %234 = vmatpush.bf16.msra.mxu0 0
    %235 = vmatpush.bf16.msra.mxu0 0
    %236 = vmatpush.bf16.msra.mxu0 0
    %237 = vmatpush.bf16.msra.mxu0 %v219
    %238 = vmatpush.bf16.msra.mxu0 %v217
    %239 = vmatpush.bf16.msra.mxu0 %v215
    %240 = vmatpush.bf16.msra.mxu0 %v213
    %241 = vmatmul.bf16.gmra.mxu0 %v231
    %v242 = vpop.f32.mrf.mxu0
    %v243 = vadd.f32 %v164, %v242
    %v244 = vpop.f32.mrf.mxu0
    %245 = vdwg.mxu0
    %246 = vmatpush.bf16.msra.mxu0 0
    %247 = vmatpush.bf16.msra.mxu0 0
    %248 = vmatpush.bf16.msra.mxu0 0
    %249 = vmatpush.bf16.msra.mxu0 0
    %250 = vmatpush.bf16.msra.mxu0 %v220
    %251 = vmatpush.bf16.msra.mxu0 %v218
    %252 = vmatpush.bf16.msra.mxu0 %v216
    %253 = vmatpush.bf16.msra.mxu0 %v214
    %254 = vmatmul.bf16.gmra.mxu0 %v231
    %v255 = vpop.f32.mrf.mxu0
    %v256 = vadd.f32 %v177, %v255
    %v257 = vpop.f32.mrf.mxu0
    %258 = vdwg.mxu0
    %v259 = vmax.f32 %v243, 0.0
    %v260 = vmax.f32 %v256, 0.0
    %v261 = vpack.c.bf16 %v259, %v259
    %v262 = vpack.c.bf16 %v260, %v260
    %v263 = vld [vmem:[#allocation7] sm:$0xff]
    %v264 = vld [vmem:[#allocation7 + $0x8] sm:$0xff]
    %v265 = vld [vmem:[#allocation7 + $0x10] sm:$0xff]
    %v266 = vld [vmem:[#allocation7 + $0x18] sm:$0xff]
    %v267 = vld [vmem:[#allocation7 + $0x20] sm:$0xff]
    %v268 = vld [vmem:[#allocation7 + $0x28] sm:$0xff]
    %v269 = vld [vmem:[#allocation7 + $0x30] sm:$0xff]
    %v270 = vld [vmem:[#allocation7 + $0x38] sm:$0xff]
    %v271 = vld [vmem:[#allocation7 + $0x40] sm:$0xff]
    %v272 = vld [vmem:[#allocation7 + $0x48] sm:$0xff]
    %v273 = vld [vmem:[#allocation7 + $0x50] sm:$0xff]
    %v274 = vld [vmem:[#allocation7 + $0x58] sm:$0xff]
    %v275 = vld [vmem:[#allocation7 + $0x60] sm:$0xff]
    %v276 = vld [vmem:[#allocation7 + $0x68] sm:$0xff]
    %v277 = vld [vmem:[#allocation7 + $0x70] sm:$0xff]
    %v278 = vld [vmem:[#allocation7 + $0x78] sm:$0xff]
    %v279 = vld [vmem:[#allocation7 + $0x80] sm:$0xff]
    %v280 = vld [vmem:[#allocation7 + $0x88] sm:$0xff]
    %v281 = vld [vmem:[#allocation7 + $0x90] sm:$0xff]
    %v282 = vld [vmem:[#allocation7 + $0x98] sm:$0xff]
    %v283 = vld [vmem:[#allocation7 + $0xa0] sm:$0xff]
    %v284 = vld [vmem:[#allocation7 + $0xa8] sm:$0xff]
    %v285 = vld [vmem:[#allocation7 + $0xb0] sm:$0xff]
    %v286 = vld [vmem:[#allocation7 + $0xb8] sm:$0xff]
    %v287 = vld [vmem:[#allocation7 + $0xc0] sm:$0xff]
    %v288 = vld [vmem:[#allocation7 + $0xc8] sm:$0xff]
    %v289 = vld [vmem:[#allocation7 + $0xd0] sm:$0xff]
    %v290 = vld [vmem:[#allocation7 + $0xd8] sm:$0xff]
    %v291 = vld [vmem:[#allocation7 + $0xe0] sm:$0xff]
    %v292 = vld [vmem:[#allocation7 + $0xe8] sm:$0xff]
    %v293 = vld [vmem:[#allocation7 + $0xf0] sm:$0xff]
    %v294 = vld [vmem:[#allocation7 + $0xf8] sm:$0xff]
    %v295 = vld [vmem:[#allocation7 + $0x100] sm:$0xff]
    %v296 = vld [vmem:[#allocation7 + $0x108] sm:$0xff]
    %v297 = vld [vmem:[#allocation7 + $0x110] sm:$0xff]
    %v298 = vld [vmem:[#allocation7 + $0x118] sm:$0xff]
    %v299 = vld [vmem:[#allocation7 + $0x120] sm:$0xff]
    %v300 = vld [vmem:[#allocation7 + $0x128] sm:$0xff]
    %v301 = vld [vmem:[#allocation7 + $0x130] sm:$0xff]
    %v302 = vld [vmem:[#allocation7 + $0x138] sm:$0xff]
    %v303 = vld [vmem:[#allocation7 + $0x140] sm:$0xff]
    %v304 = vld [vmem:[#allocation7 + $0x148] sm:$0xff]
    %v305 = vld [vmem:[#allocation7 + $0x150] sm:$0xff]
    %v306 = vld [vmem:[#allocation7 + $0x158] sm:$0xff]
    %v307 = vld [vmem:[#allocation7 + $0x160] sm:$0xff]
    %v308 = vld [vmem:[#allocation7 + $0x168] sm:$0xff]
    %v309 = vld [vmem:[#allocation7 + $0x170] sm:$0xff]
    %v310 = vld [vmem:[#allocation7 + $0x178] sm:$0xff]
    %v311 = vld [vmem:[#allocation7 + $0x180] sm:$0xff]
    %v312 = vld [vmem:[#allocation7 + $0x188] sm:$0xff]
    %v313 = vld [vmem:[#allocation7 + $0x190] sm:$0xff]
    %v314 = vld [vmem:[#allocation7 + $0x198] sm:$0xff]
    %v315 = vld [vmem:[#allocation7 + $0x1a0] sm:$0xff]
    %v316 = vld [vmem:[#allocation7 + $0x1a8] sm:$0xff]
    %v317 = vld [vmem:[#allocation7 + $0x1b0] sm:$0xff]
    %v318 = vld [vmem:[#allocation7 + $0x1b8] sm:$0xff]
    %v319 = vld [vmem:[#allocation7 + $0x1c0] sm:$0xff]
    %v320 = vld [vmem:[#allocation7 + $0x1c8] sm:$0xff]
    %v321 = vld [vmem:[#allocation7 + $0x1d0] sm:$0xff]
    %v322 = vld [vmem:[#allocation7 + $0x1d8] sm:$0xff]
    %v323 = vld [vmem:[#allocation7 + $0x1e0] sm:$0xff]
    %v324 = vld [vmem:[#allocation7 + $0x1e8] sm:$0xff]
    %v325 = vld [vmem:[#allocation7 + $0x1f0] sm:$0xff]
    %v326 = vld [vmem:[#allocation7 + $0x1f8] sm:$0xff]
    %v327 = vld [vmem:[#allocation8] sm:$0xf]
    %v329 = vperm.slane %v327, 0
    %v330 = vperm.slane %v327, 1
    %v331 = vperm.slane %v327, 2
    %v332 = vperm.slane %v327, 3
    %v401 = vunpack.c.l.b16 %v263
    %v402 = vunpack.c.h.b16 %v263
    %v403 = vunpack.c.l.b16 %v264
    %v404 = vunpack.c.h.b16 %v264
    %v405 = vunpack.c.l.b16 %v265
    %v406 = vunpack.c.h.b16 %v265
    %v407 = vunpack.c.l.b16 %v266
    %v408 = vunpack.c.h.b16 %v266
    %v409 = vunpack.c.l.b16 %v267
    %v410 = vunpack.c.h.b16 %v267
    %v411 = vunpack.c.l.b16 %v268
    %v412 = vunpack.c.h.b16 %v268
    %v413 = vunpack.c.l.b16 %v269
    %v414 = vunpack.c.h.b16 %v269
    %v415 = vunpack.c.l.b16 %v270
    %v416 = vunpack.c.h.b16 %v270
    %v417 = vunpack.c.l.b16 %v271
    %v418 = vunpack.c.h.b16 %v271
    %v419 = vunpack.c.l.b16 %v272
    %v420 = vunpack.c.h.b16 %v272
    %v421 = vunpack.c.l.b16 %v273
    %v422 = vunpack.c.h.b16 %v273
    %v423 = vunpack.c.l.b16 %v274
    %v424 = vunpack.c.h.b16 %v274
    %v425 = vunpack.c.l.b16 %v275
    %v426 = vunpack.c.h.b16 %v275
    %v427 = vunpack.c.l.b16 %v276
    %v428 = vunpack.c.h.b16 %v276
    %v429 = vunpack.c.l.b16 %v277
    %v430 = vunpack.c.h.b16 %v277
    %v431 = vunpack.c.l.b16 %v278
    %v432 = vunpack.c.h.b16 %v278
    %v433 = vunpack.c.l.b16 %v279
    %v434 = vunpack.c.h.b16 %v279
    %v435 = vunpack.c.l.b16 %v280
    %v436 = vunpack.c.h.b16 %v280
    %v437 = vunpack.c.l.b16 %v281
    %v438 = vunpack.c.h.b16 %v281
    %v439 = vunpack.c.l.b16 %v282
    %v440 = vunpack.c.h.b16 %v282
    %v441 = vunpack.c.l.b16 %v283
    %v442 = vunpack.c.h.b16 %v283
    %v443 = vunpack.c.l.b16 %v284
    %v444 = vunpack.c.h.b16 %v284
    %v445 = vunpack.c.l.b16 %v285
    %v446 = vunpack.c.h.b16 %v285
    %v447 = vunpack.c.l.b16 %v286
    %v448 = vunpack.c.h.b16 %v286
    %v449 = vunpack.c.l.b16 %v287
    %v450 = vunpack.c.h.b16 %v287
    %v451 = vunpack.c.l.b16 %v288
    %v452 = vunpack.c.h.b16 %v288
    %v453 = vunpack.c.l.b16 %v289
    %v454 = vunpack.c.h.b16 %v289
    %v455 = vunpack.c.l.b16 %v290
    %v456 = vunpack.c.h.b16 %v290
    %v457 = vunpack.c.l.b16 %v291
    %v458 = vunpack.c.h.b16 %v291
    %v459 = vunpack.c.l.b16 %v292
    %v460 = vunpack.c.h.b16 %v292
    %v461 = vunpack.c.l.b16 %v293
    %v462 = vunpack.c.h.b16 %v293
    %v463 = vunpack.c.l.b16 %v294
    %v464 = vunpack.c.h.b16 %v294
    %v465 = vunpack.c.l.b16 %v295
    %v466 = vunpack.c.h.b16 %v295
    %v467 = vunpack.c.l.b16 %v296
    %v468 = vunpack.c.h.b16 %v296
    %v469 = vunpack.c.l.b16 %v297
    %v470 = vunpack.c.h.b16 %v297
    %v471 = vunpack.c.l.b16 %v298
    %v472 = vunpack.c.h.b16 %v298
    %v473 = vunpack.c.l.b16 %v299
    %v474 = vunpack.c.h.b16 %v299
    %v475 = vunpack.c.l.b16 %v300
    %v476 = vunpack.c.h.b16 %v300
    %v477 = vunpack.c.l.b16 %v301
    %v478 = vunpack.c.h.b16 %v301
    %v479 = vunpack.c.l.b16 %v302
    %v480 = vunpack.c.h.b16 %v302
    %v481 = vunpack.c.l.b16 %v303
    %v482 = vunpack.c.h.b16 %v303
    %v483 = vunpack.c.l.b16 %v304
    %v484 = vunpack.c.h.b16 %v304
    %v485 = vunpack.c.l.b16 %v305
    %v486 = vunpack.c.h.b16 %v305
    %v487 = vunpack.c.l.b16 %v306
    %v488 = vunpack.c.h.b16 %v306
    %v489 = vunpack.c.l.b16 %v307
    %v490 = vunpack.c.h.b16 %v307
    %v491 = vunpack.c.l.b16 %v308
    %v492 = vunpack.c.h.b16 %v308
    %v493 = vunpack.c.l.b16 %v309
    %v494 = vunpack.c.h.b16 %v309
    %v495 = vunpack.c.l.b16 %v310
    %v496 = vunpack.c.h.b16 %v310
    %v497 = vunpack.c.l.b16 %v311
    %v498 = vunpack.c.h.b16 %v311
    %v499 = vunpack.c.l.b16 %v312
    %v500 = vunpack.c.h.b16 %v312
    %v501 = vunpack.c.l.b16 %v313
    %v502 = vunpack.c.h.b16 %v313
    %v503 = vunpack.c.l.b16 %v314
    %v504 = vunpack.c.h.b16 %v314
    %v505 = vunpack.c.l.b16 %v315
    %v506 = vunpack.c.h.b16 %v315
    %v507 = vunpack.c.l.b16 %v316
    %v508 = vunpack.c.h.b16 %v316
    %v509 = vunpack.c.l.b16 %v317
    %v510 = vunpack.c.h.b16 %v317
    %v511 = vunpack.c.l.b16 %v318
    %v512 = vunpack.c.h.b16 %v318
    %v513 = vunpack.c.l.b16 %v319
    %v514 = vunpack.c.h.b16 %v319
    %v515 = vunpack.c.l.b16 %v320
    %v516 = vunpack.c.h.b16 %v320
    %v517 = vunpack.c.l.b16 %v321
    %v518 = vunpack.c.h.b16 %v321
    %v519 = vunpack.c.l.b16 %v322
    %v520 = vunpack.c.h.b16 %v322
    %v521 = vunpack.c.l.b16 %v323
    %v522 = vunpack.c.h.b16 %v323
    %v523 = vunpack.c.l.b16 %v324
    %v524 = vunpack.c.h.b16 %v324
    %v525 = vunpack.c.l.b16 %v325
    %v526 = vunpack.c.h.b16 %v325
    %v527 = vunpack.c.l.b16 %v326
    %v528 = vunpack.c.h.b16 %v326
    %v529 = vpack.c.b16 %v405, %v401
    %v530 = vpack.c.b16 %v406, %v402
    %v531 = vpack.c.b16 %v407, %v403
    %v532 = vpack.c.b16 %v408, %v404
    %v533 = vpack.c.b16 %v413, %v409
    %v534 = vpack.c.b16 %v414, %v410
    %v535 = vpack.c.b16 %v415, %v411
    %v536 = vpack.c.b16 %v416, %v412
    %v537 = vpack.c.b16 %v421, %v417
    %v538 = vpack.c.b16 %v422, %v418
    %v539 = vpack.c.b16 %v423, %v419
    %v540 = vpack.c.b16 %v424, %v420
    %v541 = vpack.c.b16 %v429, %v425
    %v542 = vpack.c.b16 %v430, %v426
    %v543 = vpack.c.b16 %v431, %v427
    %v544 = vpack.c.b16 %v432, %v428
    %v545 = vpack.c.b16 %v437, %v433
    %v546 = vpack.c.b16 %v438, %v434
    %v547 = vpack.c.b16 %v439, %v435
    %v548 = vpack.c.b16 %v440, %v436
    %v549 = vpack.c.b16 %v445, %v441
    %v550 = vpack.c.b16 %v446, %v442
    %v551 = vpack.c.b16 %v447, %v443
    %v552 = vpack.c.b16 %v448, %v444
    %v553 = vpack.c.b16 %v453, %v449
    %v554 = vpack.c.b16 %v454, %v450
    %v555 = vpack.c.b16 %v455, %v451
    %v556 = vpack.c.b16 %v456, %v452
    %v557 = vpack.c.b16 %v461, %v457
    %v558 = vpack.c.b16 %v462, %v458
    %v559 = vpack.c.b16 %v463, %v459
    %v560 = vpack.c.b16 %v464, %v460
    %v561 = vpack.c.b16 %v469, %v465
    %v562 = vpack.c.b16 %v470, %v466
    %v563 = vpack.c.b16 %v471, %v467
    %v564 = vpack.c.b16 %v472, %v468
    %v565 = vpack.c.b16 %v477, %v473
    %v566 = vpack.c.b16 %v478, %v474
    %v567 = vpack.c.b16 %v479, %v475
    %v568 = vpack.c.b16 %v480, %v476
    %v569 = vpack.c.b16 %v485, %v481
    %v570 = vpack.c.b16 %v486, %v482
    %v571 = vpack.c.b16 %v487, %v483
    %v572 = vpack.c.b16 %v488, %v484
    %v573 = vpack.c.b16 %v493, %v489
    %v574 = vpack.c.b16 %v494, %v490
    %v575 = vpack.c.b16 %v495, %v491
    %v576 = vpack.c.b16 %v496, %v492
    %v577 = vpack.c.b16 %v501, %v497
    %v578 = vpack.c.b16 %v502, %v498
    %v579 = vpack.c.b16 %v503, %v499
    %v580 = vpack.c.b16 %v504, %v500
    %v581 = vpack.c.b16 %v509, %v505
    %v582 = vpack.c.b16 %v510, %v506
    %v583 = vpack.c.b16 %v511, %v507
    %v584 = vpack.c.b16 %v512, %v508
    %v585 = vpack.c.b16 %v517, %v513
    %v586 = vpack.c.b16 %v518, %v514
    %v587 = vpack.c.b16 %v519, %v515
    %v588 = vpack.c.b16 %v520, %v516
    %v589 = vpack.c.b16 %v525, %v521
    %v590 = vpack.c.b16 %v526, %v522
    %v591 = vpack.c.b16 %v527, %v523
    %v592 = vpack.c.b16 %v528, %v524
    %657 = vmatpush.bf16.msra.mxu0 %v557
    %658 = vmatpush.bf16.msra.mxu0 %v553
    %659 = vmatpush.bf16.msra.mxu0 %v549
    %660 = vmatpush.bf16.msra.mxu0 %v545
    %661 = vmatpush.bf16.msra.mxu0 %v541
    %662 = vmatpush.bf16.msra.mxu0 %v537
    %663 = vmatpush.bf16.msra.mxu0 %v533
    %664 = vmatpush.bf16.msra.mxu0 %v529
    %665 = vmatmul.bf16.gmra.mxu0 %v261
    %v666 = vpop.f32.mrf.mxu0
    %v667 = vadd.f32 %v329, %v666
    %v668 = vpop.f32.mrf.mxu0
    %669 = vdwg.mxu0
    %670 = vmatpush.bf16.msra.mxu0 %v589
    %671 = vmatpush.bf16.msra.mxu0 %v585
    %672 = vmatpush.bf16.msra.mxu0 %v581
    %673 = vmatpush.bf16.msra.mxu0 %v577
    %674 = vmatpush.bf16.msra.mxu0 %v573
    %675 = vmatpush.bf16.msra.mxu0 %v569
    %676 = vmatpush.bf16.msra.mxu0 %v565
    %677 = vmatpush.bf16.msra.mxu0 %v561
    %678 = vmatmul.bf16.gmra.mxu0 %v262
    %v679 = vpop.f32.mrf.mxu0
    %v680 = vadd.f32 %v667, %v679
    %v681 = vpop.f32.mrf.mxu0
    %682 = vdwg.mxu0
    %683 = vmatpush.bf16.msra.mxu0 %v558
    %684 = vmatpush.bf16.msra.mxu0 %v554
    %685 = vmatpush.bf16.msra.mxu0 %v550
    %686 = vmatpush.bf16.msra.mxu0 %v546
    %687 = vmatpush.bf16.msra.mxu0 %v542
    %688 = vmatpush.bf16.msra.mxu0 %v538
    %689 = vmatpush.bf16.msra.mxu0 %v534
    %690 = vmatpush.bf16.msra.mxu0 %v530
    %691 = vmatmul.bf16.gmra.mxu0 %v261
    %v692 = vpop.f32.mrf.mxu0
    %v693 = vadd.f32 %v330, %v692
    %v694 = vpop.f32.mrf.mxu0
    %695 = vdwg.mxu0
    %696 = vmatpush.bf16.msra.mxu0 %v590
    %697 = vmatpush.bf16.msra.mxu0 %v586
    %698 = vmatpush.bf16.msra.mxu0 %v582
    %699 = vmatpush.bf16.msra.mxu0 %v578
    %700 = vmatpush.bf16.msra.mxu0 %v574
    %701 = vmatpush.bf16.msra.mxu0 %v570
    %702 = vmatpush.bf16.msra.mxu0 %v566
    %703 = vmatpush.bf16.msra.mxu0 %v562
    %704 = vmatmul.bf16.gmra.mxu0 %v262
    %v705 = vpop.f32.mrf.mxu0
    %v706 = vadd.f32 %v693, %v705
    %v707 = vpop.f32.mrf.mxu0
    %708 = vdwg.mxu0
    %709 = vmatpush.bf16.msra.mxu0 %v559
    %710 = vmatpush.bf16.msra.mxu0 %v555
    %711 = vmatpush.bf16.msra.mxu0 %v551
    %712 = vmatpush.bf16.msra.mxu0 %v547
    %713 = vmatpush.bf16.msra.mxu0 %v543
    %714 = vmatpush.bf16.msra.mxu0 %v539
    %715 = vmatpush.bf16.msra.mxu0 %v535
    %716 = vmatpush.bf16.msra.mxu0 %v531
    %717 = vmatmul.bf16.gmra.mxu0 %v261
    %v718 = vpop.f32.mrf.mxu0
    %v719 = vadd.f32 %v331, %v718
    %v720 = vpop.f32.mrf.mxu0
    %721 = vdwg.mxu0
    %722 = vmatpush.bf16.msra.mxu0 %v591
    %723 = vmatpush.bf16.msra.mxu0 %v587
    %724 = vmatpush.bf16.msra.mxu0 %v583
    %725 = vmatpush.bf16.msra.mxu0 %v579
    %726 = vmatpush.bf16.msra.mxu0 %v575
    %727 = vmatpush.bf16.msra.mxu0 %v571
    %728 = vmatpush.bf16.msra.mxu0 %v567
    %729 = vmatpush.bf16.msra.mxu0 %v563
    %730 = vmatmul.bf16.gmra.mxu0 %v262
    %v731 = vpop.f32.mrf.mxu0
    %v732 = vadd.f32 %v719, %v731
    %v733 = vpop.f32.mrf.mxu0
    %734 = vdwg.mxu0
    %735 = vmatpush.bf16.msra.mxu0 %v560
    %736 = vmatpush.bf16.msra.mxu0 %v556
    %737 = vmatpush.bf16.msra.mxu0 %v552
    %738 = vmatpush.bf16.msra.mxu0 %v548
    %739 = vmatpush.bf16.msra.mxu0 %v544
    %740 = vmatpush.bf16.msra.mxu0 %v540
    %741 = vmatpush.bf16.msra.mxu0 %v536
    %742 = vmatpush.bf16.msra.mxu0 %v532
    %743 = vmatmul.bf16.gmra.mxu0 %v261
    %v744 = vpop.f32.mrf.mxu0
    %v745 = vadd.f32 %v332, %v744
    %v746 = vpop.f32.mrf.mxu0
    %747 = vdwg.mxu0
    %748 = vmatpush.bf16.msra.mxu0 %v592
    %749 = vmatpush.bf16.msra.mxu0 %v588
    %750 = vmatpush.bf16.msra.mxu0 %v584
    %751 = vmatpush.bf16.msra.mxu0 %v580
    %752 = vmatpush.bf16.msra.mxu0 %v576
    %753 = vmatpush.bf16.msra.mxu0 %v572
    %754 = vmatpush.bf16.msra.mxu0 %v568
    %755 = vmatpush.bf16.msra.mxu0 %v564
    %756 = vmatmul.bf16.gmra.mxu0 %v262
    %v757 = vpop.f32.mrf.mxu0
    %v758 = vadd.f32 %v745, %v757
    %v759 = vpop.f32.mrf.mxu0
    %760 = vdwg.mxu0
    %v761 = vmax.f32 %v680, 0.0
    %v762 = vmax.f32 %v706, 0.0
    %v763 = vmax.f32 %v732, 0.0
    %v764 = vmax.f32 %v758, 0.0
    %v765 = vpack.c.bf16 %v761, %v761
    %v766 = vpack.c.bf16 %v762, %v762
    %v767 = vpack.c.bf16 %v763, %v763
    %v768 = vpack.c.bf16 %v764, %v764
    %v769 = vld [vmem:[#allocation10] sm:$0xff]
    %v770 = vld [vmem:[#allocation10 + $0x8] sm:$0xff]
    %v771 = vld [vmem:[#allocation10 + $0x10] sm:$0xff]
    %v772 = vld [vmem:[#allocation10 + $0x18] sm:$0xff]
    %v773 = vld [vmem:[#allocation10 + $0x20] sm:$0xff]
    %v774 = vld [vmem:[#allocation10 + $0x28] sm:$0xff]
    %v775 = vld [vmem:[#allocation10 + $0x30] sm:$0xff]
    %v776 = vld [vmem:[#allocation10 + $0x38] sm:$0xff]
    %v777 = vld [vmem:[#allocation10 + $0x40] sm:$0xff]
    %v778 = vld [vmem:[#allocation10 + $0x48] sm:$0xff]
    %v779 = vld [vmem:[#allocation10 + $0x50] sm:$0xff]
    %v780 = vld [vmem:[#allocation10 + $0x58] sm:$0xff]
    %v781 = vld [vmem:[#allocation10 + $0x60] sm:$0xff]
    %v782 = vld [vmem:[#allocation10 + $0x68] sm:$0xff]
    %v783 = vld [vmem:[#allocation10 + $0x70] sm:$0xff]
    %v784 = vld [vmem:[#allocation10 + $0x78] sm:$0xff]
    %v785 = vld [vmem:[#allocation10 + $0x80] sm:$0xff]
    %v786 = vld [vmem:[#allocation10 + $0x88] sm:$0xff]
    %v787 = vld [vmem:[#allocation10 + $0x90] sm:$0xff]
    %v788 = vld [vmem:[#allocation10 + $0x98] sm:$0xff]
    %v789 = vld [vmem:[#allocation10 + $0xa0] sm:$0xff]
    %v790 = vld [vmem:[#allocation10 + $0xa8] sm:$0xff]
    %v791 = vld [vmem:[#allocation10 + $0xb0] sm:$0xff]
    %v792 = vld [vmem:[#allocation10 + $0xb8] sm:$0xff]
    %v793 = vld [vmem:[#allocation10 + $0xc0] sm:$0xff]
    %v794 = vld [vmem:[#allocation10 + $0xc8] sm:$0xff]
    %v795 = vld [vmem:[#allocation10 + $0xd0] sm:$0xff]
    %v796 = vld [vmem:[#allocation10 + $0xd8] sm:$0xff]
    %v797 = vld [vmem:[#allocation10 + $0xe0] sm:$0xff]
    %v798 = vld [vmem:[#allocation10 + $0xe8] sm:$0xff]
    %v799 = vld [vmem:[#allocation10 + $0xf0] sm:$0xff]
    %v800 = vld [vmem:[#allocation10 + $0xf8] sm:$0xff]
    %v801 = vld [vmem:[#allocation10 + $0x100] sm:$0xff]
    %v802 = vld [vmem:[#allocation10 + $0x108] sm:$0xff]
    %v803 = vld [vmem:[#allocation10 + $0x110] sm:$0xff]
    %v804 = vld [vmem:[#allocation10 + $0x118] sm:$0xff]
    %v805 = vld [vmem:[#allocation10 + $0x120] sm:$0xff]
    %v806 = vld [vmem:[#allocation10 + $0x128] sm:$0xff]
    %v807 = vld [vmem:[#allocation10 + $0x130] sm:$0xff]
    %v808 = vld [vmem:[#allocation10 + $0x138] sm:$0xff]
    %v809 = vld [vmem:[#allocation10 + $0x140] sm:$0xff]
    %v810 = vld [vmem:[#allocation10 + $0x148] sm:$0xff]
    %v811 = vld [vmem:[#allocation10 + $0x150] sm:$0xff]
    %v812 = vld [vmem:[#allocation10 + $0x158] sm:$0xff]
    %v813 = vld [vmem:[#allocation10 + $0x160] sm:$0xff]
    %v814 = vld [vmem:[#allocation10 + $0x168] sm:$0xff]
    %v815 = vld [vmem:[#allocation10 + $0x170] sm:$0xff]
    %v816 = vld [vmem:[#allocation10 + $0x178] sm:$0xff]
    %v817 = vld [vmem:[#allocation10 + $0x180] sm:$0xff]
    %v818 = vld [vmem:[#allocation10 + $0x188] sm:$0xff]
    %v819 = vld [vmem:[#allocation10 + $0x190] sm:$0xff]
    %v820 = vld [vmem:[#allocation10 + $0x198] sm:$0xff]
    %v821 = vld [vmem:[#allocation10 + $0x1a0] sm:$0xff]
    %v822 = vld [vmem:[#allocation10 + $0x1a8] sm:$0xff]
    %v823 = vld [vmem:[#allocation10 + $0x1b0] sm:$0xff]
    %v824 = vld [vmem:[#allocation10 + $0x1b8] sm:$0xff]
    %v825 = vld [vmem:[#allocation10 + $0x1c0] sm:$0xff]
    %v826 = vld [vmem:[#allocation10 + $0x1c8] sm:$0xff]
    %v827 = vld [vmem:[#allocation10 + $0x1d0] sm:$0xff]
    %v828 = vld [vmem:[#allocation10 + $0x1d8] sm:$0xff]
    %v829 = vld [vmem:[#allocation10 + $0x1e0] sm:$0xff]
    %v830 = vld [vmem:[#allocation10 + $0x1e8] sm:$0xff]
    %v831 = vld [vmem:[#allocation10 + $0x1f0] sm:$0xff]
    %v832 = vld [vmem:[#allocation10 + $0x1f8] sm:$0xff]
    %v833 = vld [vmem:[#allocation10 + $0x200] sm:$0xff]
    %v834 = vld [vmem:[#allocation10 + $0x208] sm:$0xff]
    %v835 = vld [vmem:[#allocation10 + $0x210] sm:$0xff]
    %v836 = vld [vmem:[#allocation10 + $0x218] sm:$0xff]
    %v837 = vld [vmem:[#allocation10 + $0x220] sm:$0xff]
    %v838 = vld [vmem:[#allocation10 + $0x228] sm:$0xff]
    %v839 = vld [vmem:[#allocation10 + $0x230] sm:$0xff]
    %v840 = vld [vmem:[#allocation10 + $0x238] sm:$0xff]
    %v841 = vld [vmem:[#allocation10 + $0x240] sm:$0xff]
    %v842 = vld [vmem:[#allocation10 + $0x248] sm:$0xff]
    %v843 = vld [vmem:[#allocation10 + $0x250] sm:$0xff]
    %v844 = vld [vmem:[#allocation10 + $0x258] sm:$0xff]
    %v845 = vld [vmem:[#allocation10 + $0x260] sm:$0xff]
    %v846 = vld [vmem:[#allocation10 + $0x268] sm:$0xff]
    %v847 = vld [vmem:[#allocation10 + $0x270] sm:$0xff]
    %v848 = vld [vmem:[#allocation10 + $0x278] sm:$0xff]
    %v849 = vld [vmem:[#allocation10 + $0x280] sm:$0xff]
    %v850 = vld [vmem:[#allocation10 + $0x288] sm:$0xff]
    %v851 = vld [vmem:[#allocation10 + $0x290] sm:$0xff]
    %v852 = vld [vmem:[#allocation10 + $0x298] sm:$0xff]
    %v853 = vld [vmem:[#allocation10 + $0x2a0] sm:$0xff]
    %v854 = vld [vmem:[#allocation10 + $0x2a8] sm:$0xff]
    %v855 = vld [vmem:[#allocation10 + $0x2b0] sm:$0xff]
    %v856 = vld [vmem:[#allocation10 + $0x2b8] sm:$0xff]
    %v857 = vld [vmem:[#allocation10 + $0x2c0] sm:$0xff]
    %v858 = vld [vmem:[#allocation10 + $0x2c8] sm:$0xff]
    %v859 = vld [vmem:[#allocation10 + $0x2d0] sm:$0xff]
    %v860 = vld [vmem:[#allocation10 + $0x2d8] sm:$0xff]
    %v861 = vld [vmem:[#allocation10 + $0x2e0] sm:$0xff]
    %v862 = vld [vmem:[#allocation10 + $0x2e8] sm:$0xff]
    %v863 = vld [vmem:[#allocation10 + $0x2f0] sm:$0xff]
    %v864 = vld [vmem:[#allocation10 + $0x2f8] sm:$0xff]
    %v865 = vld [vmem:[#allocation10 + $0x300] sm:$0xff]
    %v866 = vld [vmem:[#allocation10 + $0x308] sm:$0xff]
    %v867 = vld [vmem:[#allocation10 + $0x310] sm:$0xff]
    %v868 = vld [vmem:[#allocation10 + $0x318] sm:$0xff]
    %v869 = vld [vmem:[#allocation10 + $0x320] sm:$0xff]
    %v870 = vld [vmem:[#allocation10 + $0x328] sm:$0xff]
    %v871 = vld [vmem:[#allocation10 + $0x330] sm:$0xff]
    %v872 = vld [vmem:[#allocation10 + $0x338] sm:$0xff]
    %v873 = vld [vmem:[#allocation10 + $0x340] sm:$0xff]
    %v874 = vld [vmem:[#allocation10 + $0x348] sm:$0xff]
    %v875 = vld [vmem:[#allocation10 + $0x350] sm:$0xff]
    %v876 = vld [vmem:[#allocation10 + $0x358] sm:$0xff]
    %v877 = vld [vmem:[#allocation10 + $0x360] sm:$0xff]
    %v878 = vld [vmem:[#allocation10 + $0x368] sm:$0xff]
    %v879 = vld [vmem:[#allocation10 + $0x370] sm:$0xff]
    %v880 = vld [vmem:[#allocation10 + $0x378] sm:$0xff]
    %v881 = vld [vmem:[#allocation10 + $0x380] sm:$0xff]
    %v882 = vld [vmem:[#allocation10 + $0x388] sm:$0xff]
    %v883 = vld [vmem:[#allocation10 + $0x390] sm:$0xff]
    %v884 = vld [vmem:[#allocation10 + $0x398] sm:$0xff]
    %v885 = vld [vmem:[#allocation10 + $0x3a0] sm:$0xff]
    %v886 = vld [vmem:[#allocation10 + $0x3a8] sm:$0xff]
    %v887 = vld [vmem:[#allocation10 + $0x3b0] sm:$0xff]
    %v888 = vld [vmem:[#allocation10 + $0x3b8] sm:$0xff]
    %v889 = vld [vmem:[#allocation10 + $0x3c0] sm:$0xff]
    %v890 = vld [vmem:[#allocation10 + $0x3c8] sm:$0xff]
    %v891 = vld [vmem:[#allocation10 + $0x3d0] sm:$0xff]
    %v892 = vld [vmem:[#allocation10 + $0x3d8] sm:$0xff]
    %v893 = vld [vmem:[#allocation10 + $0x3e0] sm:$0xff]
    %v894 = vld [vmem:[#allocation10 + $0x3e8] sm:$0xff]
    %v895 = vld [vmem:[#allocation10 + $0x3f0] sm:$0xff]
    %v896 = vld [vmem:[#allocation10 + $0x3f8] sm:$0xff]
    %v897 = vld [vmem:[#allocation10 + $0x400] sm:$0xff]
    %v898 = vld [vmem:[#allocation10 + $0x408] sm:$0xff]
    %v899 = vld [vmem:[#allocation10 + $0x410] sm:$0xff]
    %v900 = vld [vmem:[#allocation10 + $0x418] sm:$0xff]
    %v901 = vld [vmem:[#allocation10 + $0x420] sm:$0xff]
    %v902 = vld [vmem:[#allocation10 + $0x428] sm:$0xff]
    %v903 = vld [vmem:[#allocation10 + $0x430] sm:$0xff]
    %v904 = vld [vmem:[#allocation10 + $0x438] sm:$0xff]
    %v905 = vld [vmem:[#allocation10 + $0x440] sm:$0xff]
    %v906 = vld [vmem:[#allocation10 + $0x448] sm:$0xff]
    %v907 = vld [vmem:[#allocation10 + $0x450] sm:$0xff]
    %v908 = vld [vmem:[#allocation10 + $0x458] sm:$0xff]
    %v909 = vld [vmem:[#allocation10 + $0x460] sm:$0xff]
    %v910 = vld [vmem:[#allocation10 + $0x468] sm:$0xff]
    %v911 = vld [vmem:[#allocation10 + $0x470] sm:$0xff]
    %v912 = vld [vmem:[#allocation10 + $0x478] sm:$0xff]
    %v913 = vld [vmem:[#allocation10 + $0x480] sm:$0xff]
    %v914 = vld [vmem:[#allocation10 + $0x488] sm:$0xff]
    %v915 = vld [vmem:[#allocation10 + $0x490] sm:$0xff]
    %v916 = vld [vmem:[#allocation10 + $0x498] sm:$0xff]
    %v917 = vld [vmem:[#allocation10 + $0x4a0] sm:$0xff]
    %v918 = vld [vmem:[#allocation10 + $0x4a8] sm:$0xff]
    %v919 = vld [vmem:[#allocation10 + $0x4b0] sm:$0xff]
    %v920 = vld [vmem:[#allocation10 + $0x4b8] sm:$0xff]
    %v921 = vld [vmem:[#allocation10 + $0x4c0] sm:$0xff]
    %v922 = vld [vmem:[#allocation10 + $0x4c8] sm:$0xff]
    %v923 = vld [vmem:[#allocation10 + $0x4d0] sm:$0xff]
    %v924 = vld [vmem:[#allocation10 + $0x4d8] sm:$0xff]
    %v925 = vld [vmem:[#allocation10 + $0x4e0] sm:$0xff]
    %v926 = vld [vmem:[#allocation10 + $0x4e8] sm:$0xff]
    %v927 = vld [vmem:[#allocation10 + $0x4f0] sm:$0xff]
    %v928 = vld [vmem:[#allocation10 + $0x4f8] sm:$0xff]
    %v929 = vld [vmem:[#allocation10 + $0x500] sm:$0xff]
    %v930 = vld [vmem:[#allocation10 + $0x508] sm:$0xff]
    %v931 = vld [vmem:[#allocation10 + $0x510] sm:$0xff]
    %v932 = vld [vmem:[#allocation10 + $0x518] sm:$0xff]
    %v933 = vld [vmem:[#allocation10 + $0x520] sm:$0xff]
    %v934 = vld [vmem:[#allocation10 + $0x528] sm:$0xff]
    %v935 = vld [vmem:[#allocation10 + $0x530] sm:$0xff]
    %v936 = vld [vmem:[#allocation10 + $0x538] sm:$0xff]
    %v937 = vld [vmem:[#allocation10 + $0x540] sm:$0xff]
    %v938 = vld [vmem:[#allocation10 + $0x548] sm:$0xff]
    %v939 = vld [vmem:[#allocation10 + $0x550] sm:$0xff]
    %v940 = vld [vmem:[#allocation10 + $0x558] sm:$0xff]
    %v941 = vld [vmem:[#allocation10 + $0x560] sm:$0xff]
    %v942 = vld [vmem:[#allocation10 + $0x568] sm:$0xff]
    %v943 = vld [vmem:[#allocation10 + $0x570] sm:$0xff]
    %v944 = vld [vmem:[#allocation10 + $0x578] sm:$0xff]
    %v945 = vld [vmem:[#allocation10 + $0x580] sm:$0xff]
    %v946 = vld [vmem:[#allocation10 + $0x588] sm:$0xff]
    %v947 = vld [vmem:[#allocation10 + $0x590] sm:$0xff]
    %v948 = vld [vmem:[#allocation10 + $0x598] sm:$0xff]
    %v949 = vld [vmem:[#allocation10 + $0x5a0] sm:$0xff]
    %v950 = vld [vmem:[#allocation10 + $0x5a8] sm:$0xff]
    %v951 = vld [vmem:[#allocation10 + $0x5b0] sm:$0xff]
    %v952 = vld [vmem:[#allocation10 + $0x5b8] sm:$0xff]
    %v953 = vld [vmem:[#allocation10 + $0x5c0] sm:$0xff]
    %v954 = vld [vmem:[#allocation10 + $0x5c8] sm:$0xff]
    %v955 = vld [vmem:[#allocation10 + $0x5d0] sm:$0xff]
    %v956 = vld [vmem:[#allocation10 + $0x5d8] sm:$0xff]
    %v957 = vld [vmem:[#allocation10 + $0x5e0] sm:$0xff]
    %v958 = vld [vmem:[#allocation10 + $0x5e8] sm:$0xff]
    %v959 = vld [vmem:[#allocation10 + $0x5f0] sm:$0xff]
    %v960 = vld [vmem:[#allocation10 + $0x5f8] sm:$0xff]
    %v961 = vld [vmem:[#allocation10 + $0x600] sm:$0xff]
    %v962 = vld [vmem:[#allocation10 + $0x608] sm:$0xff]
    %v963 = vld [vmem:[#allocation10 + $0x610] sm:$0xff]
    %v964 = vld [vmem:[#allocation10 + $0x618] sm:$0xff]
    %v965 = vld [vmem:[#allocation10 + $0x620] sm:$0xff]
    %v966 = vld [vmem:[#allocation10 + $0x628] sm:$0xff]
    %v967 = vld [vmem:[#allocation10 + $0x630] sm:$0xff]
    %v968 = vld [vmem:[#allocation10 + $0x638] sm:$0xff]
    %v969 = vld [vmem:[#allocation10 + $0x640] sm:$0xff]
    %v970 = vld [vmem:[#allocation10 + $0x648] sm:$0xff]
    %v971 = vld [vmem:[#allocation10 + $0x650] sm:$0xff]
    %v972 = vld [vmem:[#allocation10 + $0x658] sm:$0xff]
    %v973 = vld [vmem:[#allocation10 + $0x660] sm:$0xff]
    %v974 = vld [vmem:[#allocation10 + $0x668] sm:$0xff]
    %v975 = vld [vmem:[#allocation10 + $0x670] sm:$0xff]
    %v976 = vld [vmem:[#allocation10 + $0x678] sm:$0xff]
    %v977 = vld [vmem:[#allocation10 + $0x680] sm:$0xff]
    %v978 = vld [vmem:[#allocation10 + $0x688] sm:$0xff]
    %v979 = vld [vmem:[#allocation10 + $0x690] sm:$0xff]
    %v980 = vld [vmem:[#allocation10 + $0x698] sm:$0xff]
    %v981 = vld [vmem:[#allocation10 + $0x6a0] sm:$0xff]
    %v982 = vld [vmem:[#allocation10 + $0x6a8] sm:$0xff]
    %v983 = vld [vmem:[#allocation10 + $0x6b0] sm:$0xff]
    %v984 = vld [vmem:[#allocation10 + $0x6b8] sm:$0xff]
    %v985 = vld [vmem:[#allocation10 + $0x6c0] sm:$0xff]
    %v986 = vld [vmem:[#allocation10 + $0x6c8] sm:$0xff]
    %v987 = vld [vmem:[#allocation10 + $0x6d0] sm:$0xff]
    %v988 = vld [vmem:[#allocation10 + $0x6d8] sm:$0xff]
    %v989 = vld [vmem:[#allocation10 + $0x6e0] sm:$0xff]
    %v990 = vld [vmem:[#allocation10 + $0x6e8] sm:$0xff]
    %v991 = vld [vmem:[#allocation10 + $0x6f0] sm:$0xff]
    %v992 = vld [vmem:[#allocation10 + $0x6f8] sm:$0xff]
    %v993 = vld [vmem:[#allocation10 + $0x700] sm:$0xff]
    %v994 = vld [vmem:[#allocation10 + $0x708] sm:$0xff]
    %v995 = vld [vmem:[#allocation10 + $0x710] sm:$0xff]
    %v996 = vld [vmem:[#allocation10 + $0x718] sm:$0xff]
    %v997 = vld [vmem:[#allocation10 + $0x720] sm:$0xff]
    %v998 = vld [vmem:[#allocation10 + $0x728] sm:$0xff]
    %v999 = vld [vmem:[#allocation10 + $0x730] sm:$0xff]
    %v1000 = vld [vmem:[#allocation10 + $0x738] sm:$0xff]
    %v1001 = vld [vmem:[#allocation10 + $0x740] sm:$0xff]
    %v1002 = vld [vmem:[#allocation10 + $0x748] sm:$0xff]
    %v1003 = vld [vmem:[#allocation10 + $0x750] sm:$0xff]
    %v1004 = vld [vmem:[#allocation10 + $0x758] sm:$0xff]
    %v1005 = vld [vmem:[#allocation10 + $0x760] sm:$0xff]
    %v1006 = vld [vmem:[#allocation10 + $0x768] sm:$0xff]
    %v1007 = vld [vmem:[#allocation10 + $0x770] sm:$0xff]
    %v1008 = vld [vmem:[#allocation10 + $0x778] sm:$0xff]
    %v1009 = vld [vmem:[#allocation10 + $0x780] sm:$0xff]
    %v1010 = vld [vmem:[#allocation10 + $0x788] sm:$0xff]
    %v1011 = vld [vmem:[#allocation10 + $0x790] sm:$0xff]
    %v1012 = vld [vmem:[#allocation10 + $0x798] sm:$0xff]
    %v1013 = vld [vmem:[#allocation10 + $0x7a0] sm:$0xff]
    %v1014 = vld [vmem:[#allocation10 + $0x7a8] sm:$0xff]
    %v1015 = vld [vmem:[#allocation10 + $0x7b0] sm:$0xff]
    %v1016 = vld [vmem:[#allocation10 + $0x7b8] sm:$0xff]
    %v1017 = vld [vmem:[#allocation10 + $0x7c0] sm:$0xff]
    %v1018 = vld [vmem:[#allocation10 + $0x7c8] sm:$0xff]
    %v1019 = vld [vmem:[#allocation10 + $0x7d0] sm:$0xff]
    %v1020 = vld [vmem:[#allocation10 + $0x7d8] sm:$0xff]
    %v1021 = vld [vmem:[#allocation10 + $0x7e0] sm:$0xff]
    %v1022 = vld [vmem:[#allocation10 + $0x7e8] sm:$0xff]
    %v1023 = vld [vmem:[#allocation10 + $0x7f0] sm:$0xff]
    %v1024 = vld [vmem:[#allocation10 + $0x7f8] sm:$0xff]
    %v1025 = vld [vmem:[%s7] sm:$0xff]
    %v1027 = vperm.slane %v1025, 0
    %v1028 = vperm.slane %v1025, 1
    %v1029 = vperm.slane %v1025, 2
    %v1030 = vperm.slane %v1025, 3
    %v1031 = vperm.slane %v1025, 4
    %v1032 = vperm.slane %v1025, 5
    %v1033 = vperm.slane %v1025, 6
    %v1034 = vperm.slane %v1025, 7
    %v1299 = vunpack.c.l.b16 %v769
    %v1300 = vunpack.c.h.b16 %v769
    %v1301 = vunpack.c.l.b16 %v770
    %v1302 = vunpack.c.h.b16 %v770
    %v1303 = vunpack.c.l.b16 %v771
    %v1304 = vunpack.c.h.b16 %v771
    %v1305 = vunpack.c.l.b16 %v772
    %v1306 = vunpack.c.h.b16 %v772
    %v1307 = vunpack.c.l.b16 %v773
    %v1308 = vunpack.c.h.b16 %v773
    %v1309 = vunpack.c.l.b16 %v774
    %v1310 = vunpack.c.h.b16 %v774
    %v1311 = vunpack.c.l.b16 %v775
    %v1312 = vunpack.c.h.b16 %v775
    %v1313 = vunpack.c.l.b16 %v776
    %v1314 = vunpack.c.h.b16 %v776
    %v1315 = vunpack.c.l.b16 %v777
    %v1316 = vunpack.c.h.b16 %v777
    %v1317 = vunpack.c.l.b16 %v778
    %v1318 = vunpack.c.h.b16 %v778
    %v1319 = vunpack.c.l.b16 %v779
    %v1320 = vunpack.c.h.b16 %v779
    %v1321 = vunpack.c.l.b16 %v780
    %v1322 = vunpack.c.h.b16 %v780
    %v1323 = vunpack.c.l.b16 %v781
    %v1324 = vunpack.c.h.b16 %v781
    %v1325 = vunpack.c.l.b16 %v782
    %v1326 = vunpack.c.h.b16 %v782
    %v1327 = vunpack.c.l.b16 %v783
    %v1328 = vunpack.c.h.b16 %v783
    %v1329 = vunpack.c.l.b16 %v784
    %v1330 = vunpack.c.h.b16 %v784
    %v1331 = vunpack.c.l.b16 %v785
    %v1332 = vunpack.c.h.b16 %v785
    %v1333 = vunpack.c.l.b16 %v786
    %v1334 = vunpack.c.h.b16 %v786
    %v1335 = vunpack.c.l.b16 %v787
    %v1336 = vunpack.c.h.b16 %v787
    %v1337 = vunpack.c.l.b16 %v788
    %v1338 = vunpack.c.h.b16 %v788
    %v1339 = vunpack.c.l.b16 %v789
    %v1340 = vunpack.c.h.b16 %v789
    %v1341 = vunpack.c.l.b16 %v790
    %v1342 = vunpack.c.h.b16 %v790
    %v1343 = vunpack.c.l.b16 %v791
    %v1344 = vunpack.c.h.b16 %v791
    %v1345 = vunpack.c.l.b16 %v792
    %v1346 = vunpack.c.h.b16 %v792
    %v1347 = vunpack.c.l.b16 %v793
    %v1348 = vunpack.c.h.b16 %v793
    %v1349 = vunpack.c.l.b16 %v794
    %v1350 = vunpack.c.h.b16 %v794
    %v1351 = vunpack.c.l.b16 %v795
    %v1352 = vunpack.c.h.b16 %v795
    %v1353 = vunpack.c.l.b16 %v796
    %v1354 = vunpack.c.h.b16 %v796
    %v1355 = vunpack.c.l.b16 %v797
    %v1356 = vunpack.c.h.b16 %v797
    %v1357 = vunpack.c.l.b16 %v798
    %v1358 = vunpack.c.h.b16 %v798
    %v1359 = vunpack.c.l.b16 %v799
    %v1360 = vunpack.c.h.b16 %v799
    %v1361 = vunpack.c.l.b16 %v800
    %v1362 = vunpack.c.h.b16 %v800
    %v1363 = vunpack.c.l.b16 %v801
    %v1364 = vunpack.c.h.b16 %v801
    %v1365 = vunpack.c.l.b16 %v802
    %v1366 = vunpack.c.h.b16 %v802
    %v1367 = vunpack.c.l.b16 %v803
    %v1368 = vunpack.c.h.b16 %v803
    %v1369 = vunpack.c.l.b16 %v804
    %v1370 = vunpack.c.h.b16 %v804
    %v1371 = vunpack.c.l.b16 %v805
    %v1372 = vunpack.c.h.b16 %v805
    %v1373 = vunpack.c.l.b16 %v806
    %v1374 = vunpack.c.h.b16 %v806
    %v1375 = vunpack.c.l.b16 %v807
    %v1376 = vunpack.c.h.b16 %v807
    %v1377 = vunpack.c.l.b16 %v808
    %v1378 = vunpack.c.h.b16 %v808
    %v1379 = vunpack.c.l.b16 %v809
    %v1380 = vunpack.c.h.b16 %v809
    %v1381 = vunpack.c.l.b16 %v810
    %v1382 = vunpack.c.h.b16 %v810
    %v1383 = vunpack.c.l.b16 %v811
    %v1384 = vunpack.c.h.b16 %v811
    %v1385 = vunpack.c.l.b16 %v812
    %v1386 = vunpack.c.h.b16 %v812
    %v1387 = vunpack.c.l.b16 %v813
    %v1388 = vunpack.c.h.b16 %v813
    %v1389 = vunpack.c.l.b16 %v814
    %v1390 = vunpack.c.h.b16 %v814
    %v1391 = vunpack.c.l.b16 %v815
    %v1392 = vunpack.c.h.b16 %v815
    %v1393 = vunpack.c.l.b16 %v816
    %v1394 = vunpack.c.h.b16 %v816
    %v1395 = vunpack.c.l.b16 %v817
    %v1396 = vunpack.c.h.b16 %v817
    %v1397 = vunpack.c.l.b16 %v818
    %v1398 = vunpack.c.h.b16 %v818
    %v1399 = vunpack.c.l.b16 %v819
    %v1400 = vunpack.c.h.b16 %v819
    %v1401 = vunpack.c.l.b16 %v820
    %v1402 = vunpack.c.h.b16 %v820
    %v1403 = vunpack.c.l.b16 %v821
    %v1404 = vunpack.c.h.b16 %v821
    %v1405 = vunpack.c.l.b16 %v822
    %v1406 = vunpack.c.h.b16 %v822
    %v1407 = vunpack.c.l.b16 %v823
    %v1408 = vunpack.c.h.b16 %v823
    %v1409 = vunpack.c.l.b16 %v824
    %v1410 = vunpack.c.h.b16 %v824
    %v1411 = vunpack.c.l.b16 %v825
    %v1412 = vunpack.c.h.b16 %v825
    %v1413 = vunpack.c.l.b16 %v826
    %v1414 = vunpack.c.h.b16 %v826
    %v1415 = vunpack.c.l.b16 %v827
    %v1416 = vunpack.c.h.b16 %v827
    %v1417 = vunpack.c.l.b16 %v828
    %v1418 = vunpack.c.h.b16 %v828
    %v1419 = vunpack.c.l.b16 %v829
    %v1420 = vunpack.c.h.b16 %v829
    %v1421 = vunpack.c.l.b16 %v830
    %v1422 = vunpack.c.h.b16 %v830
    %v1423 = vunpack.c.l.b16 %v831
    %v1424 = vunpack.c.h.b16 %v831
    %v1425 = vunpack.c.l.b16 %v832
    %v1426 = vunpack.c.h.b16 %v832
    %v1427 = vunpack.c.l.b16 %v833
    %v1428 = vunpack.c.h.b16 %v833
    %v1429 = vunpack.c.l.b16 %v834
    %v1430 = vunpack.c.h.b16 %v834
    %v1431 = vunpack.c.l.b16 %v835
    %v1432 = vunpack.c.h.b16 %v835
    %v1433 = vunpack.c.l.b16 %v836
    %v1434 = vunpack.c.h.b16 %v836
    %v1435 = vunpack.c.l.b16 %v837
    %v1436 = vunpack.c.h.b16 %v837
    %v1437 = vunpack.c.l.b16 %v838
    %v1438 = vunpack.c.h.b16 %v838
    %v1439 = vunpack.c.l.b16 %v839
    %v1440 = vunpack.c.h.b16 %v839
    %v1441 = vunpack.c.l.b16 %v840
    %v1442 = vunpack.c.h.b16 %v840
    %v1443 = vunpack.c.l.b16 %v841
    %v1444 = vunpack.c.h.b16 %v841
    %v1445 = vunpack.c.l.b16 %v842
    %v1446 = vunpack.c.h.b16 %v842
    %v1447 = vunpack.c.l.b16 %v843
    %v1448 = vunpack.c.h.b16 %v843
    %v1449 = vunpack.c.l.b16 %v844
    %v1450 = vunpack.c.h.b16 %v844
    %v1451 = vunpack.c.l.b16 %v845
    %v1452 = vunpack.c.h.b16 %v845
    %v1453 = vunpack.c.l.b16 %v846
    %v1454 = vunpack.c.h.b16 %v846
    %v1455 = vunpack.c.l.b16 %v847
    %v1456 = vunpack.c.h.b16 %v847
    %v1457 = vunpack.c.l.b16 %v848
    %v1458 = vunpack.c.h.b16 %v848
    %v1459 = vunpack.c.l.b16 %v849
    %v1460 = vunpack.c.h.b16 %v849
    %v1461 = vunpack.c.l.b16 %v850
    %v1462 = vunpack.c.h.b16 %v850
    %v1463 = vunpack.c.l.b16 %v851
    %v1464 = vunpack.c.h.b16 %v851
    %v1465 = vunpack.c.l.b16 %v852
    %v1466 = vunpack.c.h.b16 %v852
    %v1467 = vunpack.c.l.b16 %v853
    %v1468 = vunpack.c.h.b16 %v853
    %v1469 = vunpack.c.l.b16 %v854
    %v1470 = vunpack.c.h.b16 %v854
    %v1471 = vunpack.c.l.b16 %v855
    %v1472 = vunpack.c.h.b16 %v855
    %v1473 = vunpack.c.l.b16 %v856
    %v1474 = vunpack.c.h.b16 %v856
    %v1475 = vunpack.c.l.b16 %v857
    %v1476 = vunpack.c.h.b16 %v857
    %v1477 = vunpack.c.l.b16 %v858
    %v1478 = vunpack.c.h.b16 %v858
    %v1479 = vunpack.c.l.b16 %v859
    %v1480 = vunpack.c.h.b16 %v859
    %v1481 = vunpack.c.l.b16 %v860
    %v1482 = vunpack.c.h.b16 %v860
    %v1483 = vunpack.c.l.b16 %v861
    %v1484 = vunpack.c.h.b16 %v861
    %v1485 = vunpack.c.l.b16 %v862
    %v1486 = vunpack.c.h.b16 %v862
    %v1487 = vunpack.c.l.b16 %v863
    %v1488 = vunpack.c.h.b16 %v863
    %v1489 = vunpack.c.l.b16 %v864
    %v1490 = vunpack.c.h.b16 %v864
    %v1491 = vunpack.c.l.b16 %v865
    %v1492 = vunpack.c.h.b16 %v865
    %v1493 = vunpack.c.l.b16 %v866
    %v1494 = vunpack.c.h.b16 %v866
    %v1495 = vunpack.c.l.b16 %v867
    %v1496 = vunpack.c.h.b16 %v867
    %v1497 = vunpack.c.l.b16 %v868
    %v1498 = vunpack.c.h.b16 %v868
    %v1499 = vunpack.c.l.b16 %v869
    %v1500 = vunpack.c.h.b16 %v869
    %v1501 = vunpack.c.l.b16 %v870
    %v1502 = vunpack.c.h.b16 %v870
    %v1503 = vunpack.c.l.b16 %v871
    %v1504 = vunpack.c.h.b16 %v871
    %v1505 = vunpack.c.l.b16 %v872
    %v1506 = vunpack.c.h.b16 %v872
    %v1507 = vunpack.c.l.b16 %v873
    %v1508 = vunpack.c.h.b16 %v873
    %v1509 = vunpack.c.l.b16 %v874
    %v1510 = vunpack.c.h.b16 %v874
    %v1511 = vunpack.c.l.b16 %v875
    %v1512 = vunpack.c.h.b16 %v875
    %v1513 = vunpack.c.l.b16 %v876
    %v1514 = vunpack.c.h.b16 %v876
    %v1515 = vunpack.c.l.b16 %v877
    %v1516 = vunpack.c.h.b16 %v877
    %v1517 = vunpack.c.l.b16 %v878
    %v1518 = vunpack.c.h.b16 %v878
    %v1519 = vunpack.c.l.b16 %v879
    %v1520 = vunpack.c.h.b16 %v879
    %v1521 = vunpack.c.l.b16 %v880
    %v1522 = vunpack.c.h.b16 %v880
    %v1523 = vunpack.c.l.b16 %v881
    %v1524 = vunpack.c.h.b16 %v881
    %v1525 = vunpack.c.l.b16 %v882
    %v1526 = vunpack.c.h.b16 %v882
    %v1527 = vunpack.c.l.b16 %v883
    %v1528 = vunpack.c.h.b16 %v883
    %v1529 = vunpack.c.l.b16 %v884
    %v1530 = vunpack.c.h.b16 %v884
    %v1531 = vunpack.c.l.b16 %v885
    %v1532 = vunpack.c.h.b16 %v885
    %v1533 = vunpack.c.l.b16 %v886
    %v1534 = vunpack.c.h.b16 %v886
    %v1535 = vunpack.c.l.b16 %v887
    %v1536 = vunpack.c.h.b16 %v887
    %v1537 = vunpack.c.l.b16 %v888
    %v1538 = vunpack.c.h.b16 %v888
    %v1539 = vunpack.c.l.b16 %v889
    %v1540 = vunpack.c.h.b16 %v889
    %v1541 = vunpack.c.l.b16 %v890
    %v1542 = vunpack.c.h.b16 %v890
    %v1543 = vunpack.c.l.b16 %v891
    %v1544 = vunpack.c.h.b16 %v891
    %v1545 = vunpack.c.l.b16 %v892
    %v1546 = vunpack.c.h.b16 %v892
    %v1547 = vunpack.c.l.b16 %v893
    %v1548 = vunpack.c.h.b16 %v893
    %v1549 = vunpack.c.l.b16 %v894
    %v1550 = vunpack.c.h.b16 %v894
    %v1551 = vunpack.c.l.b16 %v895
    %v1552 = vunpack.c.h.b16 %v895
    %v1553 = vunpack.c.l.b16 %v896
    %v1554 = vunpack.c.h.b16 %v896
    %v1555 = vunpack.c.l.b16 %v897
    %v1556 = vunpack.c.h.b16 %v897
    %v1557 = vunpack.c.l.b16 %v898
    %v1558 = vunpack.c.h.b16 %v898
    %v1559 = vunpack.c.l.b16 %v899
    %v1560 = vunpack.c.h.b16 %v899
    %v1561 = vunpack.c.l.b16 %v900
    %v1562 = vunpack.c.h.b16 %v900
    %v1563 = vunpack.c.l.b16 %v901
    %v1564 = vunpack.c.h.b16 %v901
    %v1565 = vunpack.c.l.b16 %v902
    %v1566 = vunpack.c.h.b16 %v902
    %v1567 = vunpack.c.l.b16 %v903
    %v1568 = vunpack.c.h.b16 %v903
    %v1569 = vunpack.c.l.b16 %v904
    %v1570 = vunpack.c.h.b16 %v904
    %v1571 = vunpack.c.l.b16 %v905
    %v1572 = vunpack.c.h.b16 %v905
    %v1573 = vunpack.c.l.b16 %v906
    %v1574 = vunpack.c.h.b16 %v906
    %v1575 = vunpack.c.l.b16 %v907
    %v1576 = vunpack.c.h.b16 %v907
    %v1577 = vunpack.c.l.b16 %v908
    %v1578 = vunpack.c.h.b16 %v908
    %v1579 = vunpack.c.l.b16 %v909
    %v1580 = vunpack.c.h.b16 %v909
    %v1581 = vunpack.c.l.b16 %v910
    %v1582 = vunpack.c.h.b16 %v910
    %v1583 = vunpack.c.l.b16 %v911
    %v1584 = vunpack.c.h.b16 %v911
    %v1585 = vunpack.c.l.b16 %v912
    %v1586 = vunpack.c.h.b16 %v912
    %v1587 = vunpack.c.l.b16 %v913
    %v1588 = vunpack.c.h.b16 %v913
    %v1589 = vunpack.c.l.b16 %v914
    %v1590 = vunpack.c.h.b16 %v914
    %v1591 = vunpack.c.l.b16 %v915
    %v1592 = vunpack.c.h.b16 %v915
    %v1593 = vunpack.c.l.b16 %v916
    %v1594 = vunpack.c.h.b16 %v916
    %v1595 = vunpack.c.l.b16 %v917
    %v1596 = vunpack.c.h.b16 %v917
    %v1597 = vunpack.c.l.b16 %v918
    %v1598 = vunpack.c.h.b16 %v918
    %v1599 = vunpack.c.l.b16 %v919
    %v1600 = vunpack.c.h.b16 %v919
    %v1601 = vunpack.c.l.b16 %v920
    %v1602 = vunpack.c.h.b16 %v920
    %v1603 = vunpack.c.l.b16 %v921
    %v1604 = vunpack.c.h.b16 %v921
    %v1605 = vunpack.c.l.b16 %v922
    %v1606 = vunpack.c.h.b16 %v922
    %v1607 = vunpack.c.l.b16 %v923
    %v1608 = vunpack.c.h.b16 %v923
    %v1609 = vunpack.c.l.b16 %v924
    %v1610 = vunpack.c.h.b16 %v924
    %v1611 = vunpack.c.l.b16 %v925
    %v1612 = vunpack.c.h.b16 %v925
    %v1613 = vunpack.c.l.b16 %v926
    %v1614 = vunpack.c.h.b16 %v926
    %v1615 = vunpack.c.l.b16 %v927
    %v1616 = vunpack.c.h.b16 %v927
    %v1617 = vunpack.c.l.b16 %v928
    %v1618 = vunpack.c.h.b16 %v928
    %v1619 = vunpack.c.l.b16 %v929
    %v1620 = vunpack.c.h.b16 %v929
    %v1621 = vunpack.c.l.b16 %v930
    %v1622 = vunpack.c.h.b16 %v930
    %v1623 = vunpack.c.l.b16 %v931
    %v1624 = vunpack.c.h.b16 %v931
    %v1625 = vunpack.c.l.b16 %v932
    %v1626 = vunpack.c.h.b16 %v932
    %v1627 = vunpack.c.l.b16 %v933
    %v1628 = vunpack.c.h.b16 %v933
    %v1629 = vunpack.c.l.b16 %v934
    %v1630 = vunpack.c.h.b16 %v934
    %v1631 = vunpack.c.l.b16 %v935
    %v1632 = vunpack.c.h.b16 %v935
    %v1633 = vunpack.c.l.b16 %v936
    %v1634 = vunpack.c.h.b16 %v936
    %v1635 = vunpack.c.l.b16 %v937
    %v1636 = vunpack.c.h.b16 %v937
    %v1637 = vunpack.c.l.b16 %v938
    %v1638 = vunpack.c.h.b16 %v938
    %v1639 = vunpack.c.l.b16 %v939
    %v1640 = vunpack.c.h.b16 %v939
    %v1641 = vunpack.c.l.b16 %v940
    %v1642 = vunpack.c.h.b16 %v940
    %v1643 = vunpack.c.l.b16 %v941
    %v1644 = vunpack.c.h.b16 %v941
    %v1645 = vunpack.c.l.b16 %v942
    %v1646 = vunpack.c.h.b16 %v942
    %v1647 = vunpack.c.l.b16 %v943
    %v1648 = vunpack.c.h.b16 %v943
    %v1649 = vunpack.c.l.b16 %v944
    %v1650 = vunpack.c.h.b16 %v944
    %v1651 = vunpack.c.l.b16 %v945
    %v1652 = vunpack.c.h.b16 %v945
    %v1653 = vunpack.c.l.b16 %v946
    %v1654 = vunpack.c.h.b16 %v946
    %v1655 = vunpack.c.l.b16 %v947
    %v1656 = vunpack.c.h.b16 %v947
    %v1657 = vunpack.c.l.b16 %v948
    %v1658 = vunpack.c.h.b16 %v948
    %v1659 = vunpack.c.l.b16 %v949
    %v1660 = vunpack.c.h.b16 %v949
    %v1661 = vunpack.c.l.b16 %v950
    %v1662 = vunpack.c.h.b16 %v950
    %v1663 = vunpack.c.l.b16 %v951
    %v1664 = vunpack.c.h.b16 %v951
    %v1665 = vunpack.c.l.b16 %v952
    %v1666 = vunpack.c.h.b16 %v952
    %v1667 = vunpack.c.l.b16 %v953
    %v1668 = vunpack.c.h.b16 %v953
    %v1669 = vunpack.c.l.b16 %v954
    %v1670 = vunpack.c.h.b16 %v954
    %v1671 = vunpack.c.l.b16 %v955
    %v1672 = vunpack.c.h.b16 %v955
    %v1673 = vunpack.c.l.b16 %v956
    %v1674 = vunpack.c.h.b16 %v956
    %v1675 = vunpack.c.l.b16 %v957
    %v1676 = vunpack.c.h.b16 %v957
    %v1677 = vunpack.c.l.b16 %v958
    %v1678 = vunpack.c.h.b16 %v958
    %v1679 = vunpack.c.l.b16 %v959
    %v1680 = vunpack.c.h.b16 %v959
    %v1681 = vunpack.c.l.b16 %v960
    %v1682 = vunpack.c.h.b16 %v960
    %v1683 = vunpack.c.l.b16 %v961
    %v1684 = vunpack.c.h.b16 %v961
    %v1685 = vunpack.c.l.b16 %v962
    %v1686 = vunpack.c.h.b16 %v962
    %v1687 = vunpack.c.l.b16 %v963
    %v1688 = vunpack.c.h.b16 %v963
    %v1689 = vunpack.c.l.b16 %v964
    %v1690 = vunpack.c.h.b16 %v964
    %v1691 = vunpack.c.l.b16 %v965
    %v1692 = vunpack.c.h.b16 %v965
    %v1693 = vunpack.c.l.b16 %v966
    %v1694 = vunpack.c.h.b16 %v966
    %v1695 = vunpack.c.l.b16 %v967
    %v1696 = vunpack.c.h.b16 %v967
    %v1697 = vunpack.c.l.b16 %v968
    %v1698 = vunpack.c.h.b16 %v968
    %v1699 = vunpack.c.l.b16 %v969
    %v1700 = vunpack.c.h.b16 %v969
    %v1701 = vunpack.c.l.b16 %v970
    %v1702 = vunpack.c.h.b16 %v970
    %v1703 = vunpack.c.l.b16 %v971
    %v1704 = vunpack.c.h.b16 %v971
    %v1705 = vunpack.c.l.b16 %v972
    %v1706 = vunpack.c.h.b16 %v972
    %v1707 = vunpack.c.l.b16 %v973
    %v1708 = vunpack.c.h.b16 %v973
    %v1709 = vunpack.c.l.b16 %v974
    %v1710 = vunpack.c.h.b16 %v974
    %v1711 = vunpack.c.l.b16 %v975
    %v1712 = vunpack.c.h.b16 %v975
    %v1713 = vunpack.c.l.b16 %v976
    %v1714 = vunpack.c.h.b16 %v976
    %v1715 = vunpack.c.l.b16 %v977
    %v1716 = vunpack.c.h.b16 %v977
    %v1717 = vunpack.c.l.b16 %v978
    %v1718 = vunpack.c.h.b16 %v978
    %v1719 = vunpack.c.l.b16 %v979
    %v1720 = vunpack.c.h.b16 %v979
    %v1721 = vunpack.c.l.b16 %v980
    %v1722 = vunpack.c.h.b16 %v980
    %v1723 = vunpack.c.l.b16 %v981
    %v1724 = vunpack.c.h.b16 %v981
    %v1725 = vunpack.c.l.b16 %v982
    %v1726 = vunpack.c.h.b16 %v982
    %v1727 = vunpack.c.l.b16 %v983
    %v1728 = vunpack.c.h.b16 %v983
    %v1729 = vunpack.c.l.b16 %v984
    %v1730 = vunpack.c.h.b16 %v984
    %v1731 = vunpack.c.l.b16 %v985
    %v1732 = vunpack.c.h.b16 %v985
    %v1733 = vunpack.c.l.b16 %v986
    %v1734 = vunpack.c.h.b16 %v986
    %v1735 = vunpack.c.l.b16 %v987
    %v1736 = vunpack.c.h.b16 %v987
    %v1737 = vunpack.c.l.b16 %v988
    %v1738 = vunpack.c.h.b16 %v988
    %v1739 = vunpack.c.l.b16 %v989
    %v1740 = vunpack.c.h.b16 %v989
    %v1741 = vunpack.c.l.b16 %v990
    %v1742 = vunpack.c.h.b16 %v990
    %v1743 = vunpack.c.l.b16 %v991
    %v1744 = vunpack.c.h.b16 %v991
    %v1745 = vunpack.c.l.b16 %v992
    %v1746 = vunpack.c.h.b16 %v992
    %v1747 = vunpack.c.l.b16 %v993
    %v1748 = vunpack.c.h.b16 %v993
    %v1749 = vunpack.c.l.b16 %v994
    %v1750 = vunpack.c.h.b16 %v994
    %v1751 = vunpack.c.l.b16 %v995
    %v1752 = vunpack.c.h.b16 %v995
    %v1753 = vunpack.c.l.b16 %v996
    %v1754 = vunpack.c.h.b16 %v996
    %v1755 = vunpack.c.l.b16 %v997
    %v1756 = vunpack.c.h.b16 %v997
    %v1757 = vunpack.c.l.b16 %v998
    %v1758 = vunpack.c.h.b16 %v998
    %v1759 = vunpack.c.l.b16 %v999
    %v1760 = vunpack.c.h.b16 %v999
    %v1761 = vunpack.c.l.b16 %v1000
    %v1762 = vunpack.c.h.b16 %v1000
    %v1763 = vunpack.c.l.b16 %v1001
    %v1764 = vunpack.c.h.b16 %v1001
    %v1765 = vunpack.c.l.b16 %v1002
    %v1766 = vunpack.c.h.b16 %v1002
    %v1767 = vunpack.c.l.b16 %v1003
    %v1768 = vunpack.c.h.b16 %v1003
    %v1769 = vunpack.c.l.b16 %v1004
    %v1770 = vunpack.c.h.b16 %v1004
    %v1771 = vunpack.c.l.b16 %v1005
    %v1772 = vunpack.c.h.b16 %v1005
    %v1773 = vunpack.c.l.b16 %v1006
    %v1774 = vunpack.c.h.b16 %v1006
    %v1775 = vunpack.c.l.b16 %v1007
    %v1776 = vunpack.c.h.b16 %v1007
    %v1777 = vunpack.c.l.b16 %v1008
    %v1778 = vunpack.c.h.b16 %v1008
    %v1779 = vunpack.c.l.b16 %v1009
    %v1780 = vunpack.c.h.b16 %v1009
    %v1781 = vunpack.c.l.b16 %v1010
    %v1782 = vunpack.c.h.b16 %v1010
    %v1783 = vunpack.c.l.b16 %v1011
    %v1784 = vunpack.c.h.b16 %v1011
    %v1785 = vunpack.c.l.b16 %v1012
    %v1786 = vunpack.c.h.b16 %v1012
    %v1787 = vunpack.c.l.b16 %v1013
    %v1788 = vunpack.c.h.b16 %v1013
    %v1789 = vunpack.c.l.b16 %v1014
    %v1790 = vunpack.c.h.b16 %v1014
    %v1791 = vunpack.c.l.b16 %v1015
    %v1792 = vunpack.c.h.b16 %v1015
    %v1793 = vunpack.c.l.b16 %v1016
    %v1794 = vunpack.c.h.b16 %v1016
    %v1795 = vunpack.c.l.b16 %v1017
    %v1796 = vunpack.c.h.b16 %v1017
    %v1797 = vunpack.c.l.b16 %v1018
    %v1798 = vunpack.c.h.b16 %v1018
    %v1799 = vunpack.c.l.b16 %v1019
    %v1800 = vunpack.c.h.b16 %v1019
    %v1801 = vunpack.c.l.b16 %v1020
    %v1802 = vunpack.c.h.b16 %v1020
    %v1803 = vunpack.c.l.b16 %v1021
    %v1804 = vunpack.c.h.b16 %v1021
    %v1805 = vunpack.c.l.b16 %v1022
    %v1806 = vunpack.c.h.b16 %v1022
    %v1807 = vunpack.c.l.b16 %v1023
    %v1808 = vunpack.c.h.b16 %v1023
    %v1809 = vunpack.c.l.b16 %v1024
    %v1810 = vunpack.c.h.b16 %v1024
    %v1811 = vpack.c.b16 %v1307, %v1299
    %v1812 = vpack.c.b16 %v1308, %v1300
    %v1813 = vpack.c.b16 %v1309, %v1301
    %v1814 = vpack.c.b16 %v1310, %v1302
    %v1815 = vpack.c.b16 %v1311, %v1303
    %v1816 = vpack.c.b16 %v1312, %v1304
    %v1817 = vpack.c.b16 %v1313, %v1305
    %v1818 = vpack.c.b16 %v1314, %v1306
    %v1819 = vpack.c.b16 %v1323, %v1315
    %v1820 = vpack.c.b16 %v1324, %v1316
    %v1821 = vpack.c.b16 %v1325, %v1317
    %v1822 = vpack.c.b16 %v1326, %v1318
    %v1823 = vpack.c.b16 %v1327, %v1319
    %v1824 = vpack.c.b16 %v1328, %v1320
    %v1825 = vpack.c.b16 %v1329, %v1321
    %v1826 = vpack.c.b16 %v1330, %v1322
    %v1827 = vpack.c.b16 %v1339, %v1331
    %v1828 = vpack.c.b16 %v1340, %v1332
    %v1829 = vpack.c.b16 %v1341, %v1333
    %v1830 = vpack.c.b16 %v1342, %v1334
    %v1831 = vpack.c.b16 %v1343, %v1335
    %v1832 = vpack.c.b16 %v1344, %v1336
    %v1833 = vpack.c.b16 %v1345, %v1337
    %v1834 = vpack.c.b16 %v1346, %v1338
    %v1835 = vpack.c.b16 %v1355, %v1347
    %v1836 = vpack.c.b16 %v1356, %v1348
    %v1837 = vpack.c.b16 %v1357, %v1349
    %v1838 = vpack.c.b16 %v1358, %v1350
    %v1839 = vpack.c.b16 %v1359, %v1351
    %v1840 = vpack.c.b16 %v1360, %v1352
    %v1841 = vpack.c.b16 %v1361, %v1353
    %v1842 = vpack.c.b16 %v1362, %v1354
    %v1843 = vpack.c.b16 %v1371, %v1363
    %v1844 = vpack.c.b16 %v1372, %v1364
    %v1845 = vpack.c.b16 %v1373, %v1365
    %v1846 = vpack.c.b16 %v1374, %v1366
    %v1847 = vpack.c.b16 %v1375, %v1367
    %v1848 = vpack.c.b16 %v1376, %v1368
    %v1849 = vpack.c.b16 %v1377, %v1369
    %v1850 = vpack.c.b16 %v1378, %v1370
    %v1851 = vpack.c.b16 %v1387, %v1379
    %v1852 = vpack.c.b16 %v1388, %v1380
    %v1853 = vpack.c.b16 %v1389, %v1381
    %v1854 = vpack.c.b16 %v1390, %v1382
    %v1855 = vpack.c.b16 %v1391, %v1383
    %v1856 = vpack.c.b16 %v1392, %v1384
    %v1857 = vpack.c.b16 %v1393, %v1385
    %v1858 = vpack.c.b16 %v1394, %v1386
    %v1859 = vpack.c.b16 %v1403, %v1395
    %v1860 = vpack.c.b16 %v1404, %v1396
    %v1861 = vpack.c.b16 %v1405, %v1397
    %v1862 = vpack.c.b16 %v1406, %v1398
    %v1863 = vpack.c.b16 %v1407, %v1399
    %v1864 = vpack.c.b16 %v1408, %v1400
    %v1865 = vpack.c.b16 %v1409, %v1401
    %v1866 = vpack.c.b16 %v1410, %v1402
    %v1867 = vpack.c.b16 %v1419, %v1411
    %v1868 = vpack.c.b16 %v1420, %v1412
    %v1869 = vpack.c.b16 %v1421, %v1413
    %v1870 = vpack.c.b16 %v1422, %v1414
    %v1871 = vpack.c.b16 %v1423, %v1415
    %v1872 = vpack.c.b16 %v1424, %v1416
    %v1873 = vpack.c.b16 %v1425, %v1417
    %v1874 = vpack.c.b16 %v1426, %v1418
    %v1875 = vpack.c.b16 %v1435, %v1427
    %v1876 = vpack.c.b16 %v1436, %v1428
    %v1877 = vpack.c.b16 %v1437, %v1429
    %v1878 = vpack.c.b16 %v1438, %v1430
    %v1879 = vpack.c.b16 %v1439, %v1431
    %v1880 = vpack.c.b16 %v1440, %v1432
    %v1881 = vpack.c.b16 %v1441, %v1433
    %v1882 = vpack.c.b16 %v1442, %v1434
    %v1883 = vpack.c.b16 %v1451, %v1443
    %v1884 = vpack.c.b16 %v1452, %v1444
    %v1885 = vpack.c.b16 %v1453, %v1445
    %v1886 = vpack.c.b16 %v1454, %v1446
    %v1887 = vpack.c.b16 %v1455, %v1447
    %v1888 = vpack.c.b16 %v1456, %v1448
    %v1889 = vpack.c.b16 %v1457, %v1449
    %v1890 = vpack.c.b16 %v1458, %v1450
    %v1891 = vpack.c.b16 %v1467, %v1459
    %v1892 = vpack.c.b16 %v1468, %v1460
    %v1893 = vpack.c.b16 %v1469, %v1461
    %v1894 = vpack.c.b16 %v1470, %v1462
    %v1895 = vpack.c.b16 %v1471, %v1463
    %v1896 = vpack.c.b16 %v1472, %v1464
    %v1897 = vpack.c.b16 %v1473, %v1465
    %v1898 = vpack.c.b16 %v1474, %v1466
    %v1899 = vpack.c.b16 %v1483, %v1475
    %v1900 = vpack.c.b16 %v1484, %v1476
    %v1901 = vpack.c.b16 %v1485, %v1477
    %v1902 = vpack.c.b16 %v1486, %v1478
    %v1903 = vpack.c.b16 %v1487, %v1479
    %v1904 = vpack.c.b16 %v1488, %v1480
    %v1905 = vpack.c.b16 %v1489, %v1481
    %v1906 = vpack.c.b16 %v1490, %v1482
    %v1907 = vpack.c.b16 %v1499, %v1491
    %v1908 = vpack.c.b16 %v1500, %v1492
    %v1909 = vpack.c.b16 %v1501, %v1493
    %v1910 = vpack.c.b16 %v1502, %v1494
    %v1911 = vpack.c.b16 %v1503, %v1495
    %v1912 = vpack.c.b16 %v1504, %v1496
    %v1913 = vpack.c.b16 %v1505, %v1497
    %v1914 = vpack.c.b16 %v1506, %v1498
    %v1915 = vpack.c.b16 %v1515, %v1507
    %v1916 = vpack.c.b16 %v1516, %v1508
    %v1917 = vpack.c.b16 %v1517, %v1509
    %v1918 = vpack.c.b16 %v1518, %v1510
    %v1919 = vpack.c.b16 %v1519, %v1511
    %v1920 = vpack.c.b16 %v1520, %v1512
    %v1921 = vpack.c.b16 %v1521, %v1513
    %v1922 = vpack.c.b16 %v1522, %v1514
    %v1923 = vpack.c.b16 %v1531, %v1523
    %v1924 = vpack.c.b16 %v1532, %v1524
    %v1925 = vpack.c.b16 %v1533, %v1525
    %v1926 = vpack.c.b16 %v1534, %v1526
    %v1927 = vpack.c.b16 %v1535, %v1527
    %v1928 = vpack.c.b16 %v1536, %v1528
    %v1929 = vpack.c.b16 %v1537, %v1529
    %v1930 = vpack.c.b16 %v1538, %v1530
    %v1931 = vpack.c.b16 %v1547, %v1539
    %v1932 = vpack.c.b16 %v1548, %v1540
    %v1933 = vpack.c.b16 %v1549, %v1541
    %v1934 = vpack.c.b16 %v1550, %v1542
    %v1935 = vpack.c.b16 %v1551, %v1543
    %v1936 = vpack.c.b16 %v1552, %v1544
    %v1937 = vpack.c.b16 %v1553, %v1545
    %v1938 = vpack.c.b16 %v1554, %v1546
    %v1939 = vpack.c.b16 %v1563, %v1555
    %v1940 = vpack.c.b16 %v1564, %v1556
    %v1941 = vpack.c.b16 %v1565, %v1557
    %v1942 = vpack.c.b16 %v1566, %v1558
    %v1943 = vpack.c.b16 %v1567, %v1559
    %v1944 = vpack.c.b16 %v1568, %v1560
    %v1945 = vpack.c.b16 %v1569, %v1561
    %v1946 = vpack.c.b16 %v1570, %v1562
    %v1947 = vpack.c.b16 %v1579, %v1571
    %v1948 = vpack.c.b16 %v1580, %v1572
    %v1949 = vpack.c.b16 %v1581, %v1573
    %v1950 = vpack.c.b16 %v1582, %v1574
    %v1951 = vpack.c.b16 %v1583, %v1575
    %v1952 = vpack.c.b16 %v1584, %v1576
    %v1953 = vpack.c.b16 %v1585, %v1577
    %v1954 = vpack.c.b16 %v1586, %v1578
    %v1955 = vpack.c.b16 %v1595, %v1587
    %v1956 = vpack.c.b16 %v1596, %v1588
    %v1957 = vpack.c.b16 %v1597, %v1589
    %v1958 = vpack.c.b16 %v1598, %v1590
    %v1959 = vpack.c.b16 %v1599, %v1591
    %v1960 = vpack.c.b16 %v1600, %v1592
    %v1961 = vpack.c.b16 %v1601, %v1593
    %v1962 = vpack.c.b16 %v1602, %v1594
    %v1963 = vpack.c.b16 %v1611, %v1603
    %v1964 = vpack.c.b16 %v1612, %v1604
    %v1965 = vpack.c.b16 %v1613, %v1605
    %v1966 = vpack.c.b16 %v1614, %v1606
    %v1967 = vpack.c.b16 %v1615, %v1607
    %v1968 = vpack.c.b16 %v1616, %v1608
    %v1969 = vpack.c.b16 %v1617, %v1609
    %v1970 = vpack.c.b16 %v1618, %v1610
    %v1971 = vpack.c.b16 %v1627, %v1619
    %v1972 = vpack.c.b16 %v1628, %v1620
    %v1973 = vpack.c.b16 %v1629, %v1621
    %v1974 = vpack.c.b16 %v1630, %v1622
    %v1975 = vpack.c.b16 %v1631, %v1623
    %v1976 = vpack.c.b16 %v1632, %v1624
    %v1977 = vpack.c.b16 %v1633, %v1625
    %v1978 = vpack.c.b16 %v1634, %v1626
    %v1979 = vpack.c.b16 %v1643, %v1635
    %v1980 = vpack.c.b16 %v1644, %v1636
    %v1981 = vpack.c.b16 %v1645, %v1637
    %v1982 = vpack.c.b16 %v1646, %v1638
    %v1983 = vpack.c.b16 %v1647, %v1639
    %v1984 = vpack.c.b16 %v1648, %v1640
    %v1985 = vpack.c.b16 %v1649, %v1641
    %v1986 = vpack.c.b16 %v1650, %v1642
    %v1987 = vpack.c.b16 %v1659, %v1651
    %v1988 = vpack.c.b16 %v1660, %v1652
    %v1989 = vpack.c.b16 %v1661, %v1653
    %v1990 = vpack.c.b16 %v1662, %v1654
    %v1991 = vpack.c.b16 %v1663, %v1655
    %v1992 = vpack.c.b16 %v1664, %v1656
    %v1993 = vpack.c.b16 %v1665, %v1657
    %v1994 = vpack.c.b16 %v1666, %v1658
    %v1995 = vpack.c.b16 %v1675, %v1667
    %v1996 = vpack.c.b16 %v1676, %v1668
    %v1997 = vpack.c.b16 %v1677, %v1669
    %v1998 = vpack.c.b16 %v1678, %v1670
    %v1999 = vpack.c.b16 %v1679, %v1671
    %v2000 = vpack.c.b16 %v1680, %v1672
    %v2001 = vpack.c.b16 %v1681, %v1673
    %v2002 = vpack.c.b16 %v1682, %v1674
    %v2003 = vpack.c.b16 %v1691, %v1683
    %v2004 = vpack.c.b16 %v1692, %v1684
    %v2005 = vpack.c.b16 %v1693, %v1685
    %v2006 = vpack.c.b16 %v1694, %v1686
    %v2007 = vpack.c.b16 %v1695, %v1687
    %v2008 = vpack.c.b16 %v1696, %v1688
    %v2009 = vpack.c.b16 %v1697, %v1689
    %v2010 = vpack.c.b16 %v1698, %v1690
    %v2011 = vpack.c.b16 %v1707, %v1699
    %v2012 = vpack.c.b16 %v1708, %v1700
    %v2013 = vpack.c.b16 %v1709, %v1701
    %v2014 = vpack.c.b16 %v1710, %v1702
    %v2015 = vpack.c.b16 %v1711, %v1703
    %v2016 = vpack.c.b16 %v1712, %v1704
    %v2017 = vpack.c.b16 %v1713, %v1705
    %v2018 = vpack.c.b16 %v1714, %v1706
    %v2019 = vpack.c.b16 %v1723, %v1715
    %v2020 = vpack.c.b16 %v1724, %v1716
    %v2021 = vpack.c.b16 %v1725, %v1717
    %v2022 = vpack.c.b16 %v1726, %v1718
    %v2023 = vpack.c.b16 %v1727, %v1719
    %v2024 = vpack.c.b16 %v1728, %v1720
    %v2025 = vpack.c.b16 %v1729, %v1721
    %v2026 = vpack.c.b16 %v1730, %v1722
    %v2027 = vpack.c.b16 %v1739, %v1731
    %v2028 = vpack.c.b16 %v1740, %v1732
    %v2029 = vpack.c.b16 %v1741, %v1733
    %v2030 = vpack.c.b16 %v1742, %v1734
    %v2031 = vpack.c.b16 %v1743, %v1735
    %v2032 = vpack.c.b16 %v1744, %v1736
    %v2033 = vpack.c.b16 %v1745, %v1737
    %v2034 = vpack.c.b16 %v1746, %v1738
    %v2035 = vpack.c.b16 %v1755, %v1747
    %v2036 = vpack.c.b16 %v1756, %v1748
    %v2037 = vpack.c.b16 %v1757, %v1749
    %v2038 = vpack.c.b16 %v1758, %v1750
    %v2039 = vpack.c.b16 %v1759, %v1751
    %v2040 = vpack.c.b16 %v1760, %v1752
    %v2041 = vpack.c.b16 %v1761, %v1753
    %v2042 = vpack.c.b16 %v1762, %v1754
    %v2043 = vpack.c.b16 %v1771, %v1763
    %v2044 = vpack.c.b16 %v1772, %v1764
    %v2045 = vpack.c.b16 %v1773, %v1765
    %v2046 = vpack.c.b16 %v1774, %v1766
    %v2047 = vpack.c.b16 %v1775, %v1767
    %v2048 = vpack.c.b16 %v1776, %v1768
    %v2049 = vpack.c.b16 %v1777, %v1769
    %v2050 = vpack.c.b16 %v1778, %v1770
    %v2051 = vpack.c.b16 %v1787, %v1779
    %v2052 = vpack.c.b16 %v1788, %v1780
    %v2053 = vpack.c.b16 %v1789, %v1781
    %v2054 = vpack.c.b16 %v1790, %v1782
    %v2055 = vpack.c.b16 %v1791, %v1783
    %v2056 = vpack.c.b16 %v1792, %v1784
    %v2057 = vpack.c.b16 %v1793, %v1785
    %v2058 = vpack.c.b16 %v1794, %v1786
    %v2059 = vpack.c.b16 %v1803, %v1795
    %v2060 = vpack.c.b16 %v1804, %v1796
    %v2061 = vpack.c.b16 %v1805, %v1797
    %v2062 = vpack.c.b16 %v1806, %v1798
    %v2063 = vpack.c.b16 %v1807, %v1799
    %v2064 = vpack.c.b16 %v1808, %v1800
    %v2065 = vpack.c.b16 %v1809, %v1801
    %v2066 = vpack.c.b16 %v1810, %v1802
    %2323 = vmatpush.bf16.msra.mxu0 %v1867
    %2324 = vmatpush.bf16.msra.mxu0 %v1859
    %2325 = vmatpush.bf16.msra.mxu0 %v1851
    %2326 = vmatpush.bf16.msra.mxu0 %v1843
    %2327 = vmatpush.bf16.msra.mxu0 %v1835
    %2328 = vmatpush.bf16.msra.mxu0 %v1827
    %2329 = vmatpush.bf16.msra.mxu0 %v1819
    %2330 = vmatpush.bf16.msra.mxu0 %v1811
    %2331 = vmatmul.bf16.gmra.mxu0 %v765
    %v2332 = vpop.f32.mrf.mxu0
    %v2333 = vadd.f32 %v1027, %v2332
    %v2334 = vpop.f32.mrf.mxu0
    %2335 = vdwg.mxu0
    %2336 = vmatpush.bf16.msra.mxu0 %v1931
    %2337 = vmatpush.bf16.msra.mxu0 %v1923
    %2338 = vmatpush.bf16.msra.mxu0 %v1915
    %2339 = vmatpush.bf16.msra.mxu0 %v1907
    %2340 = vmatpush.bf16.msra.mxu0 %v1899
    %2341 = vmatpush.bf16.msra.mxu0 %v1891
    %2342 = vmatpush.bf16.msra.mxu0 %v1883
    %2343 = vmatpush.bf16.msra.mxu0 %v1875
    %2344 = vmatmul.bf16.gmra.mxu0 %v766
    %v2345 = vpop.f32.mrf.mxu0
    %v2346 = vadd.f32 %v2333, %v2345
    %v2347 = vpop.f32.mrf.mxu0
    %2348 = vdwg.mxu0
    %2349 = vmatpush.bf16.msra.mxu0 %v1995
    %2350 = vmatpush.bf16.msra.mxu0 %v1987
    %2351 = vmatpush.bf16.msra.mxu0 %v1979
    %2352 = vmatpush.bf16.msra.mxu0 %v1971
    %2353 = vmatpush.bf16.msra.mxu0 %v1963
    %2354 = vmatpush.bf16.msra.mxu0 %v1955
    %2355 = vmatpush.bf16.msra.mxu0 %v1947
    %2356 = vmatpush.bf16.msra.mxu0 %v1939
    %2357 = vmatmul.bf16.gmra.mxu0 %v767
    %v2358 = vpop.f32.mrf.mxu0
    %v2359 = vadd.f32 %v2346, %v2358
    %v2360 = vpop.f32.mrf.mxu0
    %2361 = vdwg.mxu0
    %2362 = vmatpush.bf16.msra.mxu0 %v2059
    %2363 = vmatpush.bf16.msra.mxu0 %v2051
    %2364 = vmatpush.bf16.msra.mxu0 %v2043
    %2365 = vmatpush.bf16.msra.mxu0 %v2035
    %2366 = vmatpush.bf16.msra.mxu0 %v2027
    %2367 = vmatpush.bf16.msra.mxu0 %v2019
    %2368 = vmatpush.bf16.msra.mxu0 %v2011
    %2369 = vmatpush.bf16.msra.mxu0 %v2003
    %2370 = vmatmul.bf16.gmra.mxu0 %v768
    %v2371 = vpop.f32.mrf.mxu0
    %v2372 = vadd.f32 %v2359, %v2371
    %v2373 = vpop.f32.mrf.mxu0
    %2374 = vdwg.mxu0
    %2375 = vmatpush.bf16.msra.mxu0 %v1868
    %2376 = vmatpush.bf16.msra.mxu0 %v1860
    %2377 = vmatpush.bf16.msra.mxu0 %v1852
    %2378 = vmatpush.bf16.msra.mxu0 %v1844
    %2379 = vmatpush.bf16.msra.mxu0 %v1836
    %2380 = vmatpush.bf16.msra.mxu0 %v1828
    %2381 = vmatpush.bf16.msra.mxu0 %v1820
    %2382 = vmatpush.bf16.msra.mxu0 %v1812
    %2383 = vmatmul.bf16.gmra.mxu0 %v765
    %v2384 = vpop.f32.mrf.mxu0
    %v2385 = vadd.f32 %v1028, %v2384
    %v2386 = vpop.f32.mrf.mxu0
    %2387 = vdwg.mxu0
    %2388 = vmatpush.bf16.msra.mxu0 %v1932
    %2389 = vmatpush.bf16.msra.mxu0 %v1924
    %2390 = vmatpush.bf16.msra.mxu0 %v1916
    %2391 = vmatpush.bf16.msra.mxu0 %v1908
    %2392 = vmatpush.bf16.msra.mxu0 %v1900
    %2393 = vmatpush.bf16.msra.mxu0 %v1892
    %2394 = vmatpush.bf16.msra.mxu0 %v1884
    %2395 = vmatpush.bf16.msra.mxu0 %v1876
    %2396 = vmatmul.bf16.gmra.mxu0 %v766
    %v2397 = vpop.f32.mrf.mxu0
    %v2398 = vadd.f32 %v2385, %v2397
    %v2399 = vpop.f32.mrf.mxu0
    %2400 = vdwg.mxu0
    %2401 = vmatpush.bf16.msra.mxu0 %v1996
    %2402 = vmatpush.bf16.msra.mxu0 %v1988
    %2403 = vmatpush.bf16.msra.mxu0 %v1980
    %2404 = vmatpush.bf16.msra.mxu0 %v1972
    %2405 = vmatpush.bf16.msra.mxu0 %v1964
    %2406 = vmatpush.bf16.msra.mxu0 %v1956
    %2407 = vmatpush.bf16.msra.mxu0 %v1948
    %2408 = vmatpush.bf16.msra.mxu0 %v1940
    %2409 = vmatmul.bf16.gmra.mxu0 %v767
    %v2410 = vpop.f32.mrf.mxu0
    %v2411 = vadd.f32 %v2398, %v2410
    %v2412 = vpop.f32.mrf.mxu0
    %2413 = vdwg.mxu0
    %2414 = vmatpush.bf16.msra.mxu0 %v2060
    %2415 = vmatpush.bf16.msra.mxu0 %v2052
    %2416 = vmatpush.bf16.msra.mxu0 %v2044
    %2417 = vmatpush.bf16.msra.mxu0 %v2036
    %2418 = vmatpush.bf16.msra.mxu0 %v2028
    %2419 = vmatpush.bf16.msra.mxu0 %v2020
    %2420 = vmatpush.bf16.msra.mxu0 %v2012
    %2421 = vmatpush.bf16.msra.mxu0 %v2004
    %2422 = vmatmul.bf16.gmra.mxu0 %v768
    %v2423 = vpop.f32.mrf.mxu0
    %v2424 = vadd.f32 %v2411, %v2423
    %v2425 = vpop.f32.mrf.mxu0
    %2426 = vdwg.mxu0
    %2427 = vmatpush.bf16.msra.mxu0 %v1869
    %2428 = vmatpush.bf16.msra.mxu0 %v1861
    %2429 = vmatpush.bf16.msra.mxu0 %v1853
    %2430 = vmatpush.bf16.msra.mxu0 %v1845
    %2431 = vmatpush.bf16.msra.mxu0 %v1837
    %2432 = vmatpush.bf16.msra.mxu0 %v1829
    %2433 = vmatpush.bf16.msra.mxu0 %v1821
    %2434 = vmatpush.bf16.msra.mxu0 %v1813
    %2435 = vmatmul.bf16.gmra.mxu0 %v765
    %v2436 = vpop.f32.mrf.mxu0
    %v2437 = vadd.f32 %v1029, %v2436
    %v2438 = vpop.f32.mrf.mxu0
    %2439 = vdwg.mxu0
    %2440 = vmatpush.bf16.msra.mxu0 %v1933
    %2441 = vmatpush.bf16.msra.mxu0 %v1925
    %2442 = vmatpush.bf16.msra.mxu0 %v1917
    %2443 = vmatpush.bf16.msra.mxu0 %v1909
    %2444 = vmatpush.bf16.msra.mxu0 %v1901
    %2445 = vmatpush.bf16.msra.mxu0 %v1893
    %2446 = vmatpush.bf16.msra.mxu0 %v1885
    %2447 = vmatpush.bf16.msra.mxu0 %v1877
    %2448 = vmatmul.bf16.gmra.mxu0 %v766
    %v2449 = vpop.f32.mrf.mxu0
    %v2450 = vadd.f32 %v2437, %v2449
    %v2451 = vpop.f32.mrf.mxu0
    %2452 = vdwg.mxu0
    %2453 = vmatpush.bf16.msra.mxu0 %v1997
    %2454 = vmatpush.bf16.msra.mxu0 %v1989
    %2455 = vmatpush.bf16.msra.mxu0 %v1981
    %2456 = vmatpush.bf16.msra.mxu0 %v1973
    %2457 = vmatpush.bf16.msra.mxu0 %v1965
    %2458 = vmatpush.bf16.msra.mxu0 %v1957
    %2459 = vmatpush.bf16.msra.mxu0 %v1949
    %2460 = vmatpush.bf16.msra.mxu0 %v1941
    %2461 = vmatmul.bf16.gmra.mxu0 %v767
    %v2462 = vpop.f32.mrf.mxu0
    %v2463 = vadd.f32 %v2450, %v2462
    %v2464 = vpop.f32.mrf.mxu0
    %2465 = vdwg.mxu0
    %2466 = vmatpush.bf16.msra.mxu0 %v2061
    %2467 = vmatpush.bf16.msra.mxu0 %v2053
    %2468 = vmatpush.bf16.msra.mxu0 %v2045
    %2469 = vmatpush.bf16.msra.mxu0 %v2037
    %2470 = vmatpush.bf16.msra.mxu0 %v2029
    %2471 = vmatpush.bf16.msra.mxu0 %v2021
    %2472 = vmatpush.bf16.msra.mxu0 %v2013
    %2473 = vmatpush.bf16.msra.mxu0 %v2005
    %2474 = vmatmul.bf16.gmra.mxu0 %v768
    %v2475 = vpop.f32.mrf.mxu0
    %v2476 = vadd.f32 %v2463, %v2475
    %v2477 = vpop.f32.mrf.mxu0
    %2478 = vdwg.mxu0
    %2479 = vmatpush.bf16.msra.mxu0 %v1870
    %2480 = vmatpush.bf16.msra.mxu0 %v1862
    %2481 = vmatpush.bf16.msra.mxu0 %v1854
    %2482 = vmatpush.bf16.msra.mxu0 %v1846
    %2483 = vmatpush.bf16.msra.mxu0 %v1838
    %2484 = vmatpush.bf16.msra.mxu0 %v1830
    %2485 = vmatpush.bf16.msra.mxu0 %v1822
    %2486 = vmatpush.bf16.msra.mxu0 %v1814
    %2487 = vmatmul.bf16.gmra.mxu0 %v765
    %v2488 = vpop.f32.mrf.mxu0
    %v2489 = vadd.f32 %v1030, %v2488
    %v2490 = vpop.f32.mrf.mxu0
    %2491 = vdwg.mxu0
    %2492 = vmatpush.bf16.msra.mxu0 %v1934
    %2493 = vmatpush.bf16.msra.mxu0 %v1926
    %2494 = vmatpush.bf16.msra.mxu0 %v1918
    %2495 = vmatpush.bf16.msra.mxu0 %v1910
    %2496 = vmatpush.bf16.msra.mxu0 %v1902
    %2497 = vmatpush.bf16.msra.mxu0 %v1894
    %2498 = vmatpush.bf16.msra.mxu0 %v1886
    %2499 = vmatpush.bf16.msra.mxu0 %v1878
    %2500 = vmatmul.bf16.gmra.mxu0 %v766
    %v2501 = vpop.f32.mrf.mxu0
    %v2502 = vadd.f32 %v2489, %v2501
    %v2503 = vpop.f32.mrf.mxu0
    %2504 = vdwg.mxu0
    %2505 = vmatpush.bf16.msra.mxu0 %v1998
    %2506 = vmatpush.bf16.msra.mxu0 %v1990
    %2507 = vmatpush.bf16.msra.mxu0 %v1982
    %2508 = vmatpush.bf16.msra.mxu0 %v1974
    %2509 = vmatpush.bf16.msra.mxu0 %v1966
    %2510 = vmatpush.bf16.msra.mxu0 %v1958
    %2511 = vmatpush.bf16.msra.mxu0 %v1950
    %2512 = vmatpush.bf16.msra.mxu0 %v1942
    %2513 = vmatmul.bf16.gmra.mxu0 %v767
    %v2514 = vpop.f32.mrf.mxu0
    %v2515 = vadd.f32 %v2502, %v2514
    %v2516 = vpop.f32.mrf.mxu0
    %2517 = vdwg.mxu0
    %2518 = vmatpush.bf16.msra.mxu0 %v2062
    %2519 = vmatpush.bf16.msra.mxu0 %v2054
    %2520 = vmatpush.bf16.msra.mxu0 %v2046
    %2521 = vmatpush.bf16.msra.mxu0 %v2038
    %2522 = vmatpush.bf16.msra.mxu0 %v2030
    %2523 = vmatpush.bf16.msra.mxu0 %v2022
    %2524 = vmatpush.bf16.msra.mxu0 %v2014
    %2525 = vmatpush.bf16.msra.mxu0 %v2006
    %2526 = vmatmul.bf16.gmra.mxu0 %v768
    %v2527 = vpop.f32.mrf.mxu0
    %v2528 = vadd.f32 %v2515, %v2527
    %v2529 = vpop.f32.mrf.mxu0
    %2530 = vdwg.mxu0
    %2531 = vmatpush.bf16.msra.mxu0 %v1871
    %2532 = vmatpush.bf16.msra.mxu0 %v1863
    %2533 = vmatpush.bf16.msra.mxu0 %v1855
    %2534 = vmatpush.bf16.msra.mxu0 %v1847
    %2535 = vmatpush.bf16.msra.mxu0 %v1839
    %2536 = vmatpush.bf16.msra.mxu0 %v1831
    %2537 = vmatpush.bf16.msra.mxu0 %v1823
    %2538 = vmatpush.bf16.msra.mxu0 %v1815
    %2539 = vmatmul.bf16.gmra.mxu0 %v765
    %v2540 = vpop.f32.mrf.mxu0
    %v2541 = vadd.f32 %v1031, %v2540
    %v2542 = vpop.f32.mrf.mxu0
    %2543 = vdwg.mxu0
    %2544 = vmatpush.bf16.msra.mxu0 %v1935
    %2545 = vmatpush.bf16.msra.mxu0 %v1927
    %2546 = vmatpush.bf16.msra.mxu0 %v1919
    %2547 = vmatpush.bf16.msra.mxu0 %v1911
    %2548 = vmatpush.bf16.msra.mxu0 %v1903
    %2549 = vmatpush.bf16.msra.mxu0 %v1895
    %2550 = vmatpush.bf16.msra.mxu0 %v1887
    %2551 = vmatpush.bf16.msra.mxu0 %v1879
    %2552 = vmatmul.bf16.gmra.mxu0 %v766
    %v2553 = vpop.f32.mrf.mxu0
    %v2554 = vadd.f32 %v2541, %v2553
    %v2555 = vpop.f32.mrf.mxu0
    %2556 = vdwg.mxu0
    %2557 = vmatpush.bf16.msra.mxu0 %v1999
    %2558 = vmatpush.bf16.msra.mxu0 %v1991
    %2559 = vmatpush.bf16.msra.mxu0 %v1983
    %2560 = vmatpush.bf16.msra.mxu0 %v1975
    %2561 = vmatpush.bf16.msra.mxu0 %v1967
    %2562 = vmatpush.bf16.msra.mxu0 %v1959
    %2563 = vmatpush.bf16.msra.mxu0 %v1951
    %2564 = vmatpush.bf16.msra.mxu0 %v1943
    %2565 = vmatmul.bf16.gmra.mxu0 %v767
    %v2566 = vpop.f32.mrf.mxu0
    %v2567 = vadd.f32 %v2554, %v2566
    %v2568 = vpop.f32.mrf.mxu0
    %2569 = vdwg.mxu0
    %2570 = vmatpush.bf16.msra.mxu0 %v2063
    %2571 = vmatpush.bf16.msra.mxu0 %v2055
    %2572 = vmatpush.bf16.msra.mxu0 %v2047
    %2573 = vmatpush.bf16.msra.mxu0 %v2039
    %2574 = vmatpush.bf16.msra.mxu0 %v2031
    %2575 = vmatpush.bf16.msra.mxu0 %v2023
    %2576 = vmatpush.bf16.msra.mxu0 %v2015
    %2577 = vmatpush.bf16.msra.mxu0 %v2007
    %2578 = vmatmul.bf16.gmra.mxu0 %v768
    %v2579 = vpop.f32.mrf.mxu0
    %v2580 = vadd.f32 %v2567, %v2579
    %v2581 = vpop.f32.mrf.mxu0
    %2582 = vdwg.mxu0
    %2583 = vmatpush.bf16.msra.mxu0 %v1872
    %2584 = vmatpush.bf16.msra.mxu0 %v1864
    %2585 = vmatpush.bf16.msra.mxu0 %v1856
    %2586 = vmatpush.bf16.msra.mxu0 %v1848
    %2587 = vmatpush.bf16.msra.mxu0 %v1840
    %2588 = vmatpush.bf16.msra.mxu0 %v1832
    %2589 = vmatpush.bf16.msra.mxu0 %v1824
    %2590 = vmatpush.bf16.msra.mxu0 %v1816
    %2591 = vmatmul.bf16.gmra.mxu0 %v765
    %v2592 = vpop.f32.mrf.mxu0
    %v2593 = vadd.f32 %v1032, %v2592
    %v2594 = vpop.f32.mrf.mxu0
    %2595 = vdwg.mxu0
    %2596 = vmatpush.bf16.msra.mxu0 %v1936
    %2597 = vmatpush.bf16.msra.mxu0 %v1928
    %2598 = vmatpush.bf16.msra.mxu0 %v1920
    %2599 = vmatpush.bf16.msra.mxu0 %v1912
    %2600 = vmatpush.bf16.msra.mxu0 %v1904
    %2601 = vmatpush.bf16.msra.mxu0 %v1896
    %2602 = vmatpush.bf16.msra.mxu0 %v1888
    %2603 = vmatpush.bf16.msra.mxu0 %v1880
    %2604 = vmatmul.bf16.gmra.mxu0 %v766
    %v2605 = vpop.f32.mrf.mxu0
    %v2606 = vadd.f32 %v2593, %v2605
    %v2607 = vpop.f32.mrf.mxu0
    %2608 = vdwg.mxu0
    %2609 = vmatpush.bf16.msra.mxu0 %v2000
    %2610 = vmatpush.bf16.msra.mxu0 %v1992
    %2611 = vmatpush.bf16.msra.mxu0 %v1984
    %2612 = vmatpush.bf16.msra.mxu0 %v1976
    %2613 = vmatpush.bf16.msra.mxu0 %v1968
    %2614 = vmatpush.bf16.msra.mxu0 %v1960
    %2615 = vmatpush.bf16.msra.mxu0 %v1952
    %2616 = vmatpush.bf16.msra.mxu0 %v1944
    %2617 = vmatmul.bf16.gmra.mxu0 %v767
    %v2618 = vpop.f32.mrf.mxu0
    %v2619 = vadd.f32 %v2606, %v2618
    %v2620 = vpop.f32.mrf.mxu0
    %2621 = vdwg.mxu0
    %2622 = vmatpush.bf16.msra.mxu0 %v2064
    %2623 = vmatpush.bf16.msra.mxu0 %v2056
    %2624 = vmatpush.bf16.msra.mxu0 %v2048
    %2625 = vmatpush.bf16.msra.mxu0 %v2040
    %2626 = vmatpush.bf16.msra.mxu0 %v2032
    %2627 = vmatpush.bf16.msra.mxu0 %v2024
    %2628 = vmatpush.bf16.msra.mxu0 %v2016
    %2629 = vmatpush.bf16.msra.mxu0 %v2008
    %2630 = vmatmul.bf16.gmra.mxu0 %v768
    %v2631 = vpop.f32.mrf.mxu0
    %v2632 = vadd.f32 %v2619, %v2631
    %v2633 = vpop.f32.mrf.mxu0
    %2634 = vdwg.mxu0
    %2635 = vmatpush.bf16.msra.mxu0 %v1873
    %2636 = vmatpush.bf16.msra.mxu0 %v1865
    %2637 = vmatpush.bf16.msra.mxu0 %v1857
    %2638 = vmatpush.bf16.msra.mxu0 %v1849
    %2639 = vmatpush.bf16.msra.mxu0 %v1841
    %2640 = vmatpush.bf16.msra.mxu0 %v1833
    %2641 = vmatpush.bf16.msra.mxu0 %v1825
    %2642 = vmatpush.bf16.msra.mxu0 %v1817
    %2643 = vmatmul.bf16.gmra.mxu0 %v765
    %v2644 = vpop.f32.mrf.mxu0
    %v2645 = vadd.f32 %v1033, %v2644
    %v2646 = vpop.f32.mrf.mxu0
    %2647 = vdwg.mxu0
    %2648 = vmatpush.bf16.msra.mxu0 %v1937
    %2649 = vmatpush.bf16.msra.mxu0 %v1929
    %2650 = vmatpush.bf16.msra.mxu0 %v1921
    %2651 = vmatpush.bf16.msra.mxu0 %v1913
    %2652 = vmatpush.bf16.msra.mxu0 %v1905
    %2653 = vmatpush.bf16.msra.mxu0 %v1897
    %2654 = vmatpush.bf16.msra.mxu0 %v1889
    %2655 = vmatpush.bf16.msra.mxu0 %v1881
    %2656 = vmatmul.bf16.gmra.mxu0 %v766
    %v2657 = vpop.f32.mrf.mxu0
    %v2658 = vadd.f32 %v2645, %v2657
    %v2659 = vpop.f32.mrf.mxu0
    %2660 = vdwg.mxu0
    %2661 = vmatpush.bf16.msra.mxu0 %v2001
    %2662 = vmatpush.bf16.msra.mxu0 %v1993
    %2663 = vmatpush.bf16.msra.mxu0 %v1985
    %2664 = vmatpush.bf16.msra.mxu0 %v1977
    %2665 = vmatpush.bf16.msra.mxu0 %v1969
    %2666 = vmatpush.bf16.msra.mxu0 %v1961
    %2667 = vmatpush.bf16.msra.mxu0 %v1953
    %2668 = vmatpush.bf16.msra.mxu0 %v1945
    %2669 = vmatmul.bf16.gmra.mxu0 %v767
    %v2670 = vpop.f32.mrf.mxu0
    %v2671 = vadd.f32 %v2658, %v2670
    %v2672 = vpop.f32.mrf.mxu0
    %2673 = vdwg.mxu0
    %2674 = vmatpush.bf16.msra.mxu0 %v2065
    %2675 = vmatpush.bf16.msra.mxu0 %v2057
    %2676 = vmatpush.bf16.msra.mxu0 %v2049
    %2677 = vmatpush.bf16.msra.mxu0 %v2041
    %2678 = vmatpush.bf16.msra.mxu0 %v2033
    %2679 = vmatpush.bf16.msra.mxu0 %v2025
    %2680 = vmatpush.bf16.msra.mxu0 %v2017
    %2681 = vmatpush.bf16.msra.mxu0 %v2009
    %2682 = vmatmul.bf16.gmra.mxu0 %v768
    %v2683 = vpop.f32.mrf.mxu0
    %v2684 = vadd.f32 %v2671, %v2683
    %v2685 = vpop.f32.mrf.mxu0
    %2686 = vdwg.mxu0
    %2687 = vmatpush.bf16.msra.mxu0 %v1874
    %2688 = vmatpush.bf16.msra.mxu0 %v1866
    %2689 = vmatpush.bf16.msra.mxu0 %v1858
    %2690 = vmatpush.bf16.msra.mxu0 %v1850
    %2691 = vmatpush.bf16.msra.mxu0 %v1842
    %2692 = vmatpush.bf16.msra.mxu0 %v1834
    %2693 = vmatpush.bf16.msra.mxu0 %v1826
    %2694 = vmatpush.bf16.msra.mxu0 %v1818
    %2695 = vmatmul.bf16.gmra.mxu0 %v765
    %v2696 = vpop.f32.mrf.mxu0
    %v2697 = vadd.f32 %v1034, %v2696
    %v2698 = vpop.f32.mrf.mxu0
    %2699 = vdwg.mxu0
    %2700 = vmatpush.bf16.msra.mxu0 %v1938
    %2701 = vmatpush.bf16.msra.mxu0 %v1930
    %2702 = vmatpush.bf16.msra.mxu0 %v1922
    %2703 = vmatpush.bf16.msra.mxu0 %v1914
    %2704 = vmatpush.bf16.msra.mxu0 %v1906
    %2705 = vmatpush.bf16.msra.mxu0 %v1898
    %2706 = vmatpush.bf16.msra.mxu0 %v1890
    %2707 = vmatpush.bf16.msra.mxu0 %v1882
    %2708 = vmatmul.bf16.gmra.mxu0 %v766
    %v2709 = vpop.f32.mrf.mxu0
    %v2710 = vadd.f32 %v2697, %v2709
    %v2711 = vpop.f32.mrf.mxu0
    %2712 = vdwg.mxu0
    %2713 = vmatpush.bf16.msra.mxu0 %v2002
    %2714 = vmatpush.bf16.msra.mxu0 %v1994
    %2715 = vmatpush.bf16.msra.mxu0 %v1986
    %2716 = vmatpush.bf16.msra.mxu0 %v1978
    %2717 = vmatpush.bf16.msra.mxu0 %v1970
    %2718 = vmatpush.bf16.msra.mxu0 %v1962
    %2719 = vmatpush.bf16.msra.mxu0 %v1954
    %2720 = vmatpush.bf16.msra.mxu0 %v1946
    %2721 = vmatmul.bf16.gmra.mxu0 %v767
    %v2722 = vpop.f32.mrf.mxu0
    %v2723 = vadd.f32 %v2710, %v2722
    %v2724 = vpop.f32.mrf.mxu0
    %2725 = vdwg.mxu0
    %2726 = vmatpush.bf16.msra.mxu0 %v2066
    %2727 = vmatpush.bf16.msra.mxu0 %v2058
    %2728 = vmatpush.bf16.msra.mxu0 %v2050
    %2729 = vmatpush.bf16.msra.mxu0 %v2042
    %2730 = vmatpush.bf16.msra.mxu0 %v2034
    %2731 = vmatpush.bf16.msra.mxu0 %v2026
    %2732 = vmatpush.bf16.msra.mxu0 %v2018
    %2733 = vmatpush.bf16.msra.mxu0 %v2010
    %2734 = vmatmul.bf16.gmra.mxu0 %v768
    %v2735 = vpop.f32.mrf.mxu0
    %v2736 = vadd.f32 %v2723, %v2735
    %v2737 = vpop.f32.mrf.mxu0
    %2738 = vdwg.mxu0
    %v2739 = vmax.f32 %v2372, 0.0
    %v2740 = vmax.f32 %v2424, 0.0
    %v2741 = vmax.f32 %v2476, 0.0
    %v2742 = vmax.f32 %v2528, 0.0
    %v2743 = vmax.f32 %v2580, 0.0
    %v2744 = vmax.f32 %v2632, 0.0
    %v2745 = vmax.f32 %v2684, 0.0
    %v2746 = vmax.f32 %v2736, 0.0
    %v2747 = vpack.c.bf16 %v2739, %v2739
    %v2748 = vpack.c.bf16 %v2740, %v2740
    %v2749 = vpack.c.bf16 %v2741, %v2741
    %v2750 = vpack.c.bf16 %v2742, %v2742
    %v2751 = vpack.c.bf16 %v2743, %v2743
    %v2752 = vpack.c.bf16 %v2744, %v2744
    %v2753 = vpack.c.bf16 %v2745, %v2745
    %v2754 = vpack.c.bf16 %v2746, %v2746
    %v2755 = vld [vmem:[#allocation11] sm:$0xff]
    %v2756 = vld [vmem:[#allocation11 + $0x8] sm:$0xff]
    %v2757 = vld [vmem:[#allocation11 + $0x10] sm:$0xff]
    %v2758 = vld [vmem:[#allocation11 + $0x18] sm:$0xff]
    %v2759 = vld [vmem:[#allocation11 + $0x20] sm:$0xff]
    %v2760 = vld [vmem:[#allocation11 + $0x28] sm:$0xff]
    %v2761 = vld [vmem:[#allocation11 + $0x30] sm:$0xff]
    %v2762 = vld [vmem:[#allocation11 + $0x38] sm:$0xff]
    %v2763 = vld [vmem:[#allocation11 + $0x40] sm:$0xff]
    %v2764 = vld [vmem:[#allocation11 + $0x48] sm:$0xff]
    %v2765 = vld [vmem:[#allocation11 + $0x50] sm:$0xff]
    %v2766 = vld [vmem:[#allocation11 + $0x58] sm:$0xff]
    %v2767 = vld [vmem:[#allocation11 + $0x60] sm:$0xff]
    %v2768 = vld [vmem:[#allocation11 + $0x68] sm:$0xff]
    %v2769 = vld [vmem:[#allocation11 + $0x70] sm:$0xff]
    %v2770 = vld [vmem:[#allocation11 + $0x78] sm:$0xff]
    %v2771 = vld [vmem:[#allocation11 + $0x80] sm:$0xff]
    %v2772 = vld [vmem:[#allocation11 + $0x88] sm:$0xff]
    %v2773 = vld [vmem:[#allocation11 + $0x90] sm:$0xff]
    %v2774 = vld [vmem:[#allocation11 + $0x98] sm:$0xff]
    %v2775 = vld [vmem:[#allocation11 + $0xa0] sm:$0xff]
    %v2776 = vld [vmem:[#allocation11 + $0xa8] sm:$0xff]
    %v2777 = vld [vmem:[#allocation11 + $0xb0] sm:$0xff]
    %v2778 = vld [vmem:[#allocation11 + $0xb8] sm:$0xff]
    %v2779 = vld [vmem:[#allocation11 + $0xc0] sm:$0xff]
    %v2780 = vld [vmem:[#allocation11 + $0xc8] sm:$0xff]
    %v2781 = vld [vmem:[#allocation11 + $0xd0] sm:$0xff]
    %v2782 = vld [vmem:[#allocation11 + $0xd8] sm:$0xff]
    %v2783 = vld [vmem:[#allocation11 + $0xe0] sm:$0xff]
    %v2784 = vld [vmem:[#allocation11 + $0xe8] sm:$0xff]
    %v2785 = vld [vmem:[#allocation11 + $0xf0] sm:$0xff]
    %v2786 = vld [vmem:[#allocation11 + $0xf8] sm:$0xff]
    %v2787 = vld [vmem:[#allocation11 + $0x100] sm:$0xff]
    %v2788 = vld [vmem:[#allocation11 + $0x108] sm:$0xff]
    %v2789 = vld [vmem:[#allocation11 + $0x110] sm:$0xff]
    %v2790 = vld [vmem:[#allocation11 + $0x118] sm:$0xff]
    %v2791 = vld [vmem:[#allocation11 + $0x120] sm:$0xff]
    %v2792 = vld [vmem:[#allocation11 + $0x128] sm:$0xff]
    %v2793 = vld [vmem:[#allocation11 + $0x130] sm:$0xff]
    %v2794 = vld [vmem:[#allocation11 + $0x138] sm:$0xff]
    %v2795 = vld [vmem:[#allocation11 + $0x140] sm:$0xff]
    %v2796 = vld [vmem:[#allocation11 + $0x148] sm:$0xff]
    %v2797 = vld [vmem:[#allocation11 + $0x150] sm:$0xff]
    %v2798 = vld [vmem:[#allocation11 + $0x158] sm:$0xff]
    %v2799 = vld [vmem:[#allocation11 + $0x160] sm:$0xff]
    %v2800 = vld [vmem:[#allocation11 + $0x168] sm:$0xff]
    %v2801 = vld [vmem:[#allocation11 + $0x170] sm:$0xff]
    %v2802 = vld [vmem:[#allocation11 + $0x178] sm:$0xff]
    %v2803 = vld [vmem:[#allocation11 + $0x180] sm:$0xff]
    %v2804 = vld [vmem:[#allocation11 + $0x188] sm:$0xff]
    %v2805 = vld [vmem:[#allocation11 + $0x190] sm:$0xff]
    %v2806 = vld [vmem:[#allocation11 + $0x198] sm:$0xff]
    %v2807 = vld [vmem:[#allocation11 + $0x1a0] sm:$0xff]
    %v2808 = vld [vmem:[#allocation11 + $0x1a8] sm:$0xff]
    %v2809 = vld [vmem:[#allocation11 + $0x1b0] sm:$0xff]
    %v2810 = vld [vmem:[#allocation11 + $0x1b8] sm:$0xff]
    %v2811 = vld [vmem:[#allocation11 + $0x1c0] sm:$0xff]
    %v2812 = vld [vmem:[#allocation11 + $0x1c8] sm:$0xff]
    %v2813 = vld [vmem:[#allocation11 + $0x1d0] sm:$0xff]
    %v2814 = vld [vmem:[#allocation11 + $0x1d8] sm:$0xff]
    %v2815 = vld [vmem:[#allocation11 + $0x1e0] sm:$0xff]
    %v2816 = vld [vmem:[#allocation11 + $0x1e8] sm:$0xff]
    %v2817 = vld [vmem:[#allocation11 + $0x1f0] sm:$0xff]
    %v2818 = vld [vmem:[#allocation11 + $0x1f8] sm:$0xff]
    %v2819 = vld [vmem:[#allocation11 + $0x200] sm:$0xff]
    %v2820 = vld [vmem:[#allocation11 + $0x208] sm:$0xff]
    %v2821 = vld [vmem:[#allocation11 + $0x210] sm:$0xff]
    %v2822 = vld [vmem:[#allocation11 + $0x218] sm:$0xff]
    %v2823 = vld [vmem:[#allocation11 + $0x220] sm:$0xff]
    %v2824 = vld [vmem:[#allocation11 + $0x228] sm:$0xff]
    %v2825 = vld [vmem:[#allocation11 + $0x230] sm:$0xff]
    %v2826 = vld [vmem:[#allocation11 + $0x238] sm:$0xff]
    %v2827 = vld [vmem:[#allocation11 + $0x240] sm:$0xff]
    %v2828 = vld [vmem:[#allocation11 + $0x248] sm:$0xff]
    %v2829 = vld [vmem:[#allocation11 + $0x250] sm:$0xff]
    %v2830 = vld [vmem:[#allocation11 + $0x258] sm:$0xff]
    %v2831 = vld [vmem:[#allocation11 + $0x260] sm:$0xff]
    %v2832 = vld [vmem:[#allocation11 + $0x268] sm:$0xff]
    %v2833 = vld [vmem:[#allocation11 + $0x270] sm:$0xff]
    %v2834 = vld [vmem:[#allocation11 + $0x278] sm:$0xff]
    %v2835 = vld [vmem:[#allocation11 + $0x280] sm:$0xff]
    %v2836 = vld [vmem:[#allocation11 + $0x288] sm:$0xff]
    %v2837 = vld [vmem:[#allocation11 + $0x290] sm:$0xff]
    %v2838 = vld [vmem:[#allocation11 + $0x298] sm:$0xff]
    %v2839 = vld [vmem:[#allocation11 + $0x2a0] sm:$0xff]
    %v2840 = vld [vmem:[#allocation11 + $0x2a8] sm:$0xff]
    %v2841 = vld [vmem:[#allocation11 + $0x2b0] sm:$0xff]
    %v2842 = vld [vmem:[#allocation11 + $0x2b8] sm:$0xff]
    %v2843 = vld [vmem:[#allocation11 + $0x2c0] sm:$0xff]
    %v2844 = vld [vmem:[#allocation11 + $0x2c8] sm:$0xff]
    %v2845 = vld [vmem:[#allocation11 + $0x2d0] sm:$0xff]
    %v2846 = vld [vmem:[#allocation11 + $0x2d8] sm:$0xff]
    %v2847 = vld [vmem:[#allocation11 + $0x2e0] sm:$0xff]
    %v2848 = vld [vmem:[#allocation11 + $0x2e8] sm:$0xff]
    %v2849 = vld [vmem:[#allocation11 + $0x2f0] sm:$0xff]
    %v2850 = vld [vmem:[#allocation11 + $0x2f8] sm:$0xff]
    %v2851 = vld [vmem:[#allocation11 + $0x300] sm:$0xff]
    %v2852 = vld [vmem:[#allocation11 + $0x308] sm:$0xff]
    %v2853 = vld [vmem:[#allocation11 + $0x310] sm:$0xff]
    %v2854 = vld [vmem:[#allocation11 + $0x318] sm:$0xff]
    %v2855 = vld [vmem:[#allocation11 + $0x320] sm:$0xff]
    %v2856 = vld [vmem:[#allocation11 + $0x328] sm:$0xff]
    %v2857 = vld [vmem:[#allocation11 + $0x330] sm:$0xff]
    %v2858 = vld [vmem:[#allocation11 + $0x338] sm:$0xff]
    %v2859 = vld [vmem:[#allocation11 + $0x340] sm:$0xff]
    %v2860 = vld [vmem:[#allocation11 + $0x348] sm:$0xff]
    %v2861 = vld [vmem:[#allocation11 + $0x350] sm:$0xff]
    %v2862 = vld [vmem:[#allocation11 + $0x358] sm:$0xff]
    %v2863 = vld [vmem:[#allocation11 + $0x360] sm:$0xff]
    %v2864 = vld [vmem:[#allocation11 + $0x368] sm:$0xff]
    %v2865 = vld [vmem:[#allocation11 + $0x370] sm:$0xff]
    %v2866 = vld [vmem:[#allocation11 + $0x378] sm:$0xff]
    %v2867 = vld [vmem:[#allocation11 + $0x380] sm:$0xff]
    %v2868 = vld [vmem:[#allocation11 + $0x388] sm:$0xff]
    %v2869 = vld [vmem:[#allocation11 + $0x390] sm:$0xff]
    %v2870 = vld [vmem:[#allocation11 + $0x398] sm:$0xff]
    %v2871 = vld [vmem:[#allocation11 + $0x3a0] sm:$0xff]
    %v2872 = vld [vmem:[#allocation11 + $0x3a8] sm:$0xff]
    %v2873 = vld [vmem:[#allocation11 + $0x3b0] sm:$0xff]
    %v2874 = vld [vmem:[#allocation11 + $0x3b8] sm:$0xff]
    %v2875 = vld [vmem:[#allocation11 + $0x3c0] sm:$0xff]
    %v2876 = vld [vmem:[#allocation11 + $0x3c8] sm:$0xff]
    %v2877 = vld [vmem:[#allocation11 + $0x3d0] sm:$0xff]
    %v2878 = vld [vmem:[#allocation11 + $0x3d8] sm:$0xff]
    %v2879 = vld [vmem:[#allocation11 + $0x3e0] sm:$0xff]
    %v2880 = vld [vmem:[#allocation11 + $0x3e8] sm:$0xff]
    %v2881 = vld [vmem:[#allocation11 + $0x3f0] sm:$0xff]
    %v2882 = vld [vmem:[#allocation11 + $0x3f8] sm:$0xff]
    %v2883 = vld [vmem:[%s9] sm:$0x3]
    %v2885 = vperm.slane %v2883, 0
    %v2886 = vperm.slane %v2883, 1
    %v3017 = vunpack.c.l.b16 %v2755
    %v3018 = vunpack.c.h.b16 %v2755
    %v3019 = vunpack.c.l.b16 %v2756
    %v3020 = vunpack.c.h.b16 %v2756
    %v3021 = vunpack.c.l.b16 %v2757
    %v3022 = vunpack.c.h.b16 %v2757
    %v3023 = vunpack.c.l.b16 %v2758
    %v3024 = vunpack.c.h.b16 %v2758
    %v3025 = vunpack.c.l.b16 %v2759
    %v3026 = vunpack.c.h.b16 %v2759
    %v3027 = vunpack.c.l.b16 %v2760
    %v3028 = vunpack.c.h.b16 %v2760
    %v3029 = vunpack.c.l.b16 %v2761
    %v3030 = vunpack.c.h.b16 %v2761
    %v3031 = vunpack.c.l.b16 %v2762
    %v3032 = vunpack.c.h.b16 %v2762
    %v3033 = vunpack.c.l.b16 %v2763
    %v3034 = vunpack.c.h.b16 %v2763
    %v3035 = vunpack.c.l.b16 %v2764
    %v3036 = vunpack.c.h.b16 %v2764
    %v3037 = vunpack.c.l.b16 %v2765
    %v3038 = vunpack.c.h.b16 %v2765
    %v3039 = vunpack.c.l.b16 %v2766
    %v3040 = vunpack.c.h.b16 %v2766
    %v3041 = vunpack.c.l.b16 %v2767
    %v3042 = vunpack.c.h.b16 %v2767
    %v3043 = vunpack.c.l.b16 %v2768
    %v3044 = vunpack.c.h.b16 %v2768
    %v3045 = vunpack.c.l.b16 %v2769
    %v3046 = vunpack.c.h.b16 %v2769
    %v3047 = vunpack.c.l.b16 %v2770
    %v3048 = vunpack.c.h.b16 %v2770
    %v3049 = vunpack.c.l.b16 %v2771
    %v3050 = vunpack.c.h.b16 %v2771
    %v3051 = vunpack.c.l.b16 %v2772
    %v3052 = vunpack.c.h.b16 %v2772
    %v3053 = vunpack.c.l.b16 %v2773
    %v3054 = vunpack.c.h.b16 %v2773
    %v3055 = vunpack.c.l.b16 %v2774
    %v3056 = vunpack.c.h.b16 %v2774
    %v3057 = vunpack.c.l.b16 %v2775
    %v3058 = vunpack.c.h.b16 %v2775
    %v3059 = vunpack.c.l.b16 %v2776
    %v3060 = vunpack.c.h.b16 %v2776
    %v3061 = vunpack.c.l.b16 %v2777
    %v3062 = vunpack.c.h.b16 %v2777
    %v3063 = vunpack.c.l.b16 %v2778
    %v3064 = vunpack.c.h.b16 %v2778
    %v3065 = vunpack.c.l.b16 %v2779
    %v3066 = vunpack.c.h.b16 %v2779
    %v3067 = vunpack.c.l.b16 %v2780
    %v3068 = vunpack.c.h.b16 %v2780
    %v3069 = vunpack.c.l.b16 %v2781
    %v3070 = vunpack.c.h.b16 %v2781
    %v3071 = vunpack.c.l.b16 %v2782
    %v3072 = vunpack.c.h.b16 %v2782
    %v3073 = vunpack.c.l.b16 %v2783
    %v3074 = vunpack.c.h.b16 %v2783
    %v3075 = vunpack.c.l.b16 %v2784
    %v3076 = vunpack.c.h.b16 %v2784
    %v3077 = vunpack.c.l.b16 %v2785
    %v3078 = vunpack.c.h.b16 %v2785
    %v3079 = vunpack.c.l.b16 %v2786
    %v3080 = vunpack.c.h.b16 %v2786
    %v3081 = vunpack.c.l.b16 %v2787
    %v3082 = vunpack.c.h.b16 %v2787
    %v3083 = vunpack.c.l.b16 %v2788
    %v3084 = vunpack.c.h.b16 %v2788
    %v3085 = vunpack.c.l.b16 %v2789
    %v3086 = vunpack.c.h.b16 %v2789
    %v3087 = vunpack.c.l.b16 %v2790
    %v3088 = vunpack.c.h.b16 %v2790
    %v3089 = vunpack.c.l.b16 %v2791
    %v3090 = vunpack.c.h.b16 %v2791
    %v3091 = vunpack.c.l.b16 %v2792
    %v3092 = vunpack.c.h.b16 %v2792
    %v3093 = vunpack.c.l.b16 %v2793
    %v3094 = vunpack.c.h.b16 %v2793
    %v3095 = vunpack.c.l.b16 %v2794
    %v3096 = vunpack.c.h.b16 %v2794
    %v3097 = vunpack.c.l.b16 %v2795
    %v3098 = vunpack.c.h.b16 %v2795
    %v3099 = vunpack.c.l.b16 %v2796
    %v3100 = vunpack.c.h.b16 %v2796
    %v3101 = vunpack.c.l.b16 %v2797
    %v3102 = vunpack.c.h.b16 %v2797
    %v3103 = vunpack.c.l.b16 %v2798
    %v3104 = vunpack.c.h.b16 %v2798
    %v3105 = vunpack.c.l.b16 %v2799
    %v3106 = vunpack.c.h.b16 %v2799
    %v3107 = vunpack.c.l.b16 %v2800
    %v3108 = vunpack.c.h.b16 %v2800
    %v3109 = vunpack.c.l.b16 %v2801
    %v3110 = vunpack.c.h.b16 %v2801
    %v3111 = vunpack.c.l.b16 %v2802
    %v3112 = vunpack.c.h.b16 %v2802
    %v3113 = vunpack.c.l.b16 %v2803
    %v3114 = vunpack.c.h.b16 %v2803
    %v3115 = vunpack.c.l.b16 %v2804
    %v3116 = vunpack.c.h.b16 %v2804
    %v3117 = vunpack.c.l.b16 %v2805
    %v3118 = vunpack.c.h.b16 %v2805
    %v3119 = vunpack.c.l.b16 %v2806
    %v3120 = vunpack.c.h.b16 %v2806
    %v3121 = vunpack.c.l.b16 %v2807
    %v3122 = vunpack.c.h.b16 %v2807
    %v3123 = vunpack.c.l.b16 %v2808
    %v3124 = vunpack.c.h.b16 %v2808
    %v3125 = vunpack.c.l.b16 %v2809
    %v3126 = vunpack.c.h.b16 %v2809
    %v3127 = vunpack.c.l.b16 %v2810
    %v3128 = vunpack.c.h.b16 %v2810
    %v3129 = vunpack.c.l.b16 %v2811
    %v3130 = vunpack.c.h.b16 %v2811
    %v3131 = vunpack.c.l.b16 %v2812
    %v3132 = vunpack.c.h.b16 %v2812
    %v3133 = vunpack.c.l.b16 %v2813
    %v3134 = vunpack.c.h.b16 %v2813
    %v3135 = vunpack.c.l.b16 %v2814
    %v3136 = vunpack.c.h.b16 %v2814
    %v3137 = vunpack.c.l.b16 %v2815
    %v3138 = vunpack.c.h.b16 %v2815
    %v3139 = vunpack.c.l.b16 %v2816
    %v3140 = vunpack.c.h.b16 %v2816
    %v3141 = vunpack.c.l.b16 %v2817
    %v3142 = vunpack.c.h.b16 %v2817
    %v3143 = vunpack.c.l.b16 %v2818
    %v3144 = vunpack.c.h.b16 %v2818
    %v3145 = vunpack.c.l.b16 %v2819
    %v3146 = vunpack.c.h.b16 %v2819
    %v3147 = vunpack.c.l.b16 %v2820
    %v3148 = vunpack.c.h.b16 %v2820
    %v3149 = vunpack.c.l.b16 %v2821
    %v3150 = vunpack.c.h.b16 %v2821
    %v3151 = vunpack.c.l.b16 %v2822
    %v3152 = vunpack.c.h.b16 %v2822
    %v3153 = vunpack.c.l.b16 %v2823
    %v3154 = vunpack.c.h.b16 %v2823
    %v3155 = vunpack.c.l.b16 %v2824
    %v3156 = vunpack.c.h.b16 %v2824
    %v3157 = vunpack.c.l.b16 %v2825
    %v3158 = vunpack.c.h.b16 %v2825
    %v3159 = vunpack.c.l.b16 %v2826
    %v3160 = vunpack.c.h.b16 %v2826
    %v3161 = vunpack.c.l.b16 %v2827
    %v3162 = vunpack.c.h.b16 %v2827
    %v3163 = vunpack.c.l.b16 %v2828
    %v3164 = vunpack.c.h.b16 %v2828
    %v3165 = vunpack.c.l.b16 %v2829
    %v3166 = vunpack.c.h.b16 %v2829
    %v3167 = vunpack.c.l.b16 %v2830
    %v3168 = vunpack.c.h.b16 %v2830
    %v3169 = vunpack.c.l.b16 %v2831
    %v3170 = vunpack.c.h.b16 %v2831
    %v3171 = vunpack.c.l.b16 %v2832
    %v3172 = vunpack.c.h.b16 %v2832
    %v3173 = vunpack.c.l.b16 %v2833
    %v3174 = vunpack.c.h.b16 %v2833
    %v3175 = vunpack.c.l.b16 %v2834
    %v3176 = vunpack.c.h.b16 %v2834
    %v3177 = vunpack.c.l.b16 %v2835
    %v3178 = vunpack.c.h.b16 %v2835
    %v3179 = vunpack.c.l.b16 %v2836
    %v3180 = vunpack.c.h.b16 %v2836
    %v3181 = vunpack.c.l.b16 %v2837
    %v3182 = vunpack.c.h.b16 %v2837
    %v3183 = vunpack.c.l.b16 %v2838
    %v3184 = vunpack.c.h.b16 %v2838
    %v3185 = vunpack.c.l.b16 %v2839
    %v3186 = vunpack.c.h.b16 %v2839
    %v3187 = vunpack.c.l.b16 %v2840
    %v3188 = vunpack.c.h.b16 %v2840
    %v3189 = vunpack.c.l.b16 %v2841
    %v3190 = vunpack.c.h.b16 %v2841
    %v3191 = vunpack.c.l.b16 %v2842
    %v3192 = vunpack.c.h.b16 %v2842
    %v3193 = vunpack.c.l.b16 %v2843
    %v3194 = vunpack.c.h.b16 %v2843
    %v3195 = vunpack.c.l.b16 %v2844
    %v3196 = vunpack.c.h.b16 %v2844
    %v3197 = vunpack.c.l.b16 %v2845
    %v3198 = vunpack.c.h.b16 %v2845
    %v3199 = vunpack.c.l.b16 %v2846
    %v3200 = vunpack.c.h.b16 %v2846
    %v3201 = vunpack.c.l.b16 %v2847
    %v3202 = vunpack.c.h.b16 %v2847
    %v3203 = vunpack.c.l.b16 %v2848
    %v3204 = vunpack.c.h.b16 %v2848
    %v3205 = vunpack.c.l.b16 %v2849
    %v3206 = vunpack.c.h.b16 %v2849
    %v3207 = vunpack.c.l.b16 %v2850
    %v3208 = vunpack.c.h.b16 %v2850
    %v3209 = vunpack.c.l.b16 %v2851
    %v3210 = vunpack.c.h.b16 %v2851
    %v3211 = vunpack.c.l.b16 %v2852
    %v3212 = vunpack.c.h.b16 %v2852
    %v3213 = vunpack.c.l.b16 %v2853
    %v3214 = vunpack.c.h.b16 %v2853
    %v3215 = vunpack.c.l.b16 %v2854
    %v3216 = vunpack.c.h.b16 %v2854
    %v3217 = vunpack.c.l.b16 %v2855
    %v3218 = vunpack.c.h.b16 %v2855
    %v3219 = vunpack.c.l.b16 %v2856
    %v3220 = vunpack.c.h.b16 %v2856
    %v3221 = vunpack.c.l.b16 %v2857
    %v3222 = vunpack.c.h.b16 %v2857
    %v3223 = vunpack.c.l.b16 %v2858
    %v3224 = vunpack.c.h.b16 %v2858
    %v3225 = vunpack.c.l.b16 %v2859
    %v3226 = vunpack.c.h.b16 %v2859
    %v3227 = vunpack.c.l.b16 %v2860
    %v3228 = vunpack.c.h.b16 %v2860
    %v3229 = vunpack.c.l.b16 %v2861
    %v3230 = vunpack.c.h.b16 %v2861
    %v3231 = vunpack.c.l.b16 %v2862
    %v3232 = vunpack.c.h.b16 %v2862
    %v3233 = vunpack.c.l.b16 %v2863
    %v3234 = vunpack.c.h.b16 %v2863
    %v3235 = vunpack.c.l.b16 %v2864
    %v3236 = vunpack.c.h.b16 %v2864
    %v3237 = vunpack.c.l.b16 %v2865
    %v3238 = vunpack.c.h.b16 %v2865
    %v3239 = vunpack.c.l.b16 %v2866
    %v3240 = vunpack.c.h.b16 %v2866
    %v3241 = vunpack.c.l.b16 %v2867
    %v3242 = vunpack.c.h.b16 %v2867
    %v3243 = vunpack.c.l.b16 %v2868
    %v3244 = vunpack.c.h.b16 %v2868
    %v3245 = vunpack.c.l.b16 %v2869
    %v3246 = vunpack.c.h.b16 %v2869
    %v3247 = vunpack.c.l.b16 %v2870
    %v3248 = vunpack.c.h.b16 %v2870
    %v3249 = vunpack.c.l.b16 %v2871
    %v3250 = vunpack.c.h.b16 %v2871
    %v3251 = vunpack.c.l.b16 %v2872
    %v3252 = vunpack.c.h.b16 %v2872
    %v3253 = vunpack.c.l.b16 %v2873
    %v3254 = vunpack.c.h.b16 %v2873
    %v3255 = vunpack.c.l.b16 %v2874
    %v3256 = vunpack.c.h.b16 %v2874
    %v3257 = vunpack.c.l.b16 %v2875
    %v3258 = vunpack.c.h.b16 %v2875
    %v3259 = vunpack.c.l.b16 %v2876
    %v3260 = vunpack.c.h.b16 %v2876
    %v3261 = vunpack.c.l.b16 %v2877
    %v3262 = vunpack.c.h.b16 %v2877
    %v3263 = vunpack.c.l.b16 %v2878
    %v3264 = vunpack.c.h.b16 %v2878
    %v3265 = vunpack.c.l.b16 %v2879
    %v3266 = vunpack.c.h.b16 %v2879
    %v3267 = vunpack.c.l.b16 %v2880
    %v3268 = vunpack.c.h.b16 %v2880
    %v3269 = vunpack.c.l.b16 %v2881
    %v3270 = vunpack.c.h.b16 %v2881
    %v3271 = vunpack.c.l.b16 %v2882
    %v3272 = vunpack.c.h.b16 %v2882
    %v3273 = vpack.c.b16 %v3019, %v3017
    %v3274 = vpack.c.b16 %v3020, %v3018
    %v3275 = vpack.c.b16 %v3023, %v3021
    %v3276 = vpack.c.b16 %v3024, %v3022
    %v3277 = vpack.c.b16 %v3027, %v3025
    %v3278 = vpack.c.b16 %v3028, %v3026
    %v3279 = vpack.c.b16 %v3031, %v3029
    %v3280 = vpack.c.b16 %v3032, %v3030
    %v3281 = vpack.c.b16 %v3035, %v3033
    %v3282 = vpack.c.b16 %v3036, %v3034
    %v3283 = vpack.c.b16 %v3039, %v3037
    %v3284 = vpack.c.b16 %v3040, %v3038
    %v3285 = vpack.c.b16 %v3043, %v3041
    %v3286 = vpack.c.b16 %v3044, %v3042
    %v3287 = vpack.c.b16 %v3047, %v3045
    %v3288 = vpack.c.b16 %v3048, %v3046
    %v3289 = vpack.c.b16 %v3051, %v3049
    %v3290 = vpack.c.b16 %v3052, %v3050
    %v3291 = vpack.c.b16 %v3055, %v3053
    %v3292 = vpack.c.b16 %v3056, %v3054
    %v3293 = vpack.c.b16 %v3059, %v3057
    %v3294 = vpack.c.b16 %v3060, %v3058
    %v3295 = vpack.c.b16 %v3063, %v3061
    %v3296 = vpack.c.b16 %v3064, %v3062
    %v3297 = vpack.c.b16 %v3067, %v3065
    %v3298 = vpack.c.b16 %v3068, %v3066
    %v3299 = vpack.c.b16 %v3071, %v3069
    %v3300 = vpack.c.b16 %v3072, %v3070
    %v3301 = vpack.c.b16 %v3075, %v3073
    %v3302 = vpack.c.b16 %v3076, %v3074
    %v3303 = vpack.c.b16 %v3079, %v3077
    %v3304 = vpack.c.b16 %v3080, %v3078
    %v3305 = vpack.c.b16 %v3083, %v3081
    %v3306 = vpack.c.b16 %v3084, %v3082
    %v3307 = vpack.c.b16 %v3087, %v3085
    %v3308 = vpack.c.b16 %v3088, %v3086
    %v3309 = vpack.c.b16 %v3091, %v3089
    %v3310 = vpack.c.b16 %v3092, %v3090
    %v3311 = vpack.c.b16 %v3095, %v3093
    %v3312 = vpack.c.b16 %v3096, %v3094
    %v3313 = vpack.c.b16 %v3099, %v3097
    %v3314 = vpack.c.b16 %v3100, %v3098
    %v3315 = vpack.c.b16 %v3103, %v3101
    %v3316 = vpack.c.b16 %v3104, %v3102
    %v3317 = vpack.c.b16 %v3107, %v3105
    %v3318 = vpack.c.b16 %v3108, %v3106
    %v3319 = vpack.c.b16 %v3111, %v3109
    %v3320 = vpack.c.b16 %v3112, %v3110
    %v3321 = vpack.c.b16 %v3115, %v3113
    %v3322 = vpack.c.b16 %v3116, %v3114
    %v3323 = vpack.c.b16 %v3119, %v3117
    %v3324 = vpack.c.b16 %v3120, %v3118
    %v3325 = vpack.c.b16 %v3123, %v3121
    %v3326 = vpack.c.b16 %v3124, %v3122
    %v3327 = vpack.c.b16 %v3127, %v3125
    %v3328 = vpack.c.b16 %v3128, %v3126
    %v3329 = vpack.c.b16 %v3131, %v3129
    %v3330 = vpack.c.b16 %v3132, %v3130
    %v3331 = vpack.c.b16 %v3135, %v3133
    %v3332 = vpack.c.b16 %v3136, %v3134
    %v3333 = vpack.c.b16 %v3139, %v3137
    %v3334 = vpack.c.b16 %v3140, %v3138
    %v3335 = vpack.c.b16 %v3143, %v3141
    %v3336 = vpack.c.b16 %v3144, %v3142
    %v3337 = vpack.c.b16 %v3147, %v3145
    %v3338 = vpack.c.b16 %v3148, %v3146
    %v3339 = vpack.c.b16 %v3151, %v3149
    %v3340 = vpack.c.b16 %v3152, %v3150
    %v3341 = vpack.c.b16 %v3155, %v3153
    %v3342 = vpack.c.b16 %v3156, %v3154
    %v3343 = vpack.c.b16 %v3159, %v3157
    %v3344 = vpack.c.b16 %v3160, %v3158
    %v3345 = vpack.c.b16 %v3163, %v3161
    %v3346 = vpack.c.b16 %v3164, %v3162
    %v3347 = vpack.c.b16 %v3167, %v3165
    %v3348 = vpack.c.b16 %v3168, %v3166
    %v3349 = vpack.c.b16 %v3171, %v3169
    %v3350 = vpack.c.b16 %v3172, %v3170
    %v3351 = vpack.c.b16 %v3175, %v3173
    %v3352 = vpack.c.b16 %v3176, %v3174
    %v3353 = vpack.c.b16 %v3179, %v3177
    %v3354 = vpack.c.b16 %v3180, %v3178
    %v3355 = vpack.c.b16 %v3183, %v3181
    %v3356 = vpack.c.b16 %v3184, %v3182
    %v3357 = vpack.c.b16 %v3187, %v3185
    %v3358 = vpack.c.b16 %v3188, %v3186
    %v3359 = vpack.c.b16 %v3191, %v3189
    %v3360 = vpack.c.b16 %v3192, %v3190
    %v3361 = vpack.c.b16 %v3195, %v3193
    %v3362 = vpack.c.b16 %v3196, %v3194
    %v3363 = vpack.c.b16 %v3199, %v3197
    %v3364 = vpack.c.b16 %v3200, %v3198
    %v3365 = vpack.c.b16 %v3203, %v3201
    %v3366 = vpack.c.b16 %v3204, %v3202
    %v3367 = vpack.c.b16 %v3207, %v3205
    %v3368 = vpack.c.b16 %v3208, %v3206
    %v3369 = vpack.c.b16 %v3211, %v3209
    %v3370 = vpack.c.b16 %v3212, %v3210
    %v3371 = vpack.c.b16 %v3215, %v3213
    %v3372 = vpack.c.b16 %v3216, %v3214
    %v3373 = vpack.c.b16 %v3219, %v3217
    %v3374 = vpack.c.b16 %v3220, %v3218
    %v3375 = vpack.c.b16 %v3223, %v3221
    %v3376 = vpack.c.b16 %v3224, %v3222
    %v3377 = vpack.c.b16 %v3227, %v3225
    %v3378 = vpack.c.b16 %v3228, %v3226
    %v3379 = vpack.c.b16 %v3231, %v3229
    %v3380 = vpack.c.b16 %v3232, %v3230
    %v3381 = vpack.c.b16 %v3235, %v3233
    %v3382 = vpack.c.b16 %v3236, %v3234
    %v3383 = vpack.c.b16 %v3239, %v3237
    %v3384 = vpack.c.b16 %v3240, %v3238
    %v3385 = vpack.c.b16 %v3243, %v3241
    %v3386 = vpack.c.b16 %v3244, %v3242
    %v3387 = vpack.c.b16 %v3247, %v3245
    %v3388 = vpack.c.b16 %v3248, %v3246
    %v3389 = vpack.c.b16 %v3251, %v3249
    %v3390 = vpack.c.b16 %v3252, %v3250
    %v3391 = vpack.c.b16 %v3255, %v3253
    %v3392 = vpack.c.b16 %v3256, %v3254
    %v3393 = vpack.c.b16 %v3259, %v3257
    %v3394 = vpack.c.b16 %v3260, %v3258
    %v3395 = vpack.c.b16 %v3263, %v3261
    %v3396 = vpack.c.b16 %v3264, %v3262
    %v3397 = vpack.c.b16 %v3267, %v3265
    %v3398 = vpack.c.b16 %v3268, %v3266
    %v3399 = vpack.c.b16 %v3271, %v3269
    %v3400 = vpack.c.b16 %v3272, %v3270
    %3529 = vmatpush.bf16.msra.mxu0 %v3287
    %3530 = vmatpush.bf16.msra.mxu0 %v3285
    %3531 = vmatpush.bf16.msra.mxu0 %v3283
    %3532 = vmatpush.bf16.msra.mxu0 %v3281
    %3533 = vmatpush.bf16.msra.mxu0 %v3279
    %3534 = vmatpush.bf16.msra.mxu0 %v3277
    %3535 = vmatpush.bf16.msra.mxu0 %v3275
    %3536 = vmatpush.bf16.msra.mxu0 %v3273
    %3537 = vmatmul.bf16.gmra.mxu0 %v2747
    %v3538 = vpop.f32.mrf.mxu0
    %v3539 = vadd.f32 %v2885, %v3538
    %v3540 = vpop.f32.mrf.mxu0
    %3541 = vdwg.mxu0
    %3542 = vmatpush.bf16.msra.mxu0 %v3303
    %3543 = vmatpush.bf16.msra.mxu0 %v3301
    %3544 = vmatpush.bf16.msra.mxu0 %v3299
    %3545 = vmatpush.bf16.msra.mxu0 %v3297
    %3546 = vmatpush.bf16.msra.mxu0 %v3295
    %3547 = vmatpush.bf16.msra.mxu0 %v3293
    %3548 = vmatpush.bf16.msra.mxu0 %v3291
    %3549 = vmatpush.bf16.msra.mxu0 %v3289
    %3550 = vmatmul.bf16.gmra.mxu0 %v2748
    %v3551 = vpop.f32.mrf.mxu0
    %v3552 = vadd.f32 %v3539, %v3551
    %v3553 = vpop.f32.mrf.mxu0
    %3554 = vdwg.mxu0
    %3555 = vmatpush.bf16.msra.mxu0 %v3319
    %3556 = vmatpush.bf16.msra.mxu0 %v3317
    %3557 = vmatpush.bf16.msra.mxu0 %v3315
    %3558 = vmatpush.bf16.msra.mxu0 %v3313
    %3559 = vmatpush.bf16.msra.mxu0 %v3311
    %3560 = vmatpush.bf16.msra.mxu0 %v3309
    %3561 = vmatpush.bf16.msra.mxu0 %v3307
    %3562 = vmatpush.bf16.msra.mxu0 %v3305
    %3563 = vmatmul.bf16.gmra.mxu0 %v2749
    %v3564 = vpop.f32.mrf.mxu0
    %v3565 = vadd.f32 %v3552, %v3564
    %v3566 = vpop.f32.mrf.mxu0
    %3567 = vdwg.mxu0
    %3568 = vmatpush.bf16.msra.mxu0 %v3335
    %3569 = vmatpush.bf16.msra.mxu0 %v3333
    %3570 = vmatpush.bf16.msra.mxu0 %v3331
    %3571 = vmatpush.bf16.msra.mxu0 %v3329
    %3572 = vmatpush.bf16.msra.mxu0 %v3327
    %3573 = vmatpush.bf16.msra.mxu0 %v3325
    %3574 = vmatpush.bf16.msra.mxu0 %v3323
    %3575 = vmatpush.bf16.msra.mxu0 %v3321
    %3576 = vmatmul.bf16.gmra.mxu0 %v2750
    %v3577 = vpop.f32.mrf.mxu0
    %v3578 = vadd.f32 %v3565, %v3577
    %v3579 = vpop.f32.mrf.mxu0
    %3580 = vdwg.mxu0
    %3581 = vmatpush.bf16.msra.mxu0 %v3351
    %3582 = vmatpush.bf16.msra.mxu0 %v3349
    %3583 = vmatpush.bf16.msra.mxu0 %v3347
    %3584 = vmatpush.bf16.msra.mxu0 %v3345
    %3585 = vmatpush.bf16.msra.mxu0 %v3343
    %3586 = vmatpush.bf16.msra.mxu0 %v3341
    %3587 = vmatpush.bf16.msra.mxu0 %v3339
    %3588 = vmatpush.bf16.msra.mxu0 %v3337
    %3589 = vmatmul.bf16.gmra.mxu0 %v2751
    %v3590 = vpop.f32.mrf.mxu0
    %v3591 = vadd.f32 %v3578, %v3590
    %v3592 = vpop.f32.mrf.mxu0
    %3593 = vdwg.mxu0
    %3594 = vmatpush.bf16.msra.mxu0 %v3367
    %3595 = vmatpush.bf16.msra.mxu0 %v3365
    %3596 = vmatpush.bf16.msra.mxu0 %v3363
    %3597 = vmatpush.bf16.msra.mxu0 %v3361
    %3598 = vmatpush.bf16.msra.mxu0 %v3359
    %3599 = vmatpush.bf16.msra.mxu0 %v3357
    %3600 = vmatpush.bf16.msra.mxu0 %v3355
    %3601 = vmatpush.bf16.msra.mxu0 %v3353
    %3602 = vmatmul.bf16.gmra.mxu0 %v2752
    %v3603 = vpop.f32.mrf.mxu0
    %v3604 = vadd.f32 %v3591, %v3603
    %v3605 = vpop.f32.mrf.mxu0
    %3606 = vdwg.mxu0
    %3607 = vmatpush.bf16.msra.mxu0 %v3383
    %3608 = vmatpush.bf16.msra.mxu0 %v3381
    %3609 = vmatpush.bf16.msra.mxu0 %v3379
    %3610 = vmatpush.bf16.msra.mxu0 %v3377
    %3611 = vmatpush.bf16.msra.mxu0 %v3375
    %3612 = vmatpush.bf16.msra.mxu0 %v3373
    %3613 = vmatpush.bf16.msra.mxu0 %v3371
    %3614 = vmatpush.bf16.msra.mxu0 %v3369
    %3615 = vmatmul.bf16.gmra.mxu0 %v2753
    %v3616 = vpop.f32.mrf.mxu0
    %v3617 = vadd.f32 %v3604, %v3616
    %v3618 = vpop.f32.mrf.mxu0
    %3619 = vdwg.mxu0
    %3620 = vmatpush.bf16.msra.mxu0 %v3399
    %3621 = vmatpush.bf16.msra.mxu0 %v3397
    %3622 = vmatpush.bf16.msra.mxu0 %v3395
    %3623 = vmatpush.bf16.msra.mxu0 %v3393
    %3624 = vmatpush.bf16.msra.mxu0 %v3391
    %3625 = vmatpush.bf16.msra.mxu0 %v3389
    %3626 = vmatpush.bf16.msra.mxu0 %v3387
    %3627 = vmatpush.bf16.msra.mxu0 %v3385
    %3628 = vmatmul.bf16.gmra.mxu0 %v2754
    %v3629 = vpop.f32.mrf.mxu0
    %v3630 = vadd.f32 %v3617, %v3629
    %v3631 = vpop.f32.mrf.mxu0
    %3632 = vdwg.mxu0
    %3633 = vmatpush.bf16.msra.mxu0 %v3288
    %3634 = vmatpush.bf16.msra.mxu0 %v3286
    %3635 = vmatpush.bf16.msra.mxu0 %v3284
    %3636 = vmatpush.bf16.msra.mxu0 %v3282
    %3637 = vmatpush.bf16.msra.mxu0 %v3280
    %3638 = vmatpush.bf16.msra.mxu0 %v3278
    %3639 = vmatpush.bf16.msra.mxu0 %v3276
    %3640 = vmatpush.bf16.msra.mxu0 %v3274
    %3641 = vmatmul.bf16.gmra.mxu0 %v2747
    %v3642 = vpop.f32.mrf.mxu0
    %v3643 = vadd.f32 %v2886, %v3642
    %v3644 = vpop.f32.mrf.mxu0
    %3645 = vdwg.mxu0
    %3646 = vmatpush.bf16.msra.mxu0 %v3304
    %3647 = vmatpush.bf16.msra.mxu0 %v3302
    %3648 = vmatpush.bf16.msra.mxu0 %v3300
    %3649 = vmatpush.bf16.msra.mxu0 %v3298
    %3650 = vmatpush.bf16.msra.mxu0 %v3296
    %3651 = vmatpush.bf16.msra.mxu0 %v3294
    %3652 = vmatpush.bf16.msra.mxu0 %v3292
    %3653 = vmatpush.bf16.msra.mxu0 %v3290
    %3654 = vmatmul.bf16.gmra.mxu0 %v2748
    %v3655 = vpop.f32.mrf.mxu0
    %v3656 = vadd.f32 %v3643, %v3655
    %v3657 = vpop.f32.mrf.mxu0
    %3658 = vdwg.mxu0
    %3659 = vmatpush.bf16.msra.mxu0 %v3320
    %3660 = vmatpush.bf16.msra.mxu0 %v3318
    %3661 = vmatpush.bf16.msra.mxu0 %v3316
    %3662 = vmatpush.bf16.msra.mxu0 %v3314
    %3663 = vmatpush.bf16.msra.mxu0 %v3312
    %3664 = vmatpush.bf16.msra.mxu0 %v3310
    %3665 = vmatpush.bf16.msra.mxu0 %v3308
    %3666 = vmatpush.bf16.msra.mxu0 %v3306
    %3667 = vmatmul.bf16.gmra.mxu0 %v2749
    %v3668 = vpop.f32.mrf.mxu0
    %v3669 = vadd.f32 %v3656, %v3668
    %v3670 = vpop.f32.mrf.mxu0
    %3671 = vdwg.mxu0
    %3672 = vmatpush.bf16.msra.mxu0 %v3336
    %3673 = vmatpush.bf16.msra.mxu0 %v3334
    %3674 = vmatpush.bf16.msra.mxu0 %v3332
    %3675 = vmatpush.bf16.msra.mxu0 %v3330
    %3676 = vmatpush.bf16.msra.mxu0 %v3328
    %3677 = vmatpush.bf16.msra.mxu0 %v3326
    %3678 = vmatpush.bf16.msra.mxu0 %v3324
    %3679 = vmatpush.bf16.msra.mxu0 %v3322
    %3680 = vmatmul.bf16.gmra.mxu0 %v2750
    %v3681 = vpop.f32.mrf.mxu0
    %v3682 = vadd.f32 %v3669, %v3681
    %v3683 = vpop.f32.mrf.mxu0
    %3684 = vdwg.mxu0
    %3685 = vmatpush.bf16.msra.mxu0 %v3352
    %3686 = vmatpush.bf16.msra.mxu0 %v3350
    %3687 = vmatpush.bf16.msra.mxu0 %v3348
    %3688 = vmatpush.bf16.msra.mxu0 %v3346
    %3689 = vmatpush.bf16.msra.mxu0 %v3344
    %3690 = vmatpush.bf16.msra.mxu0 %v3342
    %3691 = vmatpush.bf16.msra.mxu0 %v3340
    %3692 = vmatpush.bf16.msra.mxu0 %v3338
    %3693 = vmatmul.bf16.gmra.mxu0 %v2751
    %v3694 = vpop.f32.mrf.mxu0
    %v3695 = vadd.f32 %v3682, %v3694
    %v3696 = vpop.f32.mrf.mxu0
    %3697 = vdwg.mxu0
    %3698 = vmatpush.bf16.msra.mxu0 %v3368
    %3699 = vmatpush.bf16.msra.mxu0 %v3366
    %3700 = vmatpush.bf16.msra.mxu0 %v3364
    %3701 = vmatpush.bf16.msra.mxu0 %v3362
    %3702 = vmatpush.bf16.msra.mxu0 %v3360
    %3703 = vmatpush.bf16.msra.mxu0 %v3358
    %3704 = vmatpush.bf16.msra.mxu0 %v3356
    %3705 = vmatpush.bf16.msra.mxu0 %v3354
    %3706 = vmatmul.bf16.gmra.mxu0 %v2752
    %v3707 = vpop.f32.mrf.mxu0
    %v3708 = vadd.f32 %v3695, %v3707
    %v3709 = vpop.f32.mrf.mxu0
    %3710 = vdwg.mxu0
    %3711 = vmatpush.bf16.msra.mxu0 %v3384
    %3712 = vmatpush.bf16.msra.mxu0 %v3382
    %3713 = vmatpush.bf16.msra.mxu0 %v3380
    %3714 = vmatpush.bf16.msra.mxu0 %v3378
    %3715 = vmatpush.bf16.msra.mxu0 %v3376
    %3716 = vmatpush.bf16.msra.mxu0 %v3374
    %3717 = vmatpush.bf16.msra.mxu0 %v3372
    %3718 = vmatpush.bf16.msra.mxu0 %v3370
    %3719 = vmatmul.bf16.gmra.mxu0 %v2753
    %v3720 = vpop.f32.mrf.mxu0
    %v3721 = vadd.f32 %v3708, %v3720
    %v3722 = vpop.f32.mrf.mxu0
    %3723 = vdwg.mxu0
    %3724 = vmatpush.bf16.msra.mxu0 %v3400
    %3725 = vmatpush.bf16.msra.mxu0 %v3398
    %3726 = vmatpush.bf16.msra.mxu0 %v3396
    %3727 = vmatpush.bf16.msra.mxu0 %v3394
    %3728 = vmatpush.bf16.msra.mxu0 %v3392
    %3729 = vmatpush.bf16.msra.mxu0 %v3390
    %3730 = vmatpush.bf16.msra.mxu0 %v3388
    %3731 = vmatpush.bf16.msra.mxu0 %v3386
    %3732 = vmatmul.bf16.gmra.mxu0 %v2754
    %v3733 = vpop.f32.mrf.mxu0
    %v3734 = vadd.f32 %v3721, %v3733
    %v3735 = vpop.f32.mrf.mxu0
    %3736 = vdwg.mxu0
    %v3737 = vtanh.pop %v3630
    %v3738 = vtanh.pop %v3734
    %v3739 = vpack.c.bf16 %v3738, %v3737
    %3740 = vst [vmem:[#allocation13] sm:$0xff] %v3739
    // Predicated region
    $region66: #{tpu_custom_call.1} parent=1 // pred_check
      _
    $region67: #{tpu_custom_call.1} parent=1 // pred_check_branch
      %3742 = sbr.rel (0) target = $region69
    $region68: #{tpu_custom_call.1} parent=1 // pred_region
      %3744 = vsyncadd [#allocation4], 0
      %s3746 = sshll.u32 [#allocation13], 4
      %s3747 = int_to_ptr.vmem [resolvable:$true] %s3746
      %s3748 = sshll.u32 %s10, 4
      %s3749 = int_to_ptr.hbm [resolvable:$true] %s3748
      %3751 = dma.vmem_to_hbm [thread:$0]  %s3747, 128, %s3749, [#allocation4]
    $region69: #{tpu_custom_call.1} parent=1 // pred_fallthru
      _
    // Predicated region
    $region70: #{tpu_custom_call.1} parent=1 // pred_check
      _
    $region71: #{tpu_custom_call.1} parent=1 // pred_check_branch
      %3753 = sbr.rel (0) target = $region73
    $region72: #{tpu_custom_call.1} parent=1 // pred_region
      %3755 = dma.done [#allocation4], 128
    $region73: #{tpu_custom_call.1} parent=1 // pred_fallthru
      _
    %3756 = vsyncpa [#allocation3], 1
    %3757 = vsyncpa [#allocation6], 1
    %3758 = vsyncpa [#allocation9], 1
    %3759 = vsyncpa [#allocation12], 1
    %3760 = vsyncpa [#allocation4], 1

</llo_original>
